<compile_context>
chip_gen: v5e
topology: v5e:2x2
jax: 0.10.0
libtpu: 0.0.40
codegen_flags: <defaults>
</compile_context>

<pallas_src>
import math

import jax
import jax.numpy as jnp
from jax.experimental import pallas as pl
from jax.experimental.pallas import tpu as pltpu  # noqa: F401  (kept for TPU-specific tuning hooks)

# ------------------------- config (small synthetic sizes) -------------------------
INPUT_DIM  = 32
KEY_DIM    = 32
HIDDEN_DIM = 32
N_LAYERS   = 2          # MLP hidden layers == perceiver self-attn layers/blocks
N_SK_SLOTS = 4
N_AGENTS   = 5
BATCH      = 2
LN_EPS     = 1e-5

BL = BATCH * N_AGENTS        # batch-stacked agent rows
BS = BATCH * N_SK_SLOTS      # batch-stacked latent rows
_NEG = -1e30                 # additive mask value (exp underflows to exactly 0)


def _ceil8(n):
    return (n + 7) // 8 * 8


# ------------------------- static packing layout (shared by packer & kernel) -------------------------
# (32, 32) weight stack indices
IW_CROSS_WQ     = 0
IW_CROSS_WO     = 1
IW_CROSS_MLP_W1 = 2
IW_CROSS_MLP_W2 = 3
def IW_SELF_WO(li):     return 4 + 3 * li
def IW_SELF_MLP_W1(li): return 5 + 3 * li
def IW_SELF_MLP_W2(li): return 6 + 3 * li
IW_READ_WQ      = 4 + 3 * N_LAYERS
IW_READ_WO      = IW_READ_WQ + 1
IW_COMB_W0_TOP  = IW_READ_WQ + 2
IW_COMB_W0_BOT  = IW_READ_WQ + 3
def IW_COMB_W(j):       return IW_READ_WQ + 4 + (j - 1)   # j = 1..N_LAYERS
N_W32           = IW_READ_WQ + 4 + N_LAYERS

# (32, 64) weight stack indices
IW64_DUAL_W0   = 0
IW64_CROSS_WKV = 1
IW64_READ_WKV  = 2

# bias / aux pack rows (each row padded to 128 lanes)
def IB_DUAL_B(j):       return j                                # j = 0..N_LAYERS
IB_CROSS_BQ     = N_LAYERS + 1
IB_CROSS_BKV    = IB_CROSS_BQ + 1
IB_CROSS_BO     = IB_CROSS_BQ + 2
IB_CROSS_MLP_B1 = IB_CROSS_BQ + 3
IB_CROSS_MLP_B2 = IB_CROSS_BQ + 4
def IB_SELF_BQKV(li):   return IB_CROSS_BQ + 5 + 4 * li
def IB_SELF_BO(li):     return IB_CROSS_BQ + 6 + 4 * li
def IB_SELF_MLP_B1(li): return IB_CROSS_BQ + 7 + 4 * li
def IB_SELF_MLP_B2(li): return IB_CROSS_BQ + 8 + 4 * li
IB_READ_BQ      = IB_CROSS_BQ + 5 + 4 * N_LAYERS
IB_READ_BKV     = IB_READ_BQ + 1
IB_READ_BO      = IB_READ_BQ + 2
def IB_COMB_B(j):       return IB_READ_BQ + 3 + j               # j = 0..N_LAYERS
N_BIAS_ROWS     = IB_READ_BQ + 3 + N_LAYERS + 1

ROW_POS        = _ceil8(N_BIAS_ROWS)          # tiled positional encoding (BL, K)
ROW_LAT        = ROW_POS + _ceil8(BL)         # tiled latents (BS, K)
ROW_MASK_CROSS = ROW_LAT + _ceil8(BS)         # (BS, BL) additive mask
ROW_MASK_SELF  = ROW_MASK_CROSS + _ceil8(BS)  # (BS, BS) additive mask
ROW_MASK_READ  = ROW_MASK_SELF + _ceil8(BS)   # (BL, BS) additive mask
BP_ROWS        = ROW_MASK_READ + _ceil8(BL)
BP_COLS        = 128


# ------------------------- the single fused kernel -------------------------
def _fused_forward_kernel(x_ref, w32_ref, w64_ref, w96_ref, wdd_ref, bp_ref, o_ref):
    f32 = jnp.float32
    K = KEY_DIM

    def brow(i, w):
        return bp_ref[i:i + 1, :w]                                    # (1, w) bias row

    def norm(v):                                                      # LN; affine folded into weights
        mu = jnp.mean(v, axis=-1, keepdims=True)
        var = jnp.mean(jnp.square(v - mu), axis=-1, keepdims=True)
        return (v - mu) * jax.lax.rsqrt(var + LN_EPS)

    def softmax_rows(s):                                              # additive mask already applied
        m = jnp.max(s, axis=-1, keepdims=True)
        e = jnp.exp(s - m)
        l = jnp.sum(e, axis=-1, keepdims=True)
        return e * pl.reciprocal(l, approx=True)                      # EUP divide (~1e-4 rel err)

    def attention(q_in, kv_in, wq, bq, wkv, bkv, wo, bo, mask_bias):
        # Pre-LN cross attention; LN affines and 1/sqrt(K) folded into wq/bq, wkv/bkv offline.
        q = jnp.dot(norm(q_in), wq, preferred_element_type=f32) + bq
        kv = jnp.dot(norm(kv_in), wkv, preferred_element_type=f32) + bkv
        k, v = kv[:, :K], kv[:, K:]
        s = jax.lax.dot_general(q, k, (((1,), (1,)), ((), ())),
                                preferred_element_type=f32) + mask_bias
        p = softmax_rows(s)
        o = jnp.dot(p, v, preferred_element_type=f32)
        return jnp.dot(o, wo, preferred_element_type=f32) + bo

    def self_attention(z, wqkv, bqkv, wo, bo, mask_bias):
        # q_in is kv_in: one LN + one fused (D, 3K) projection.
        qkv = jnp.dot(norm(z), wqkv, preferred_element_type=f32) + bqkv
        q, k, v = qkv[:, :K], qkv[:, K:2 * K], qkv[:, 2 * K:]
        s = jax.lax.dot_general(q, k, (((1,), (1,)), ((), ())),
                                preferred_element_type=f32) + mask_bias
        p = softmax_rows(s)
        o = jnp.dot(p, v, preferred_element_type=f32)
        return jnp.dot(o, wo, preferred_element_type=f32) + bo

    def transformer_mlp(z, w1, b1, w2, b2):
        # TODO(synk): torch nn.GELU default is exact erf; tanh approximation used here.
        h = jax.nn.gelu(jnp.dot(norm(z), w1, preferred_element_type=f32) + b1)
        return jnp.dot(h, w2, preferred_element_type=f32) + b2

    x = x_ref[...]                                                    # (B*L, INPUT_DIM), batch-stacked

    # ---- fused query_projector_s1 || original_state_projector (block-diagonal weights) ----
    h = jnp.tanh(jnp.dot(x, w64_ref[IW64_DUAL_W0], preferred_element_type=f32)
                 + brow(IB_DUAL_B(0), 2 * HIDDEN_DIM))
    for j in range(1, N_LAYERS):
        h = jnp.tanh(jnp.dot(h, wdd_ref[j - 1], preferred_element_type=f32)
                     + brow(IB_DUAL_B(j), 2 * HIDDEN_DIM))
    proj = jnp.dot(h, wdd_ref[N_LAYERS - 1], preferred_element_type=f32) \
        + brow(IB_DUAL_B(N_LAYERS), 2 * KEY_DIM)
    m2s_s = proj[:, :K]        # message_to_send * sqrt(key_dim)  (adapter scale folded offline)
    enc   = proj[:, K:]        # state_encoded

    # ---- perceiver input adapter: scaled message + (pre-tiled) positional encoding ----
    adapted = m2s_s + bp_ref[ROW_POS:ROW_POS + BL, :K]

    # block-diagonal (per-batch) additive score masks, packed offline
    m_cross = bp_ref[ROW_MASK_CROSS:ROW_MASK_CROSS + BS, :BL]
    m_self  = bp_ref[ROW_MASK_SELF:ROW_MASK_SELF + BS, :BS]
    m_read  = bp_ref[ROW_MASK_READ:ROW_MASK_READ + BL, :BS]

    # ---- perceiver encoder: cross-attention layer (residual attn + residual MLP) ----
    z = bp_ref[ROW_LAT:ROW_LAT + BS, :K]                              # latents, batch-stacked
    z = z + attention(z, adapted,
                      w32_ref[IW_CROSS_WQ], brow(IB_CROSS_BQ, K),
                      w64_ref[IW64_CROSS_WKV], brow(IB_CROSS_BKV, 2 * K),
                      w32_ref[IW_CROSS_WO], brow(IB_CROSS_BO, K),
                      m_cross)
    z = z + transformer_mlp(z,
                            w32_ref[IW_CROSS_MLP_W1], brow(IB_CROSS_MLP_B1, K),
                            w32_ref[IW_CROSS_MLP_W2], brow(IB_CROSS_MLP_B2, K))

    # ---- self-attention: N_LAYERS blocks x N_LAYERS layers, block weights shared ----
    # TODO(synk): exact perceiver-io block/weight-sharing layout depends on library version.
    for _ in range(N_LAYERS):
        for li in range(N_LAYERS):
            z = z + self_attention(z,
                                   w96_ref[li], brow(IB_SELF_BQKV(li), 3 * K),
                                   w32_ref[IW_SELF_WO(li)], brow(IB_SELF_BO(li), K),
                                   m_self)
            z = z + transformer_mlp(z,
                                    w32_ref[IW_SELF_MLP_W1(li)], brow(IB_SELF_MLP_B1(li), K),
                                    w32_ref[IW_SELF_MLP_W2(li)], brow(IB_SELF_MLP_B2(li), K))

    # ---- SK_attention_read: pre-LN cross attention, no residual ----
    message = attention(m2s_s, z,
                        w32_ref[IW_READ_WQ], brow(IB_READ_BQ, K),
                        w64_ref[IW64_READ_WKV], brow(IB_READ_BKV, 2 * K),
                        w32_ref[IW_READ_WO], brow(IB_READ_BO, K),
                        m_read)

    # ---- combined_state_projector on [state_encoded | message] (first layer row-split) ----
    h = jnp.tanh(jnp.dot(enc, w32_ref[IW_COMB_W0_TOP], preferred_element_type=f32)
                 + jnp.dot(message, w32_ref[IW_COMB_W0_BOT], preferred_element_type=f32)
                 + brow(IB_COMB_B(0), HIDDEN_DIM))
    for j in range(1, N_LAYERS):
        h = jnp.tanh(jnp.dot(h, w32_ref[IW_COMB_W(j)], preferred_element_type=f32)
                     + brow(IB_COMB_B(j), HIDDEN_DIM))
    o_ref[...] = jnp.dot(h, w32_ref[IW_COMB_W(N_LAYERS)], preferred_element_type=f32) \
        + brow(IB_COMB_B(N_LAYERS), KEY_DIM)


# ------------------------- wrapper -------------------------
def communication_forward(state, packed):
    """state: (bsz, n_agents, input_dim) -> (bsz, n_agents, key_dim). One grid-less pallas_call."""
    B, L, D = state.shape
    assert (B, L, D) == (BATCH, N_AGENTS, INPUT_DIM)
    w32, w64, w96, wdd, bp = packed
    out = pl.pallas_call(
        _fused_forward_kernel,
        out_shape=jax.ShapeDtypeStruct((B * L, KEY_DIM), jnp.float32),
    )(state.reshape(B * L, D), w32, w64, w96, wdd, bp)
    return out.reshape(B, L, KEY_DIM)


# ------------------------- deterministic parameter init (torch-like layout) -------------------------
def _init_params(key):
    keys = iter(jax.random.split(key, 256))

    def w(shape, s=0.05):
        return jax.random.normal(next(keys), shape, jnp.float32) * s

    def zeros(shape): return jnp.zeros(shape, jnp.float32)
    def ones(shape):  return jnp.ones(shape, jnp.float32)

    def mlp(d_in, d_out):
        layers = []
        dims = [d_in] + [HIDDEN_DIM] * N_LAYERS
        for i in range(N_LAYERS):
            layers.append((w((dims[i], dims[i + 1])), zeros((1, dims[i + 1]))))
        layers.append((w((HIDDEN_DIM, d_out)), zeros((1, d_out))))
        return layers

    def cross_attn(dq, dk):   # separate q / kv LayerNorms (perceiver-io CrossAttention)
        return dict(gq=ones((1, dq)), bq_ln=zeros((1, dq)),
                    gkv=ones((1, dk)), bkv_ln=zeros((1, dk)),
                    wq=w((dq, KEY_DIM)), bq=zeros((1, KEY_DIM)),
                    wk=w((dk, KEY_DIM)), bk=zeros((1, KEY_DIM)),
                    wv=w((dk, KEY_DIM)), bv=zeros((1, KEY_DIM)),
                    wo=w((KEY_DIM, KEY_DIM)), bo=zeros((1, KEY_DIM)))

    def self_attn(d):         # single pre-LN (perceiver-io SelfAttention)
        return dict(g=ones((1, d)), b_ln=zeros((1, d)),
                    wq=w((d, KEY_DIM)), bq=zeros((1, KEY_DIM)),
                    wk=w((d, KEY_DIM)), bk=zeros((1, KEY_DIM)),
                    wv=w((d, KEY_DIM)), bv=zeros((1, KEY_DIM)),
                    wo=w((KEY_DIM, KEY_DIM)), bo=zeros((1, KEY_DIM)))

    def tmlp(d):              # widening_factor = 1 (perceiver-io default)
        return dict(g=ones((1, d)), b_ln=zeros((1, d)),
                    w1=w((d, d)), b1=zeros((1, d)),
                    w2=w((d, d)), b2=zeros((1, d)))

    return dict(
        query_proj=mlp(INPUT_DIM, KEY_DIM),
        orig_proj=mlp(INPUT_DIM, KEY_DIM),
        combined_proj=mlp(2 * KEY_DIM, KEY_DIM),
        pos_enc=jax.random.uniform(next(keys), (N_AGENTS, KEY_DIM), jnp.float32, -0.5, 0.5),
        latents=jax.random.normal(next(keys), (N_SK_SLOTS, KEY_DIM), jnp.float32) * 0.02,
        perc_cross_attn=cross_attn(KEY_DIM, KEY_DIM),
        perc_cross_mlp=tmlp(KEY_DIM),
        perc_self=[dict(attn=self_attn(KEY_DIM), mlp=tmlp(KEY_DIM)) for _ in range(N_LAYERS)],
        read_attn=cross_attn(KEY_DIM, KEY_DIM),
    )


# ------------------------- one-time offline packing into 5 VMEM operands -------------------------
def _pack_params(params):
    f32 = jnp.float32
    scale = 1.0 / math.sqrt(KEY_DIM)   # softmax scale, folded into Wq
    sqrt_d = math.sqrt(KEY_DIM)        # input-adapter scale, folded into query-path output layer

    def fold_ln(g, b, wmat, bias):
        # (norm(x) * g + b) @ W + bias == norm(x) @ (g^T * W) + (b @ W + bias)
        return g.reshape(-1, 1) * wmat, b @ wmat + bias

    # fused dual projector (query || orig): concat first-layer cols, block-diag after
    dual_w, dual_b = [], []
    for i, ((wa, ba), (wb, bb)) in enumerate(zip(params['query_proj'], params['orig_proj'])):
        if i == N_LAYERS:                               # fold sqrt(key_dim) into query-path output
            wa, ba = wa * sqrt_d, ba * sqrt_d
        if i == 0:
            wf = jnp.concatenate([wa, wb], axis=1)
        else:
            z1 = jnp.zeros((wa.shape[0], wb.shape[1]), f32)
            z2 = jnp.zeros((wb.shape[0], wa.shape[1]), f32)
            wf = jnp.concatenate([jnp.concatenate([wa, z1], axis=1),
                                  jnp.concatenate([z2, wb], axis=1)], axis=0)
        dual_w.append(wf)
        dual_b.append(jnp.concatenate([ba, bb], axis=1))

    def pack_cross(p):
        wq, bq = fold_ln(p['gq'], p['bq_ln'], p['wq'], p['bq'])
        wq, bq = wq * scale, bq * scale
        wk, bk = fold_ln(p['gkv'], p['bkv_ln'], p['wk'], p['bk'])
        wv, bv = fold_ln(p['gkv'], p['bkv_ln'], p['wv'], p['bv'])
        return (wq, bq, jnp.concatenate([wk, wv], 1), jnp.concatenate([bk, bv], 1),
                p['wo'], p['bo'])

    def pack_self(p):
        wq, bq = fold_ln(p['g'], p['b_ln'], p['wq'], p['bq'])
        wq, bq = wq * scale, bq * scale
        wk, bk = fold_ln(p['g'], p['b_ln'], p['wk'], p['bk'])
        wv, bv = fold_ln(p['g'], p['b_ln'], p['wv'], p['bv'])
        return (jnp.concatenate([wq, wk, wv], 1), jnp.concatenate([bq, bk, bv], 1),
                p['wo'], p['bo'])

    def pack_tmlp(p):
        w1, b1 = fold_ln(p['g'], p['b_ln'], p['w1'], p['b1'])
        return w1, b1, p['w2'], p['b2']

    ca = pack_cross(params['perc_cross_attn'])
    cm = pack_tmlp(params['perc_cross_mlp'])
    selfs = [(pack_self(lp['attn']), pack_tmlp(lp['mlp'])) for lp in params['perc_self']]
    ra = pack_cross(params['read_attn'])

    comb = params['combined_proj']
    comb_w0, comb_b0 = comb[0]
    comb_w0_top, comb_w0_bot = comb_w0[:KEY_DIM], comb_w0[KEY_DIM:]   # row-split first layer

    # ---- (32,32) stack ----
    w32 = [None] * N_W32
    w32[IW_CROSS_WQ], w32[IW_CROSS_WO] = ca[0], ca[4]
    w32[IW_CROSS_MLP_W1], w32[IW_CROSS_MLP_W2] = cm[0], cm[2]
    for li, (sa, sm) in enumerate(selfs):
        w32[IW_SELF_WO(li)] = sa[2]
        w32[IW_SELF_MLP_W1(li)] = sm[0]
        w32[IW_SELF_MLP_W2(li)] = sm[2]
    w32[IW_READ_WQ], w32[IW_READ_WO] = ra[0], ra[4]
    w32[IW_COMB_W0_TOP], w32[IW_COMB_W0_BOT] = comb_w0_top, comb_w0_bot
    for j in range(1, N_LAYERS + 1):
        w32[IW_COMB_W(j)] = comb[j][0]
    w32 = jnp.stack(w32)

    w64 = jnp.stack([dual_w[0], ca[2], ra[2]])          # (3, 32, 64)
    w96 = jnp.stack([sa[0] for (sa, _) in selfs])       # (N_LAYERS, 32, 96)
    wdd = jnp.stack(dual_w[1:])                         # (N_LAYERS, 64, 64)

    # ---- bias / aux pack ----
    entries = []
    for j in range(N_LAYERS + 1):
        entries.append((IB_DUAL_B(j), dual_b[j]))
    entries += [(IB_CROSS_BQ, ca[1]), (IB_CROSS_BKV, ca[3]), (IB_CROSS_BO, ca[5]),
                (IB_CROSS_MLP_B1, cm[1]), (IB_CROSS_MLP_B2, cm[3])]
    for li, (sa, sm) in enumerate(selfs):
        entries += [(IB_SELF_BQKV(li), sa[1]), (IB_SELF_BO(li), sa[3]),
                    (IB_SELF_MLP_B1(li), sm[1]), (IB_SELF_MLP_B2(li), sm[3])]
    entries += [(IB_READ_BQ, ra[1]), (IB_READ_BKV, ra[3]), (IB_READ_BO, ra[5])]
    entries.append((IB_COMB_B(0), comb_b0))
    for j in range(1, N_LAYERS + 1):
        entries.append((IB_COMB_B(j), comb[j][1]))

    # positional encodings and latents, pre-tiled per batch element (batch stacked on rows)
    entries.append((ROW_POS, jnp.tile(params['pos_enc'][:N_AGENTS], (BATCH, 1))))
    entries.append((ROW_LAT, jnp.tile(params['latents'], (BATCH, 1))))

    # block-diagonal additive score masks (0 where same batch, -1e30 otherwise)
    def mask_bias(rows, per_r, cols, per_c):
        rb = jnp.repeat(jnp.arange(BATCH), per_r)[:rows]
        cb = jnp.repeat(jnp.arange(BATCH), per_c)[:cols]
        return jnp.where(rb[:, None] == cb[None, :], 0.0, _NEG).astype(f32)

    entries.append((ROW_MASK_CROSS, mask_bias(BS, N_SK_SLOTS, BL, N_AGENTS)))
    entries.append((ROW_MASK_SELF, mask_bias(BS, N_SK_SLOTS, BS, N_SK_SLOTS)))
    entries.append((ROW_MASK_READ, mask_bias(BL, N_AGENTS, BS, N_SK_SLOTS)))

    bp = jnp.zeros((BP_ROWS, BP_COLS), f32)
    for row, arr in entries:
        bp = bp.at[row:row + arr.shape[0], :arr.shape[1]].set(arr)

    return (w32, w64, w96, wdd, bp)


if __name__ == "__main__":
    key = jax.random.PRNGKey(0)
    pkey, xkey = jax.random.split(key)
    params = _init_params(pkey)
    packed = _pack_params(params)
    state = jax.random.normal(xkey, (BATCH, N_AGENTS, INPUT_DIM), jnp.float32)

    fwd = jax.jit(communication_forward)
    out = fwd(state, packed)
    jax.block_until_ready(out)
    assert out.shape == (BATCH, N_AGENTS, KEY_DIM)
    assert bool(jnp.all(jnp.isfinite(out)))
    print("KERNEL_OK")
</pallas_src>

<mosaic_0001>
module attributes {stable_mosaic.version = 11 : i64} {
  func.func @_fused_forward_kernel(%arg0: memref<10x32xf32, #tpu.memory_space<vmem>>, %arg1: memref<16x32x32xf32, #tpu.memory_space<vmem>>, %arg2: memref<3x32x64xf32, #tpu.memory_space<vmem>>, %arg3: memref<2x32x96xf32, #tpu.memory_space<vmem>>, %arg4: memref<2x64x64xf32, #tpu.memory_space<vmem>>, %arg5: memref<80x128xf32, #tpu.memory_space<vmem>>, %arg6: memref<10x32xf32, #tpu.memory_space<vmem>>) attributes {dimension_semantics = [], scalar_prefetch = 0 : i64, scratch_operands = 0 : i64, tpu.core_type = #tpu.core_type<tc>} {
    %c0 = arith.constant 0 : index
    %c0_0 = arith.constant 0 : index
    %0 = vector.load %arg0[%c0, %c0_0] : memref<10x32xf32, #tpu.memory_space<vmem>>, vector<10x32xf32>
    %c0_1 = arith.constant 0 : index
    %c0_2 = arith.constant 0 : index
    %c0_3 = arith.constant 0 : index
    %1 = vector.load %arg2[%c0_1, %c0_2, %c0_3] : memref<3x32x64xf32, #tpu.memory_space<vmem>>, vector<1x32x64xf32>
    %2 = vector.shape_cast %1 : vector<1x32x64xf32> to vector<32x64xf32>
    %cst = arith.constant dense<0.000000e+00> : vector<10x64xf32>
    %3 = tpu.matmul %0, %2, %cst {dimension_numbers = #tpu.dot_dimension_numbers<[1], [0], [0], [1], [0, 0, 1, 1], [], []>} : vector<10x32xf32>, vector<32x64xf32>, vector<10x64xf32> -> vector<10x64xf32>
    %c0_4 = arith.constant 0 : index
    %c0_5 = arith.constant 0 : index
    %4 = vector.load %arg5[%c0_4, %c0_5] : memref<80x128xf32, #tpu.memory_space<vmem>>, vector<1x64xf32>
    %5 = vector.broadcast %4 : vector<1x64xf32> to vector<10x64xf32>
    %6 = arith.addf %3, %5 : vector<10x64xf32>
    %7 = math.tanh %6 : vector<10x64xf32>
    %c0_6 = arith.constant 0 : index
    %c0_7 = arith.constant 0 : index
    %c0_8 = arith.constant 0 : index
    %8 = vector.load %arg4[%c0_6, %c0_7, %c0_8] : memref<2x64x64xf32, #tpu.memory_space<vmem>>, vector<1x64x64xf32>
    %9 = vector.shape_cast %8 : vector<1x64x64xf32> to vector<64x64xf32>
    %cst_9 = arith.constant dense<0.000000e+00> : vector<10x64xf32>
    %10 = tpu.matmul %7, %9, %cst_9 {dimension_numbers = #tpu.dot_dimension_numbers<[1], [0], [0], [1], [0, 0, 1, 1], [], []>} : vector<10x64xf32>, vector<64x64xf32>, vector<10x64xf32> -> vector<10x64xf32>
    %c1 = arith.constant 1 : index
    %c0_10 = arith.constant 0 : index
    %11 = vector.load %arg5[%c1, %c0_10] : memref<80x128xf32, #tpu.memory_space<vmem>>, vector<1x64xf32>
    %12 = vector.broadcast %11 : vector<1x64xf32> to vector<10x64xf32>
    %13 = arith.addf %10, %12 : vector<10x64xf32>
    %14 = math.tanh %13 : vector<10x64xf32>
    %c1_11 = arith.constant 1 : index
    %c0_12 = arith.constant 0 : index
    %c0_13 = arith.constant 0 : index
    %15 = vector.load %arg4[%c1_11, %c0_12, %c0_13] : memref<2x64x64xf32, #tpu.memory_space<vmem>>, vector<1x64x64xf32>
    %16 = vector.shape_cast %15 : vector<1x64x64xf32> to vector<64x64xf32>
    %cst_14 = arith.constant dense<0.000000e+00> : vector<10x64xf32>
    %17 = tpu.matmul %14, %16, %cst_14 {dimension_numbers = #tpu.dot_dimension_numbers<[1], [0], [0], [1], [0, 0, 1, 1], [], []>} : vector<10x64xf32>, vector<64x64xf32>, vector<10x64xf32> -> vector<10x64xf32>
    %c2 = arith.constant 2 : index
    %c0_15 = arith.constant 0 : index
    %18 = vector.load %arg5[%c2, %c0_15] : memref<80x128xf32, #tpu.memory_space<vmem>>, vector<1x64xf32>
    %19 = vector.broadcast %18 : vector<1x64xf32> to vector<10x64xf32>
    %20 = arith.addf %17, %19 : vector<10x64xf32>
    %21 = vector.extract_strided_slice %20 {offsets = [0, 0], sizes = [10, 32], strides = [1, 1]} : vector<10x64xf32> to vector<10x32xf32>
    %22 = vector.extract_strided_slice %20 {offsets = [0, 32], sizes = [10, 32], strides = [1, 1]} : vector<10x64xf32> to vector<10x32xf32>
    %c24 = arith.constant 24 : index
    %c0_16 = arith.constant 0 : index
    %23 = vector.load %arg5[%c24, %c0_16] : memref<80x128xf32, #tpu.memory_space<vmem>>, vector<10x32xf32>
    %24 = arith.addf %21, %23 : vector<10x32xf32>
    %c48 = arith.constant 48 : index
    %c0_17 = arith.constant 0 : index
    %25 = vector.load %arg5[%c48, %c0_17] : memref<80x128xf32, #tpu.memory_space<vmem>>, vector<8x10xf32>
    %c56 = arith.constant 56 : index
    %c0_18 = arith.constant 0 : index
    %26 = vector.load %arg5[%c56, %c0_18] : memref<80x128xf32, #tpu.memory_space<vmem>>, vector<8x8xf32>
    %c64 = arith.constant 64 : index
    %c0_19 = arith.constant 0 : index
    %27 = vector.load %arg5[%c64, %c0_19] : memref<80x128xf32, #tpu.memory_space<vmem>>, vector<10x8xf32>
    %c40 = arith.constant 40 : index
    %c0_20 = arith.constant 0 : index
    %28 = vector.load %arg5[%c40, %c0_20] : memref<80x128xf32, #tpu.memory_space<vmem>>, vector<8x32xf32>
    %c0_21 = arith.constant 0 : index
    %c0_22 = arith.constant 0 : index
    %c0_23 = arith.constant 0 : index
    %29 = vector.load %arg1[%c0_21, %c0_22, %c0_23] : memref<16x32x32xf32, #tpu.memory_space<vmem>>, vector<1x32x32xf32>
    %30 = vector.shape_cast %29 : vector<1x32x32xf32> to vector<32x32xf32>
    %c3 = arith.constant 3 : index
    %c0_24 = arith.constant 0 : index
    %31 = vector.load %arg5[%c3, %c0_24] : memref<80x128xf32, #tpu.memory_space<vmem>>, vector<1x32xf32>
    %c1_25 = arith.constant 1 : index
    %c0_26 = arith.constant 0 : index
    %c0_27 = arith.constant 0 : index
    %32 = vector.load %arg2[%c1_25, %c0_26, %c0_27] : memref<3x32x64xf32, #tpu.memory_space<vmem>>, vector<1x32x64xf32>
    %33 = vector.shape_cast %32 : vector<1x32x64xf32> to vector<32x64xf32>
    %c4 = arith.constant 4 : index
    %c0_28 = arith.constant 0 : index
    %34 = vector.load %arg5[%c4, %c0_28] : memref<80x128xf32, #tpu.memory_space<vmem>>, vector<1x64xf32>
    %c1_29 = arith.constant 1 : index
    %c0_30 = arith.constant 0 : index
    %c0_31 = arith.constant 0 : index
    %35 = vector.load %arg1[%c1_29, %c0_30, %c0_31] : memref<16x32x32xf32, #tpu.memory_space<vmem>>, vector<1x32x32xf32>
    %36 = vector.shape_cast %35 : vector<1x32x32xf32> to vector<32x32xf32>
    %c5 = arith.constant 5 : index
    %c0_32 = arith.constant 0 : index
    %37 = vector.load %arg5[%c5, %c0_32] : memref<80x128xf32, #tpu.memory_space<vmem>>, vector<1x32xf32>
    %cst_33 = arith.constant dense<0.000000e+00> : vector<8xf32>
    %38 = vector.multi_reduction <add>, %28, %cst_33 [1] : vector<8x32xf32> to vector<8xf32>
    %39 = vector.shape_cast %38 : vector<8xf32> to vector<8x1xf32>
    %cst_34 = arith.constant 3.200000e+01 : f32
    %40 = vector.broadcast %cst_34 : f32 to vector<8x1xf32>
    %41 = arith.divf %39, %40 : vector<8x1xf32>
    %42 = vector.broadcast %41 : vector<8x1xf32> to vector<8x32xf32>
    %43 = arith.subf %28, %42 : vector<8x32xf32>
    %44 = arith.mulf %43, %43 : vector<8x32xf32>
    %cst_35 = arith.constant dense<0.000000e+00> : vector<8xf32>
    %45 = vector.multi_reduction <add>, %44, %cst_35 [1] : vector<8x32xf32> to vector<8xf32>
    %46 = vector.shape_cast %45 : vector<8xf32> to vector<8x1xf32>
    %cst_36 = arith.constant 3.200000e+01 : f32
    %47 = vector.broadcast %cst_36 : f32 to vector<8x1xf32>
    %48 = arith.divf %46, %47 : vector<8x1xf32>
    %49 = vector.broadcast %41 : vector<8x1xf32> to vector<8x32xf32>
    %50 = arith.subf %28, %49 : vector<8x32xf32>
    %cst_37 = arith.constant 9.99999974E-6 : f32
    %51 = vector.broadcast %cst_37 : f32 to vector<8x1xf32>
    %52 = arith.addf %48, %51 : vector<8x1xf32>
    %53 = math.rsqrt %52 : vector<8x1xf32>
    %54 = vector.broadcast %53 : vector<8x1xf32> to vector<8x32xf32>
    %55 = arith.mulf %50, %54 : vector<8x32xf32>
    %cst_38 = arith.constant dense<0.000000e+00> : vector<8x32xf32>
    %56 = tpu.matmul %55, %30, %cst_38 {dimension_numbers = #tpu.dot_dimension_numbers<[1], [0], [0], [1], [0, 0, 1, 1], [], []>} : vector<8x32xf32>, vector<32x32xf32>, vector<8x32xf32> -> vector<8x32xf32>
    %57 = vector.broadcast %31 : vector<1x32xf32> to vector<8x32xf32>
    %58 = arith.addf %56, %57 : vector<8x32xf32>
    %cst_39 = arith.constant dense<0.000000e+00> : vector<10xf32>
    %59 = vector.multi_reduction <add>, %24, %cst_39 [1] : vector<10x32xf32> to vector<10xf32>
    %60 = vector.shape_cast %59 : vector<10xf32> to vector<10x1xf32>
    %cst_40 = arith.constant 3.200000e+01 : f32
    %61 = vector.broadcast %cst_40 : f32 to vector<10x1xf32>
    %62 = arith.divf %60, %61 : vector<10x1xf32>
    %63 = vector.broadcast %62 : vector<10x1xf32> to vector<10x32xf32>
    %64 = arith.subf %24, %63 : vector<10x32xf32>
    %65 = arith.mulf %64, %64 : vector<10x32xf32>
    %cst_41 = arith.constant dense<0.000000e+00> : vector<10xf32>
    %66 = vector.multi_reduction <add>, %65, %cst_41 [1] : vector<10x32xf32> to vector<10xf32>
    %67 = vector.shape_cast %66 : vector<10xf32> to vector<10x1xf32>
    %cst_42 = arith.constant 3.200000e+01 : f32
    %68 = vector.broadcast %cst_42 : f32 to vector<10x1xf32>
    %69 = arith.divf %67, %68 : vector<10x1xf32>
    %70 = vector.broadcast %62 : vector<10x1xf32> to vector<10x32xf32>
    %71 = arith.subf %24, %70 : vector<10x32xf32>
    %cst_43 = arith.constant 9.99999974E-6 : f32
    %72 = vector.broadcast %cst_43 : f32 to vector<10x1xf32>
    %73 = arith.addf %69, %72 : vector<10x1xf32>
    %74 = math.rsqrt %73 : vector<10x1xf32>
    %75 = vector.broadcast %74 : vector<10x1xf32> to vector<10x32xf32>
    %76 = arith.mulf %71, %75 : vector<10x32xf32>
    %cst_44 = arith.constant dense<0.000000e+00> : vector<10x64xf32>
    %77 = tpu.matmul %76, %33, %cst_44 {dimension_numbers = #tpu.dot_dimension_numbers<[1], [0], [0], [1], [0, 0, 1, 1], [], []>} : vector<10x32xf32>, vector<32x64xf32>, vector<10x64xf32> -> vector<10x64xf32>
    %78 = vector.broadcast %34 : vector<1x64xf32> to vector<10x64xf32>
    %79 = arith.addf %77, %78 : vector<10x64xf32>
    %80 = vector.extract_strided_slice %79 {offsets = [0, 0], sizes = [10, 32], strides = [1, 1]} : vector<10x64xf32> to vector<10x32xf32>
    %81 = vector.extract_strided_slice %79 {offsets = [0, 32], sizes = [10, 32], strides = [1, 1]} : vector<10x64xf32> to vector<10x32xf32>
    %cst_45 = arith.constant dense<0.000000e+00> : vector<8x10xf32>
    %82 = tpu.matmul %58, %80, %cst_45 {dimension_numbers = #tpu.dot_dimension_numbers<[1], [1], [0], [0], [0, 0, 1, 0], [], []>} : vector<8x32xf32>, vector<10x32xf32>, vector<8x10xf32> -> vector<8x10xf32>
    %83 = arith.addf %82, %25 : vector<8x10xf32>
    %cst_46 = arith.constant dense<0xFF800000> : vector<8xf32>
    %84 = vector.multi_reduction <maximumf>, %83, %cst_46 [1] : vector<8x10xf32> to vector<8xf32>
    %85 = vector.shape_cast %84 : vector<8xf32> to vector<8x1xf32>
    %86 = vector.broadcast %85 : vector<8x1xf32> to vector<8x10xf32>
    %87 = arith.subf %83, %86 : vector<8x10xf32>
    %88 = math.exp %87 : vector<8x10xf32>
    %cst_47 = arith.constant dense<0.000000e+00> : vector<8xf32>
    %89 = vector.multi_reduction <add>, %88, %cst_47 [1] : vector<8x10xf32> to vector<8xf32>
    %90 = vector.shape_cast %89 : vector<8xf32> to vector<8x1xf32>
    %91 = tpu.reciprocal %90 {approx = true} : vector<8x1xf32> -> vector<8x1xf32>
    %92 = vector.broadcast %91 : vector<8x1xf32> to vector<8x10xf32>
    %93 = arith.mulf %88, %92 : vector<8x10xf32>
    %cst_48 = arith.constant dense<0.000000e+00> : vector<8x32xf32>
    %94 = tpu.matmul %93, %81, %cst_48 {dimension_numbers = #tpu.dot_dimension_numbers<[1], [0], [0], [1], [0, 0, 1, 1], [], []>} : vector<8x10xf32>, vector<10x32xf32>, vector<8x32xf32> -> vector<8x32xf32>
    %cst_49 = arith.constant dense<0.000000e+00> : vector<8x32xf32>
    %95 = tpu.matmul %94, %36, %cst_49 {dimension_numbers = #tpu.dot_dimension_numbers<[1], [0], [0], [1], [0, 0, 1, 1], [], []>} : vector<8x32xf32>, vector<32x32xf32>, vector<8x32xf32> -> vector<8x32xf32>
    %96 = vector.broadcast %37 : vector<1x32xf32> to vector<8x32xf32>
    %97 = arith.addf %95, %96 : vector<8x32xf32>
    %98 = arith.addf %28, %97 : vector<8x32xf32>
    %c2_50 = arith.constant 2 : index
    %c0_51 = arith.constant 0 : index
    %c0_52 = arith.constant 0 : index
    %99 = vector.load %arg1[%c2_50, %c0_51, %c0_52] : memref<16x32x32xf32, #tpu.memory_space<vmem>>, vector<1x32x32xf32>
    %100 = vector.shape_cast %99 : vector<1x32x32xf32> to vector<32x32xf32>
    %c6 = arith.constant 6 : index
    %c0_53 = arith.constant 0 : index
    %101 = vector.load %arg5[%c6, %c0_53] : memref<80x128xf32, #tpu.memory_space<vmem>>, vector<1x32xf32>
    %c3_54 = arith.constant 3 : index
    %c0_55 = arith.constant 0 : index
    %c0_56 = arith.constant 0 : index
    %102 = vector.load %arg1[%c3_54, %c0_55, %c0_56] : memref<16x32x32xf32, #tpu.memory_space<vmem>>, vector<1x32x32xf32>
    %103 = vector.shape_cast %102 : vector<1x32x32xf32> to vector<32x32xf32>
    %c7 = arith.constant 7 : index
    %c0_57 = arith.constant 0 : index
    %104 = vector.load %arg5[%c7, %c0_57] : memref<80x128xf32, #tpu.memory_space<vmem>>, vector<1x32xf32>
    %cst_58 = arith.constant dense<0.000000e+00> : vector<8xf32>
    %105 = vector.multi_reduction <add>, %98, %cst_58 [1] : vector<8x32xf32> to vector<8xf32>
    %106 = vector.shape_cast %105 : vector<8xf32> to vector<8x1xf32>
    %cst_59 = arith.constant 3.200000e+01 : f32
    %107 = vector.broadcast %cst_59 : f32 to vector<8x1xf32>
    %108 = arith.divf %106, %107 : vector<8x1xf32>
    %109 = vector.broadcast %108 : vector<8x1xf32> to vector<8x32xf32>
    %110 = arith.subf %98, %109 : vector<8x32xf32>
    %111 = arith.mulf %110, %110 : vector<8x32xf32>
    %cst_60 = arith.constant dense<0.000000e+00> : vector<8xf32>
    %112 = vector.multi_reduction <add>, %111, %cst_60 [1] : vector<8x32xf32> to vector<8xf32>
    %113 = vector.shape_cast %112 : vector<8xf32> to vector<8x1xf32>
    %cst_61 = arith.constant 3.200000e+01 : f32
    %114 = vector.broadcast %cst_61 : f32 to vector<8x1xf32>
    %115 = arith.divf %113, %114 : vector<8x1xf32>
    %116 = vector.broadcast %108 : vector<8x1xf32> to vector<8x32xf32>
    %117 = arith.subf %98, %116 : vector<8x32xf32>
    %cst_62 = arith.constant 9.99999974E-6 : f32
    %118 = vector.broadcast %cst_62 : f32 to vector<8x1xf32>
    %119 = arith.addf %115, %118 : vector<8x1xf32>
    %120 = math.rsqrt %119 : vector<8x1xf32>
    %121 = vector.broadcast %120 : vector<8x1xf32> to vector<8x32xf32>
    %122 = arith.mulf %117, %121 : vector<8x32xf32>
    %cst_63 = arith.constant dense<0.000000e+00> : vector<8x32xf32>
    %123 = tpu.matmul %122, %100, %cst_63 {dimension_numbers = #tpu.dot_dimension_numbers<[1], [0], [0], [1], [0, 0, 1, 1], [], []>} : vector<8x32xf32>, vector<32x32xf32>, vector<8x32xf32> -> vector<8x32xf32>
    %124 = vector.broadcast %101 : vector<1x32xf32> to vector<8x32xf32>
    %125 = arith.addf %123, %124 : vector<8x32xf32>
    %126 = arith.mulf %125, %125 : vector<8x32xf32>
    %127 = arith.mulf %125, %126 : vector<8x32xf32>
    %cst_64 = arith.constant 4.471500e-02 : f32
    %128 = vector.broadcast %cst_64 : f32 to vector<8x32xf32>
    %129 = arith.mulf %128, %127 : vector<8x32xf32>
    %130 = arith.addf %125, %129 : vector<8x32xf32>
    %cst_65 = arith.constant 0.797884583 : f32
    %131 = vector.broadcast %cst_65 : f32 to vector<8x32xf32>
    %132 = arith.mulf %131, %130 : vector<8x32xf32>
    %133 = math.tanh %132 : vector<8x32xf32>
    %cst_66 = arith.constant 1.000000e+00 : f32
    %134 = vector.broadcast %cst_66 : f32 to vector<8x32xf32>
    %135 = arith.addf %134, %133 : vector<8x32xf32>
    %cst_67 = arith.constant 5.000000e-01 : f32
    %136 = vector.broadcast %cst_67 : f32 to vector<8x32xf32>
    %137 = arith.mulf %136, %135 : vector<8x32xf32>
    %138 = arith.mulf %125, %137 : vector<8x32xf32>
    %cst_68 = arith.constant dense<0.000000e+00> : vector<8x32xf32>
    %139 = tpu.matmul %138, %103, %cst_68 {dimension_numbers = #tpu.dot_dimension_numbers<[1], [0], [0], [1], [0, 0, 1, 1], [], []>} : vector<8x32xf32>, vector<32x32xf32>, vector<8x32xf32> -> vector<8x32xf32>
    %140 = vector.broadcast %104 : vector<1x32xf32> to vector<8x32xf32>
    %141 = arith.addf %139, %140 : vector<8x32xf32>
    %142 = arith.addf %98, %141 : vector<8x32xf32>
    %c0_69 = arith.constant 0 : index
    %c0_70 = arith.constant 0 : index
    %c0_71 = arith.constant 0 : index
    %143 = vector.load %arg3[%c0_69, %c0_70, %c0_71] : memref<2x32x96xf32, #tpu.memory_space<vmem>>, vector<1x32x96xf32>
    %144 = vector.shape_cast %143 : vector<1x32x96xf32> to vector<32x96xf32>
    %c8 = arith.constant 8 : index
    %c0_72 = arith.constant 0 : index
    %145 = vector.load %arg5[%c8, %c0_72] : memref<80x128xf32, #tpu.memory_space<vmem>>, vector<1x96xf32>
    %c4_73 = arith.constant 4 : index
    %c0_74 = arith.constant 0 : index
    %c0_75 = arith.constant 0 : index
    %146 = vector.load %arg1[%c4_73, %c0_74, %c0_75] : memref<16x32x32xf32, #tpu.memory_space<vmem>>, vector<1x32x32xf32>
    %147 = vector.shape_cast %146 : vector<1x32x32xf32> to vector<32x32xf32>
    %c9 = arith.constant 9 : index
    %c0_76 = arith.constant 0 : index
    %148 = vector.load %arg5[%c9, %c0_76] : memref<80x128xf32, #tpu.memory_space<vmem>>, vector<1x32xf32>
    %cst_77 = arith.constant dense<0.000000e+00> : vector<8xf32>
    %149 = vector.multi_reduction <add>, %142, %cst_77 [1] : vector<8x32xf32> to vector<8xf32>
    %150 = vector.shape_cast %149 : vector<8xf32> to vector<8x1xf32>
    %cst_78 = arith.constant 3.200000e+01 : f32
    %151 = vector.broadcast %cst_78 : f32 to vector<8x1xf32>
    %152 = arith.divf %150, %151 : vector<8x1xf32>
    %153 = vector.broadcast %152 : vector<8x1xf32> to vector<8x32xf32>
    %154 = arith.subf %142, %153 : vector<8x32xf32>
    %155 = arith.mulf %154, %154 : vector<8x32xf32>
    %cst_79 = arith.constant dense<0.000000e+00> : vector<8xf32>
    %156 = vector.multi_reduction <add>, %155, %cst_79 [1] : vector<8x32xf32> to vector<8xf32>
    %157 = vector.shape_cast %156 : vector<8xf32> to vector<8x1xf32>
    %cst_80 = arith.constant 3.200000e+01 : f32
    %158 = vector.broadcast %cst_80 : f32 to vector<8x1xf32>
    %159 = arith.divf %157, %158 : vector<8x1xf32>
    %160 = vector.broadcast %152 : vector<8x1xf32> to vector<8x32xf32>
    %161 = arith.subf %142, %160 : vector<8x32xf32>
    %cst_81 = arith.constant 9.99999974E-6 : f32
    %162 = vector.broadcast %cst_81 : f32 to vector<8x1xf32>
    %163 = arith.addf %159, %162 : vector<8x1xf32>
    %164 = math.rsqrt %163 : vector<8x1xf32>
    %165 = vector.broadcast %164 : vector<8x1xf32> to vector<8x32xf32>
    %166 = arith.mulf %161, %165 : vector<8x32xf32>
    %cst_82 = arith.constant dense<0.000000e+00> : vector<8x96xf32>
    %167 = tpu.matmul %166, %144, %cst_82 {dimension_numbers = #tpu.dot_dimension_numbers<[1], [0], [0], [1], [0, 0, 1, 1], [], []>} : vector<8x32xf32>, vector<32x96xf32>, vector<8x96xf32> -> vector<8x96xf32>
    %168 = vector.broadcast %145 : vector<1x96xf32> to vector<8x96xf32>
    %169 = arith.addf %167, %168 : vector<8x96xf32>
    %170 = vector.extract_strided_slice %169 {offsets = [0, 0], sizes = [8, 32], strides = [1, 1]} : vector<8x96xf32> to vector<8x32xf32>
    %171 = vector.extract_strided_slice %169 {offsets = [0, 32], sizes = [8, 32], strides = [1, 1]} : vector<8x96xf32> to vector<8x32xf32>
    %172 = vector.extract_strided_slice %169 {offsets = [0, 64], sizes = [8, 32], strides = [1, 1]} : vector<8x96xf32> to vector<8x32xf32>
    %cst_83 = arith.constant dense<0.000000e+00> : vector<8x8xf32>
    %173 = tpu.matmul %170, %171, %cst_83 {dimension_numbers = #tpu.dot_dimension_numbers<[1], [1], [0], [0], [0, 0, 1, 0], [], []>} : vector<8x32xf32>, vector<8x32xf32>, vector<8x8xf32> -> vector<8x8xf32>
    %174 = arith.addf %173, %26 : vector<8x8xf32>
    %cst_84 = arith.constant dense<0xFF800000> : vector<8xf32>
    %175 = vector.multi_reduction <maximumf>, %174, %cst_84 [1] : vector<8x8xf32> to vector<8xf32>
    %176 = vector.shape_cast %175 : vector<8xf32> to vector<8x1xf32>
    %177 = vector.broadcast %176 : vector<8x1xf32> to vector<8x8xf32>
    %178 = arith.subf %174, %177 : vector<8x8xf32>
    %179 = math.exp %178 : vector<8x8xf32>
    %cst_85 = arith.constant dense<0.000000e+00> : vector<8xf32>
    %180 = vector.multi_reduction <add>, %179, %cst_85 [1] : vector<8x8xf32> to vector<8xf32>
    %181 = vector.shape_cast %180 : vector<8xf32> to vector<8x1xf32>
    %182 = tpu.reciprocal %181 {approx = true} : vector<8x1xf32> -> vector<8x1xf32>
    %183 = vector.broadcast %182 : vector<8x1xf32> to vector<8x8xf32>
    %184 = arith.mulf %179, %183 : vector<8x8xf32>
    %cst_86 = arith.constant dense<0.000000e+00> : vector<8x32xf32>
    %185 = tpu.matmul %184, %172, %cst_86 {dimension_numbers = #tpu.dot_dimension_numbers<[1], [0], [0], [1], [0, 0, 1, 1], [], []>} : vector<8x8xf32>, vector<8x32xf32>, vector<8x32xf32> -> vector<8x32xf32>
    %cst_87 = arith.constant dense<0.000000e+00> : vector<8x32xf32>
    %186 = tpu.matmul %185, %147, %cst_87 {dimension_numbers = #tpu.dot_dimension_numbers<[1], [0], [0], [1], [0, 0, 1, 1], [], []>} : vector<8x32xf32>, vector<32x32xf32>, vector<8x32xf32> -> vector<8x32xf32>
    %187 = vector.broadcast %148 : vector<1x32xf32> to vector<8x32xf32>
    %188 = arith.addf %186, %187 : vector<8x32xf32>
    %189 = arith.addf %142, %188 : vector<8x32xf32>
    %c5_88 = arith.constant 5 : index
    %c0_89 = arith.constant 0 : index
    %c0_90 = arith.constant 0 : index
    %190 = vector.load %arg1[%c5_88, %c0_89, %c0_90] : memref<16x32x32xf32, #tpu.memory_space<vmem>>, vector<1x32x32xf32>
    %191 = vector.shape_cast %190 : vector<1x32x32xf32> to vector<32x32xf32>
    %c10 = arith.constant 10 : index
    %c0_91 = arith.constant 0 : index
    %192 = vector.load %arg5[%c10, %c0_91] : memref<80x128xf32, #tpu.memory_space<vmem>>, vector<1x32xf32>
    %c6_92 = arith.constant 6 : index
    %c0_93 = arith.constant 0 : index
    %c0_94 = arith.constant 0 : index
    %193 = vector.load %arg1[%c6_92, %c0_93, %c0_94] : memref<16x32x32xf32, #tpu.memory_space<vmem>>, vector<1x32x32xf32>
    %194 = vector.shape_cast %193 : vector<1x32x32xf32> to vector<32x32xf32>
    %c11 = arith.constant 11 : index
    %c0_95 = arith.constant 0 : index
    %195 = vector.load %arg5[%c11, %c0_95] : memref<80x128xf32, #tpu.memory_space<vmem>>, vector<1x32xf32>
    %cst_96 = arith.constant dense<0.000000e+00> : vector<8xf32>
    %196 = vector.multi_reduction <add>, %189, %cst_96 [1] : vector<8x32xf32> to vector<8xf32>
    %197 = vector.shape_cast %196 : vector<8xf32> to vector<8x1xf32>
    %cst_97 = arith.constant 3.200000e+01 : f32
    %198 = vector.broadcast %cst_97 : f32 to vector<8x1xf32>
    %199 = arith.divf %197, %198 : vector<8x1xf32>
    %200 = vector.broadcast %199 : vector<8x1xf32> to vector<8x32xf32>
    %201 = arith.subf %189, %200 : vector<8x32xf32>
    %202 = arith.mulf %201, %201 : vector<8x32xf32>
    %cst_98 = arith.constant dense<0.000000e+00> : vector<8xf32>
    %203 = vector.multi_reduction <add>, %202, %cst_98 [1] : vector<8x32xf32> to vector<8xf32>
    %204 = vector.shape_cast %203 : vector<8xf32> to vector<8x1xf32>
    %cst_99 = arith.constant 3.200000e+01 : f32
    %205 = vector.broadcast %cst_99 : f32 to vector<8x1xf32>
    %206 = arith.divf %204, %205 : vector<8x1xf32>
    %207 = vector.broadcast %199 : vector<8x1xf32> to vector<8x32xf32>
    %208 = arith.subf %189, %207 : vector<8x32xf32>
    %cst_100 = arith.constant 9.99999974E-6 : f32
    %209 = vector.broadcast %cst_100 : f32 to vector<8x1xf32>
    %210 = arith.addf %206, %209 : vector<8x1xf32>
    %211 = math.rsqrt %210 : vector<8x1xf32>
    %212 = vector.broadcast %211 : vector<8x1xf32> to vector<8x32xf32>
    %213 = arith.mulf %208, %212 : vector<8x32xf32>
    %cst_101 = arith.constant dense<0.000000e+00> : vector<8x32xf32>
    %214 = tpu.matmul %213, %191, %cst_101 {dimension_numbers = #tpu.dot_dimension_numbers<[1], [0], [0], [1], [0, 0, 1, 1], [], []>} : vector<8x32xf32>, vector<32x32xf32>, vector<8x32xf32> -> vector<8x32xf32>
    %215 = vector.broadcast %192 : vector<1x32xf32> to vector<8x32xf32>
    %216 = arith.addf %214, %215 : vector<8x32xf32>
    %217 = arith.mulf %216, %216 : vector<8x32xf32>
    %218 = arith.mulf %216, %217 : vector<8x32xf32>
    %cst_102 = arith.constant 4.471500e-02 : f32
    %219 = vector.broadcast %cst_102 : f32 to vector<8x32xf32>
    %220 = arith.mulf %219, %218 : vector<8x32xf32>
    %221 = arith.addf %216, %220 : vector<8x32xf32>
    %cst_103 = arith.constant 0.797884583 : f32
    %222 = vector.broadcast %cst_103 : f32 to vector<8x32xf32>
    %223 = arith.mulf %222, %221 : vector<8x32xf32>
    %224 = math.tanh %223 : vector<8x32xf32>
    %cst_104 = arith.constant 1.000000e+00 : f32
    %225 = vector.broadcast %cst_104 : f32 to vector<8x32xf32>
    %226 = arith.addf %225, %224 : vector<8x32xf32>
    %cst_105 = arith.constant 5.000000e-01 : f32
    %227 = vector.broadcast %cst_105 : f32 to vector<8x32xf32>
    %228 = arith.mulf %227, %226 : vector<8x32xf32>
    %229 = arith.mulf %216, %228 : vector<8x32xf32>
    %cst_106 = arith.constant dense<0.000000e+00> : vector<8x32xf32>
    %230 = tpu.matmul %229, %194, %cst_106 {dimension_numbers = #tpu.dot_dimension_numbers<[1], [0], [0], [1], [0, 0, 1, 1], [], []>} : vector<8x32xf32>, vector<32x32xf32>, vector<8x32xf32> -> vector<8x32xf32>
    %231 = vector.broadcast %195 : vector<1x32xf32> to vector<8x32xf32>
    %232 = arith.addf %230, %231 : vector<8x32xf32>
    %233 = arith.addf %189, %232 : vector<8x32xf32>
    %c1_107 = arith.constant 1 : index
    %c0_108 = arith.constant 0 : index
    %c0_109 = arith.constant 0 : index
    %234 = vector.load %arg3[%c1_107, %c0_108, %c0_109] : memref<2x32x96xf32, #tpu.memory_space<vmem>>, vector<1x32x96xf32>
    %235 = vector.shape_cast %234 : vector<1x32x96xf32> to vector<32x96xf32>
    %c12 = arith.constant 12 : index
    %c0_110 = arith.constant 0 : index
    %236 = vector.load %arg5[%c12, %c0_110] : memref<80x128xf32, #tpu.memory_space<vmem>>, vector<1x96xf32>
    %c7_111 = arith.constant 7 : index
    %c0_112 = arith.constant 0 : index
    %c0_113 = arith.constant 0 : index
    %237 = vector.load %arg1[%c7_111, %c0_112, %c0_113] : memref<16x32x32xf32, #tpu.memory_space<vmem>>, vector<1x32x32xf32>
    %238 = vector.shape_cast %237 : vector<1x32x32xf32> to vector<32x32xf32>
    %c13 = arith.constant 13 : index
    %c0_114 = arith.constant 0 : index
    %239 = vector.load %arg5[%c13, %c0_114] : memref<80x128xf32, #tpu.memory_space<vmem>>, vector<1x32xf32>
    %cst_115 = arith.constant dense<0.000000e+00> : vector<8xf32>
    %240 = vector.multi_reduction <add>, %233, %cst_115 [1] : vector<8x32xf32> to vector<8xf32>
    %241 = vector.shape_cast %240 : vector<8xf32> to vector<8x1xf32>
    %cst_116 = arith.constant 3.200000e+01 : f32
    %242 = vector.broadcast %cst_116 : f32 to vector<8x1xf32>
    %243 = arith.divf %241, %242 : vector<8x1xf32>
    %244 = vector.broadcast %243 : vector<8x1xf32> to vector<8x32xf32>
    %245 = arith.subf %233, %244 : vector<8x32xf32>
    %246 = arith.mulf %245, %245 : vector<8x32xf32>
    %cst_117 = arith.constant dense<0.000000e+00> : vector<8xf32>
    %247 = vector.multi_reduction <add>, %246, %cst_117 [1] : vector<8x32xf32> to vector<8xf32>
    %248 = vector.shape_cast %247 : vector<8xf32> to vector<8x1xf32>
    %cst_118 = arith.constant 3.200000e+01 : f32
    %249 = vector.broadcast %cst_118 : f32 to vector<8x1xf32>
    %250 = arith.divf %248, %249 : vector<8x1xf32>
    %251 = vector.broadcast %243 : vector<8x1xf32> to vector<8x32xf32>
    %252 = arith.subf %233, %251 : vector<8x32xf32>
    %cst_119 = arith.constant 9.99999974E-6 : f32
    %253 = vector.broadcast %cst_119 : f32 to vector<8x1xf32>
    %254 = arith.addf %250, %253 : vector<8x1xf32>
    %255 = math.rsqrt %254 : vector<8x1xf32>
    %256 = vector.broadcast %255 : vector<8x1xf32> to vector<8x32xf32>
    %257 = arith.mulf %252, %256 : vector<8x32xf32>
    %cst_120 = arith.constant dense<0.000000e+00> : vector<8x96xf32>
    %258 = tpu.matmul %257, %235, %cst_120 {dimension_numbers = #tpu.dot_dimension_numbers<[1], [0], [0], [1], [0, 0, 1, 1], [], []>} : vector<8x32xf32>, vector<32x96xf32>, vector<8x96xf32> -> vector<8x96xf32>
    %259 = vector.broadcast %236 : vector<1x96xf32> to vector<8x96xf32>
    %260 = arith.addf %258, %259 : vector<8x96xf32>
    %261 = vector.extract_strided_slice %260 {offsets = [0, 0], sizes = [8, 32], strides = [1, 1]} : vector<8x96xf32> to vector<8x32xf32>
    %262 = vector.extract_strided_slice %260 {offsets = [0, 32], sizes = [8, 32], strides = [1, 1]} : vector<8x96xf32> to vector<8x32xf32>
    %263 = vector.extract_strided_slice %260 {offsets = [0, 64], sizes = [8, 32], strides = [1, 1]} : vector<8x96xf32> to vector<8x32xf32>
    %cst_121 = arith.constant dense<0.000000e+00> : vector<8x8xf32>
    %264 = tpu.matmul %261, %262, %cst_121 {dimension_numbers = #tpu.dot_dimension_numbers<[1], [1], [0], [0], [0, 0, 1, 0], [], []>} : vector<8x32xf32>, vector<8x32xf32>, vector<8x8xf32> -> vector<8x8xf32>
    %265 = arith.addf %264, %26 : vector<8x8xf32>
    %cst_122 = arith.constant dense<0xFF800000> : vector<8xf32>
    %266 = vector.multi_reduction <maximumf>, %265, %cst_122 [1] : vector<8x8xf32> to vector<8xf32>
    %267 = vector.shape_cast %266 : vector<8xf32> to vector<8x1xf32>
    %268 = vector.broadcast %267 : vector<8x1xf32> to vector<8x8xf32>
    %269 = arith.subf %265, %268 : vector<8x8xf32>
    %270 = math.exp %269 : vector<8x8xf32>
    %cst_123 = arith.constant dense<0.000000e+00> : vector<8xf32>
    %271 = vector.multi_reduction <add>, %270, %cst_123 [1] : vector<8x8xf32> to vector<8xf32>
    %272 = vector.shape_cast %271 : vector<8xf32> to vector<8x1xf32>
    %273 = tpu.reciprocal %272 {approx = true} : vector<8x1xf32> -> vector<8x1xf32>
    %274 = vector.broadcast %273 : vector<8x1xf32> to vector<8x8xf32>
    %275 = arith.mulf %270, %274 : vector<8x8xf32>
    %cst_124 = arith.constant dense<0.000000e+00> : vector<8x32xf32>
    %276 = tpu.matmul %275, %263, %cst_124 {dimension_numbers = #tpu.dot_dimension_numbers<[1], [0], [0], [1], [0, 0, 1, 1], [], []>} : vector<8x8xf32>, vector<8x32xf32>, vector<8x32xf32> -> vector<8x32xf32>
    %cst_125 = arith.constant dense<0.000000e+00> : vector<8x32xf32>
    %277 = tpu.matmul %276, %238, %cst_125 {dimension_numbers = #tpu.dot_dimension_numbers<[1], [0], [0], [1], [0, 0, 1, 1], [], []>} : vector<8x32xf32>, vector<32x32xf32>, vector<8x32xf32> -> vector<8x32xf32>
    %278 = vector.broadcast %239 : vector<1x32xf32> to vector<8x32xf32>
    %279 = arith.addf %277, %278 : vector<8x32xf32>
    %280 = arith.addf %233, %279 : vector<8x32xf32>
    %c8_126 = arith.constant 8 : index
    %c0_127 = arith.constant 0 : index
    %c0_128 = arith.constant 0 : index
    %281 = vector.load %arg1[%c8_126, %c0_127, %c0_128] : memref<16x32x32xf32, #tpu.memory_space<vmem>>, vector<1x32x32xf32>
    %282 = vector.shape_cast %281 : vector<1x32x32xf32> to vector<32x32xf32>
    %c14 = arith.constant 14 : index
    %c0_129 = arith.constant 0 : index
    %283 = vector.load %arg5[%c14, %c0_129] : memref<80x128xf32, #tpu.memory_space<vmem>>, vector<1x32xf32>
    %c9_130 = arith.constant 9 : index
    %c0_131 = arith.constant 0 : index
    %c0_132 = arith.constant 0 : index
    %284 = vector.load %arg1[%c9_130, %c0_131, %c0_132] : memref<16x32x32xf32, #tpu.memory_space<vmem>>, vector<1x32x32xf32>
    %285 = vector.shape_cast %284 : vector<1x32x32xf32> to vector<32x32xf32>
    %c15 = arith.constant 15 : index
    %c0_133 = arith.constant 0 : index
    %286 = vector.load %arg5[%c15, %c0_133] : memref<80x128xf32, #tpu.memory_space<vmem>>, vector<1x32xf32>
    %cst_134 = arith.constant dense<0.000000e+00> : vector<8xf32>
    %287 = vector.multi_reduction <add>, %280, %cst_134 [1] : vector<8x32xf32> to vector<8xf32>
    %288 = vector.shape_cast %287 : vector<8xf32> to vector<8x1xf32>
    %cst_135 = arith.constant 3.200000e+01 : f32
    %289 = vector.broadcast %cst_135 : f32 to vector<8x1xf32>
    %290 = arith.divf %288, %289 : vector<8x1xf32>
    %291 = vector.broadcast %290 : vector<8x1xf32> to vector<8x32xf32>
    %292 = arith.subf %280, %291 : vector<8x32xf32>
    %293 = arith.mulf %292, %292 : vector<8x32xf32>
    %cst_136 = arith.constant dense<0.000000e+00> : vector<8xf32>
    %294 = vector.multi_reduction <add>, %293, %cst_136 [1] : vector<8x32xf32> to vector<8xf32>
    %295 = vector.shape_cast %294 : vector<8xf32> to vector<8x1xf32>
    %cst_137 = arith.constant 3.200000e+01 : f32
    %296 = vector.broadcast %cst_137 : f32 to vector<8x1xf32>
    %297 = arith.divf %295, %296 : vector<8x1xf32>
    %298 = vector.broadcast %290 : vector<8x1xf32> to vector<8x32xf32>
    %299 = arith.subf %280, %298 : vector<8x32xf32>
    %cst_138 = arith.constant 9.99999974E-6 : f32
    %300 = vector.broadcast %cst_138 : f32 to vector<8x1xf32>
    %301 = arith.addf %297, %300 : vector<8x1xf32>
    %302 = math.rsqrt %301 : vector<8x1xf32>
    %303 = vector.broadcast %302 : vector<8x1xf32> to vector<8x32xf32>
    %304 = arith.mulf %299, %303 : vector<8x32xf32>
    %cst_139 = arith.constant dense<0.000000e+00> : vector<8x32xf32>
    %305 = tpu.matmul %304, %282, %cst_139 {dimension_numbers = #tpu.dot_dimension_numbers<[1], [0], [0], [1], [0, 0, 1, 1], [], []>} : vector<8x32xf32>, vector<32x32xf32>, vector<8x32xf32> -> vector<8x32xf32>
    %306 = vector.broadcast %283 : vector<1x32xf32> to vector<8x32xf32>
    %307 = arith.addf %305, %306 : vector<8x32xf32>
    %308 = arith.mulf %307, %307 : vector<8x32xf32>
    %309 = arith.mulf %307, %308 : vector<8x32xf32>
    %cst_140 = arith.constant 4.471500e-02 : f32
    %310 = vector.broadcast %cst_140 : f32 to vector<8x32xf32>
    %311 = arith.mulf %310, %309 : vector<8x32xf32>
    %312 = arith.addf %307, %311 : vector<8x32xf32>
    %cst_141 = arith.constant 0.797884583 : f32
    %313 = vector.broadcast %cst_141 : f32 to vector<8x32xf32>
    %314 = arith.mulf %313, %312 : vector<8x32xf32>
    %315 = math.tanh %314 : vector<8x32xf32>
    %cst_142 = arith.constant 1.000000e+00 : f32
    %316 = vector.broadcast %cst_142 : f32 to vector<8x32xf32>
    %317 = arith.addf %316, %315 : vector<8x32xf32>
    %cst_143 = arith.constant 5.000000e-01 : f32
    %318 = vector.broadcast %cst_143 : f32 to vector<8x32xf32>
    %319 = arith.mulf %318, %317 : vector<8x32xf32>
    %320 = arith.mulf %307, %319 : vector<8x32xf32>
    %cst_144 = arith.constant dense<0.000000e+00> : vector<8x32xf32>
    %321 = tpu.matmul %320, %285, %cst_144 {dimension_numbers = #tpu.dot_dimension_numbers<[1], [0], [0], [1], [0, 0, 1, 1], [], []>} : vector<8x32xf32>, vector<32x32xf32>, vector<8x32xf32> -> vector<8x32xf32>
    %322 = vector.broadcast %286 : vector<1x32xf32> to vector<8x32xf32>
    %323 = arith.addf %321, %322 : vector<8x32xf32>
    %324 = arith.addf %280, %323 : vector<8x32xf32>
    %c0_145 = arith.constant 0 : index
    %c0_146 = arith.constant 0 : index
    %c0_147 = arith.constant 0 : index
    %325 = vector.load %arg3[%c0_145, %c0_146, %c0_147] : memref<2x32x96xf32, #tpu.memory_space<vmem>>, vector<1x32x96xf32>
    %326 = vector.shape_cast %325 : vector<1x32x96xf32> to vector<32x96xf32>
    %c8_148 = arith.constant 8 : index
    %c0_149 = arith.constant 0 : index
    %327 = vector.load %arg5[%c8_148, %c0_149] : memref<80x128xf32, #tpu.memory_space<vmem>>, vector<1x96xf32>
    %c4_150 = arith.constant 4 : index
    %c0_151 = arith.constant 0 : index
    %c0_152 = arith.constant 0 : index
    %328 = vector.load %arg1[%c4_150, %c0_151, %c0_152] : memref<16x32x32xf32, #tpu.memory_space<vmem>>, vector<1x32x32xf32>
    %329 = vector.shape_cast %328 : vector<1x32x32xf32> to vector<32x32xf32>
    %c9_153 = arith.constant 9 : index
    %c0_154 = arith.constant 0 : index
    %330 = vector.load %arg5[%c9_153, %c0_154] : memref<80x128xf32, #tpu.memory_space<vmem>>, vector<1x32xf32>
    %cst_155 = arith.constant dense<0.000000e+00> : vector<8xf32>
    %331 = vector.multi_reduction <add>, %324, %cst_155 [1] : vector<8x32xf32> to vector<8xf32>
    %332 = vector.shape_cast %331 : vector<8xf32> to vector<8x1xf32>
    %cst_156 = arith.constant 3.200000e+01 : f32
    %333 = vector.broadcast %cst_156 : f32 to vector<8x1xf32>
    %334 = arith.divf %332, %333 : vector<8x1xf32>
    %335 = vector.broadcast %334 : vector<8x1xf32> to vector<8x32xf32>
    %336 = arith.subf %324, %335 : vector<8x32xf32>
    %337 = arith.mulf %336, %336 : vector<8x32xf32>
    %cst_157 = arith.constant dense<0.000000e+00> : vector<8xf32>
    %338 = vector.multi_reduction <add>, %337, %cst_157 [1] : vector<8x32xf32> to vector<8xf32>
    %339 = vector.shape_cast %338 : vector<8xf32> to vector<8x1xf32>
    %cst_158 = arith.constant 3.200000e+01 : f32
    %340 = vector.broadcast %cst_158 : f32 to vector<8x1xf32>
    %341 = arith.divf %339, %340 : vector<8x1xf32>
    %342 = vector.broadcast %334 : vector<8x1xf32> to vector<8x32xf32>
    %343 = arith.subf %324, %342 : vector<8x32xf32>
    %cst_159 = arith.constant 9.99999974E-6 : f32
    %344 = vector.broadcast %cst_159 : f32 to vector<8x1xf32>
    %345 = arith.addf %341, %344 : vector<8x1xf32>
    %346 = math.rsqrt %345 : vector<8x1xf32>
    %347 = vector.broadcast %346 : vector<8x1xf32> to vector<8x32xf32>
    %348 = arith.mulf %343, %347 : vector<8x32xf32>
    %cst_160 = arith.constant dense<0.000000e+00> : vector<8x96xf32>
    %349 = tpu.matmul %348, %326, %cst_160 {dimension_numbers = #tpu.dot_dimension_numbers<[1], [0], [0], [1], [0, 0, 1, 1], [], []>} : vector<8x32xf32>, vector<32x96xf32>, vector<8x96xf32> -> vector<8x96xf32>
    %350 = vector.broadcast %327 : vector<1x96xf32> to vector<8x96xf32>
    %351 = arith.addf %349, %350 : vector<8x96xf32>
    %352 = vector.extract_strided_slice %351 {offsets = [0, 0], sizes = [8, 32], strides = [1, 1]} : vector<8x96xf32> to vector<8x32xf32>
    %353 = vector.extract_strided_slice %351 {offsets = [0, 32], sizes = [8, 32], strides = [1, 1]} : vector<8x96xf32> to vector<8x32xf32>
    %354 = vector.extract_strided_slice %351 {offsets = [0, 64], sizes = [8, 32], strides = [1, 1]} : vector<8x96xf32> to vector<8x32xf32>
    %cst_161 = arith.constant dense<0.000000e+00> : vector<8x8xf32>
    %355 = tpu.matmul %352, %353, %cst_161 {dimension_numbers = #tpu.dot_dimension_numbers<[1], [1], [0], [0], [0, 0, 1, 0], [], []>} : vector<8x32xf32>, vector<8x32xf32>, vector<8x8xf32> -> vector<8x8xf32>
    %356 = arith.addf %355, %26 : vector<8x8xf32>
    %cst_162 = arith.constant dense<0xFF800000> : vector<8xf32>
    %357 = vector.multi_reduction <maximumf>, %356, %cst_162 [1] : vector<8x8xf32> to vector<8xf32>
    %358 = vector.shape_cast %357 : vector<8xf32> to vector<8x1xf32>
    %359 = vector.broadcast %358 : vector<8x1xf32> to vector<8x8xf32>
    %360 = arith.subf %356, %359 : vector<8x8xf32>
    %361 = math.exp %360 : vector<8x8xf32>
    %cst_163 = arith.constant dense<0.000000e+00> : vector<8xf32>
    %362 = vector.multi_reduction <add>, %361, %cst_163 [1] : vector<8x8xf32> to vector<8xf32>
    %363 = vector.shape_cast %362 : vector<8xf32> to vector<8x1xf32>
    %364 = tpu.reciprocal %363 {approx = true} : vector<8x1xf32> -> vector<8x1xf32>
    %365 = vector.broadcast %364 : vector<8x1xf32> to vector<8x8xf32>
    %366 = arith.mulf %361, %365 : vector<8x8xf32>
    %cst_164 = arith.constant dense<0.000000e+00> : vector<8x32xf32>
    %367 = tpu.matmul %366, %354, %cst_164 {dimension_numbers = #tpu.dot_dimension_numbers<[1], [0], [0], [1], [0, 0, 1, 1], [], []>} : vector<8x8xf32>, vector<8x32xf32>, vector<8x32xf32> -> vector<8x32xf32>
    %cst_165 = arith.constant dense<0.000000e+00> : vector<8x32xf32>
    %368 = tpu.matmul %367, %329, %cst_165 {dimension_numbers = #tpu.dot_dimension_numbers<[1], [0], [0], [1], [0, 0, 1, 1], [], []>} : vector<8x32xf32>, vector<32x32xf32>, vector<8x32xf32> -> vector<8x32xf32>
    %369 = vector.broadcast %330 : vector<1x32xf32> to vector<8x32xf32>
    %370 = arith.addf %368, %369 : vector<8x32xf32>
    %371 = arith.addf %324, %370 : vector<8x32xf32>
    %c5_166 = arith.constant 5 : index
    %c0_167 = arith.constant 0 : index
    %c0_168 = arith.constant 0 : index
    %372 = vector.load %arg1[%c5_166, %c0_167, %c0_168] : memref<16x32x32xf32, #tpu.memory_space<vmem>>, vector<1x32x32xf32>
    %373 = vector.shape_cast %372 : vector<1x32x32xf32> to vector<32x32xf32>
    %c10_169 = arith.constant 10 : index
    %c0_170 = arith.constant 0 : index
    %374 = vector.load %arg5[%c10_169, %c0_170] : memref<80x128xf32, #tpu.memory_space<vmem>>, vector<1x32xf32>
    %c6_171 = arith.constant 6 : index
    %c0_172 = arith.constant 0 : index
    %c0_173 = arith.constant 0 : index
    %375 = vector.load %arg1[%c6_171, %c0_172, %c0_173] : memref<16x32x32xf32, #tpu.memory_space<vmem>>, vector<1x32x32xf32>
    %376 = vector.shape_cast %375 : vector<1x32x32xf32> to vector<32x32xf32>
    %c11_174 = arith.constant 11 : index
    %c0_175 = arith.constant 0 : index
    %377 = vector.load %arg5[%c11_174, %c0_175] : memref<80x128xf32, #tpu.memory_space<vmem>>, vector<1x32xf32>
    %cst_176 = arith.constant dense<0.000000e+00> : vector<8xf32>
    %378 = vector.multi_reduction <add>, %371, %cst_176 [1] : vector<8x32xf32> to vector<8xf32>
    %379 = vector.shape_cast %378 : vector<8xf32> to vector<8x1xf32>
    %cst_177 = arith.constant 3.200000e+01 : f32
    %380 = vector.broadcast %cst_177 : f32 to vector<8x1xf32>
    %381 = arith.divf %379, %380 : vector<8x1xf32>
    %382 = vector.broadcast %381 : vector<8x1xf32> to vector<8x32xf32>
    %383 = arith.subf %371, %382 : vector<8x32xf32>
    %384 = arith.mulf %383, %383 : vector<8x32xf32>
    %cst_178 = arith.constant dense<0.000000e+00> : vector<8xf32>
    %385 = vector.multi_reduction <add>, %384, %cst_178 [1] : vector<8x32xf32> to vector<8xf32>
    %386 = vector.shape_cast %385 : vector<8xf32> to vector<8x1xf32>
    %cst_179 = arith.constant 3.200000e+01 : f32
    %387 = vector.broadcast %cst_179 : f32 to vector<8x1xf32>
    %388 = arith.divf %386, %387 : vector<8x1xf32>
    %389 = vector.broadcast %381 : vector<8x1xf32> to vector<8x32xf32>
    %390 = arith.subf %371, %389 : vector<8x32xf32>
    %cst_180 = arith.constant 9.99999974E-6 : f32
    %391 = vector.broadcast %cst_180 : f32 to vector<8x1xf32>
    %392 = arith.addf %388, %391 : vector<8x1xf32>
    %393 = math.rsqrt %392 : vector<8x1xf32>
    %394 = vector.broadcast %393 : vector<8x1xf32> to vector<8x32xf32>
    %395 = arith.mulf %390, %394 : vector<8x32xf32>
    %cst_181 = arith.constant dense<0.000000e+00> : vector<8x32xf32>
    %396 = tpu.matmul %395, %373, %cst_181 {dimension_numbers = #tpu.dot_dimension_numbers<[1], [0], [0], [1], [0, 0, 1, 1], [], []>} : vector<8x32xf32>, vector<32x32xf32>, vector<8x32xf32> -> vector<8x32xf32>
    %397 = vector.broadcast %374 : vector<1x32xf32> to vector<8x32xf32>
    %398 = arith.addf %396, %397 : vector<8x32xf32>
    %399 = arith.mulf %398, %398 : vector<8x32xf32>
    %400 = arith.mulf %398, %399 : vector<8x32xf32>
    %cst_182 = arith.constant 4.471500e-02 : f32
    %401 = vector.broadcast %cst_182 : f32 to vector<8x32xf32>
    %402 = arith.mulf %401, %400 : vector<8x32xf32>
    %403 = arith.addf %398, %402 : vector<8x32xf32>
    %cst_183 = arith.constant 0.797884583 : f32
    %404 = vector.broadcast %cst_183 : f32 to vector<8x32xf32>
    %405 = arith.mulf %404, %403 : vector<8x32xf32>
    %406 = math.tanh %405 : vector<8x32xf32>
    %cst_184 = arith.constant 1.000000e+00 : f32
    %407 = vector.broadcast %cst_184 : f32 to vector<8x32xf32>
    %408 = arith.addf %407, %406 : vector<8x32xf32>
    %cst_185 = arith.constant 5.000000e-01 : f32
    %409 = vector.broadcast %cst_185 : f32 to vector<8x32xf32>
    %410 = arith.mulf %409, %408 : vector<8x32xf32>
    %411 = arith.mulf %398, %410 : vector<8x32xf32>
    %cst_186 = arith.constant dense<0.000000e+00> : vector<8x32xf32>
    %412 = tpu.matmul %411, %376, %cst_186 {dimension_numbers = #tpu.dot_dimension_numbers<[1], [0], [0], [1], [0, 0, 1, 1], [], []>} : vector<8x32xf32>, vector<32x32xf32>, vector<8x32xf32> -> vector<8x32xf32>
    %413 = vector.broadcast %377 : vector<1x32xf32> to vector<8x32xf32>
    %414 = arith.addf %412, %413 : vector<8x32xf32>
    %415 = arith.addf %371, %414 : vector<8x32xf32>
    %c1_187 = arith.constant 1 : index
    %c0_188 = arith.constant 0 : index
    %c0_189 = arith.constant 0 : index
    %416 = vector.load %arg3[%c1_187, %c0_188, %c0_189] : memref<2x32x96xf32, #tpu.memory_space<vmem>>, vector<1x32x96xf32>
    %417 = vector.shape_cast %416 : vector<1x32x96xf32> to vector<32x96xf32>
    %c12_190 = arith.constant 12 : index
    %c0_191 = arith.constant 0 : index
    %418 = vector.load %arg5[%c12_190, %c0_191] : memref<80x128xf32, #tpu.memory_space<vmem>>, vector<1x96xf32>
    %c7_192 = arith.constant 7 : index
    %c0_193 = arith.constant 0 : index
    %c0_194 = arith.constant 0 : index
    %419 = vector.load %arg1[%c7_192, %c0_193, %c0_194] : memref<16x32x32xf32, #tpu.memory_space<vmem>>, vector<1x32x32xf32>
    %420 = vector.shape_cast %419 : vector<1x32x32xf32> to vector<32x32xf32>
    %c13_195 = arith.constant 13 : index
    %c0_196 = arith.constant 0 : index
    %421 = vector.load %arg5[%c13_195, %c0_196] : memref<80x128xf32, #tpu.memory_space<vmem>>, vector<1x32xf32>
    %cst_197 = arith.constant dense<0.000000e+00> : vector<8xf32>
    %422 = vector.multi_reduction <add>, %415, %cst_197 [1] : vector<8x32xf32> to vector<8xf32>
    %423 = vector.shape_cast %422 : vector<8xf32> to vector<8x1xf32>
    %cst_198 = arith.constant 3.200000e+01 : f32
    %424 = vector.broadcast %cst_198 : f32 to vector<8x1xf32>
    %425 = arith.divf %423, %424 : vector<8x1xf32>
    %426 = vector.broadcast %425 : vector<8x1xf32> to vector<8x32xf32>
    %427 = arith.subf %415, %426 : vector<8x32xf32>
    %428 = arith.mulf %427, %427 : vector<8x32xf32>
    %cst_199 = arith.constant dense<0.000000e+00> : vector<8xf32>
    %429 = vector.multi_reduction <add>, %428, %cst_199 [1] : vector<8x32xf32> to vector<8xf32>
    %430 = vector.shape_cast %429 : vector<8xf32> to vector<8x1xf32>
    %cst_200 = arith.constant 3.200000e+01 : f32
    %431 = vector.broadcast %cst_200 : f32 to vector<8x1xf32>
    %432 = arith.divf %430, %431 : vector<8x1xf32>
    %433 = vector.broadcast %425 : vector<8x1xf32> to vector<8x32xf32>
    %434 = arith.subf %415, %433 : vector<8x32xf32>
    %cst_201 = arith.constant 9.99999974E-6 : f32
    %435 = vector.broadcast %cst_201 : f32 to vector<8x1xf32>
    %436 = arith.addf %432, %435 : vector<8x1xf32>
    %437 = math.rsqrt %436 : vector<8x1xf32>
    %438 = vector.broadcast %437 : vector<8x1xf32> to vector<8x32xf32>
    %439 = arith.mulf %434, %438 : vector<8x32xf32>
    %cst_202 = arith.constant dense<0.000000e+00> : vector<8x96xf32>
    %440 = tpu.matmul %439, %417, %cst_202 {dimension_numbers = #tpu.dot_dimension_numbers<[1], [0], [0], [1], [0, 0, 1, 1], [], []>} : vector<8x32xf32>, vector<32x96xf32>, vector<8x96xf32> -> vector<8x96xf32>
    %441 = vector.broadcast %418 : vector<1x96xf32> to vector<8x96xf32>
    %442 = arith.addf %440, %441 : vector<8x96xf32>
    %443 = vector.extract_strided_slice %442 {offsets = [0, 0], sizes = [8, 32], strides = [1, 1]} : vector<8x96xf32> to vector<8x32xf32>
    %444 = vector.extract_strided_slice %442 {offsets = [0, 32], sizes = [8, 32], strides = [1, 1]} : vector<8x96xf32> to vector<8x32xf32>
    %445 = vector.extract_strided_slice %442 {offsets = [0, 64], sizes = [8, 32], strides = [1, 1]} : vector<8x96xf32> to vector<8x32xf32>
    %cst_203 = arith.constant dense<0.000000e+00> : vector<8x8xf32>
    %446 = tpu.matmul %443, %444, %cst_203 {dimension_numbers = #tpu.dot_dimension_numbers<[1], [1], [0], [0], [0, 0, 1, 0], [], []>} : vector<8x32xf32>, vector<8x32xf32>, vector<8x8xf32> -> vector<8x8xf32>
    %447 = arith.addf %446, %26 : vector<8x8xf32>
    %cst_204 = arith.constant dense<0xFF800000> : vector<8xf32>
    %448 = vector.multi_reduction <maximumf>, %447, %cst_204 [1] : vector<8x8xf32> to vector<8xf32>
    %449 = vector.shape_cast %448 : vector<8xf32> to vector<8x1xf32>
    %450 = vector.broadcast %449 : vector<8x1xf32> to vector<8x8xf32>
    %451 = arith.subf %447, %450 : vector<8x8xf32>
    %452 = math.exp %451 : vector<8x8xf32>
    %cst_205 = arith.constant dense<0.000000e+00> : vector<8xf32>
    %453 = vector.multi_reduction <add>, %452, %cst_205 [1] : vector<8x8xf32> to vector<8xf32>
    %454 = vector.shape_cast %453 : vector<8xf32> to vector<8x1xf32>
    %455 = tpu.reciprocal %454 {approx = true} : vector<8x1xf32> -> vector<8x1xf32>
    %456 = vector.broadcast %455 : vector<8x1xf32> to vector<8x8xf32>
    %457 = arith.mulf %452, %456 : vector<8x8xf32>
    %cst_206 = arith.constant dense<0.000000e+00> : vector<8x32xf32>
    %458 = tpu.matmul %457, %445, %cst_206 {dimension_numbers = #tpu.dot_dimension_numbers<[1], [0], [0], [1], [0, 0, 1, 1], [], []>} : vector<8x8xf32>, vector<8x32xf32>, vector<8x32xf32> -> vector<8x32xf32>
    %cst_207 = arith.constant dense<0.000000e+00> : vector<8x32xf32>
    %459 = tpu.matmul %458, %420, %cst_207 {dimension_numbers = #tpu.dot_dimension_numbers<[1], [0], [0], [1], [0, 0, 1, 1], [], []>} : vector<8x32xf32>, vector<32x32xf32>, vector<8x32xf32> -> vector<8x32xf32>
    %460 = vector.broadcast %421 : vector<1x32xf32> to vector<8x32xf32>
    %461 = arith.addf %459, %460 : vector<8x32xf32>
    %462 = arith.addf %415, %461 : vector<8x32xf32>
    %c8_208 = arith.constant 8 : index
    %c0_209 = arith.constant 0 : index
    %c0_210 = arith.constant 0 : index
    %463 = vector.load %arg1[%c8_208, %c0_209, %c0_210] : memref<16x32x32xf32, #tpu.memory_space<vmem>>, vector<1x32x32xf32>
    %464 = vector.shape_cast %463 : vector<1x32x32xf32> to vector<32x32xf32>
    %c14_211 = arith.constant 14 : index
    %c0_212 = arith.constant 0 : index
    %465 = vector.load %arg5[%c14_211, %c0_212] : memref<80x128xf32, #tpu.memory_space<vmem>>, vector<1x32xf32>
    %c9_213 = arith.constant 9 : index
    %c0_214 = arith.constant 0 : index
    %c0_215 = arith.constant 0 : index
    %466 = vector.load %arg1[%c9_213, %c0_214, %c0_215] : memref<16x32x32xf32, #tpu.memory_space<vmem>>, vector<1x32x32xf32>
    %467 = vector.shape_cast %466 : vector<1x32x32xf32> to vector<32x32xf32>
    %c15_216 = arith.constant 15 : index
    %c0_217 = arith.constant 0 : index
    %468 = vector.load %arg5[%c15_216, %c0_217] : memref<80x128xf32, #tpu.memory_space<vmem>>, vector<1x32xf32>
    %cst_218 = arith.constant dense<0.000000e+00> : vector<8xf32>
    %469 = vector.multi_reduction <add>, %462, %cst_218 [1] : vector<8x32xf32> to vector<8xf32>
    %470 = vector.shape_cast %469 : vector<8xf32> to vector<8x1xf32>
    %cst_219 = arith.constant 3.200000e+01 : f32
    %471 = vector.broadcast %cst_219 : f32 to vector<8x1xf32>
    %472 = arith.divf %470, %471 : vector<8x1xf32>
    %473 = vector.broadcast %472 : vector<8x1xf32> to vector<8x32xf32>
    %474 = arith.subf %462, %473 : vector<8x32xf32>
    %475 = arith.mulf %474, %474 : vector<8x32xf32>
    %cst_220 = arith.constant dense<0.000000e+00> : vector<8xf32>
    %476 = vector.multi_reduction <add>, %475, %cst_220 [1] : vector<8x32xf32> to vector<8xf32>
    %477 = vector.shape_cast %476 : vector<8xf32> to vector<8x1xf32>
    %cst_221 = arith.constant 3.200000e+01 : f32
    %478 = vector.broadcast %cst_221 : f32 to vector<8x1xf32>
    %479 = arith.divf %477, %478 : vector<8x1xf32>
    %480 = vector.broadcast %472 : vector<8x1xf32> to vector<8x32xf32>
    %481 = arith.subf %462, %480 : vector<8x32xf32>
    %cst_222 = arith.constant 9.99999974E-6 : f32
    %482 = vector.broadcast %cst_222 : f32 to vector<8x1xf32>
    %483 = arith.addf %479, %482 : vector<8x1xf32>
    %484 = math.rsqrt %483 : vector<8x1xf32>
    %485 = vector.broadcast %484 : vector<8x1xf32> to vector<8x32xf32>
    %486 = arith.mulf %481, %485 : vector<8x32xf32>
    %cst_223 = arith.constant dense<0.000000e+00> : vector<8x32xf32>
    %487 = tpu.matmul %486, %464, %cst_223 {dimension_numbers = #tpu.dot_dimension_numbers<[1], [0], [0], [1], [0, 0, 1, 1], [], []>} : vector<8x32xf32>, vector<32x32xf32>, vector<8x32xf32> -> vector<8x32xf32>
    %488 = vector.broadcast %465 : vector<1x32xf32> to vector<8x32xf32>
    %489 = arith.addf %487, %488 : vector<8x32xf32>
    %490 = arith.mulf %489, %489 : vector<8x32xf32>
    %491 = arith.mulf %489, %490 : vector<8x32xf32>
    %cst_224 = arith.constant 4.471500e-02 : f32
    %492 = vector.broadcast %cst_224 : f32 to vector<8x32xf32>
    %493 = arith.mulf %492, %491 : vector<8x32xf32>
    %494 = arith.addf %489, %493 : vector<8x32xf32>
    %cst_225 = arith.constant 0.797884583 : f32
    %495 = vector.broadcast %cst_225 : f32 to vector<8x32xf32>
    %496 = arith.mulf %495, %494 : vector<8x32xf32>
    %497 = math.tanh %496 : vector<8x32xf32>
    %cst_226 = arith.constant 1.000000e+00 : f32
    %498 = vector.broadcast %cst_226 : f32 to vector<8x32xf32>
    %499 = arith.addf %498, %497 : vector<8x32xf32>
    %cst_227 = arith.constant 5.000000e-01 : f32
    %500 = vector.broadcast %cst_227 : f32 to vector<8x32xf32>
    %501 = arith.mulf %500, %499 : vector<8x32xf32>
    %502 = arith.mulf %489, %501 : vector<8x32xf32>
    %cst_228 = arith.constant dense<0.000000e+00> : vector<8x32xf32>
    %503 = tpu.matmul %502, %467, %cst_228 {dimension_numbers = #tpu.dot_dimension_numbers<[1], [0], [0], [1], [0, 0, 1, 1], [], []>} : vector<8x32xf32>, vector<32x32xf32>, vector<8x32xf32> -> vector<8x32xf32>
    %504 = vector.broadcast %468 : vector<1x32xf32> to vector<8x32xf32>
    %505 = arith.addf %503, %504 : vector<8x32xf32>
    %506 = arith.addf %462, %505 : vector<8x32xf32>
    %c10_229 = arith.constant 10 : index
    %c0_230 = arith.constant 0 : index
    %c0_231 = arith.constant 0 : index
    %507 = vector.load %arg1[%c10_229, %c0_230, %c0_231] : memref<16x32x32xf32, #tpu.memory_space<vmem>>, vector<1x32x32xf32>
    %508 = vector.shape_cast %507 : vector<1x32x32xf32> to vector<32x32xf32>
    %c16 = arith.constant 16 : index
    %c0_232 = arith.constant 0 : index
    %509 = vector.load %arg5[%c16, %c0_232] : memref<80x128xf32, #tpu.memory_space<vmem>>, vector<1x32xf32>
    %c2_233 = arith.constant 2 : index
    %c0_234 = arith.constant 0 : index
    %c0_235 = arith.constant 0 : index
    %510 = vector.load %arg2[%c2_233, %c0_234, %c0_235] : memref<3x32x64xf32, #tpu.memory_space<vmem>>, vector<1x32x64xf32>
    %511 = vector.shape_cast %510 : vector<1x32x64xf32> to vector<32x64xf32>
    %c17 = arith.constant 17 : index
    %c0_236 = arith.constant 0 : index
    %512 = vector.load %arg5[%c17, %c0_236] : memref<80x128xf32, #tpu.memory_space<vmem>>, vector<1x64xf32>
    %c11_237 = arith.constant 11 : index
    %c0_238 = arith.constant 0 : index
    %c0_239 = arith.constant 0 : index
    %513 = vector.load %arg1[%c11_237, %c0_238, %c0_239] : memref<16x32x32xf32, #tpu.memory_space<vmem>>, vector<1x32x32xf32>
    %514 = vector.shape_cast %513 : vector<1x32x32xf32> to vector<32x32xf32>
    %c18 = arith.constant 18 : index
    %c0_240 = arith.constant 0 : index
    %515 = vector.load %arg5[%c18, %c0_240] : memref<80x128xf32, #tpu.memory_space<vmem>>, vector<1x32xf32>
    %cst_241 = arith.constant dense<0.000000e+00> : vector<10xf32>
    %516 = vector.multi_reduction <add>, %21, %cst_241 [1] : vector<10x32xf32> to vector<10xf32>
    %517 = vector.shape_cast %516 : vector<10xf32> to vector<10x1xf32>
    %cst_242 = arith.constant 3.200000e+01 : f32
    %518 = vector.broadcast %cst_242 : f32 to vector<10x1xf32>
    %519 = arith.divf %517, %518 : vector<10x1xf32>
    %520 = vector.broadcast %519 : vector<10x1xf32> to vector<10x32xf32>
    %521 = arith.subf %21, %520 : vector<10x32xf32>
    %522 = arith.mulf %521, %521 : vector<10x32xf32>
    %cst_243 = arith.constant dense<0.000000e+00> : vector<10xf32>
    %523 = vector.multi_reduction <add>, %522, %cst_243 [1] : vector<10x32xf32> to vector<10xf32>
    %524 = vector.shape_cast %523 : vector<10xf32> to vector<10x1xf32>
    %cst_244 = arith.constant 3.200000e+01 : f32
    %525 = vector.broadcast %cst_244 : f32 to vector<10x1xf32>
    %526 = arith.divf %524, %525 : vector<10x1xf32>
    %527 = vector.broadcast %519 : vector<10x1xf32> to vector<10x32xf32>
    %528 = arith.subf %21, %527 : vector<10x32xf32>
    %cst_245 = arith.constant 9.99999974E-6 : f32
    %529 = vector.broadcast %cst_245 : f32 to vector<10x1xf32>
    %530 = arith.addf %526, %529 : vector<10x1xf32>
    %531 = math.rsqrt %530 : vector<10x1xf32>
    %532 = vector.broadcast %531 : vector<10x1xf32> to vector<10x32xf32>
    %533 = arith.mulf %528, %532 : vector<10x32xf32>
    %cst_246 = arith.constant dense<0.000000e+00> : vector<10x32xf32>
    %534 = tpu.matmul %533, %508, %cst_246 {dimension_numbers = #tpu.dot_dimension_numbers<[1], [0], [0], [1], [0, 0, 1, 1], [], []>} : vector<10x32xf32>, vector<32x32xf32>, vector<10x32xf32> -> vector<10x32xf32>
    %535 = vector.broadcast %509 : vector<1x32xf32> to vector<10x32xf32>
    %536 = arith.addf %534, %535 : vector<10x32xf32>
    %cst_247 = arith.constant dense<0.000000e+00> : vector<8xf32>
    %537 = vector.multi_reduction <add>, %506, %cst_247 [1] : vector<8x32xf32> to vector<8xf32>
    %538 = vector.shape_cast %537 : vector<8xf32> to vector<8x1xf32>
    %cst_248 = arith.constant 3.200000e+01 : f32
    %539 = vector.broadcast %cst_248 : f32 to vector<8x1xf32>
    %540 = arith.divf %538, %539 : vector<8x1xf32>
    %541 = vector.broadcast %540 : vector<8x1xf32> to vector<8x32xf32>
    %542 = arith.subf %506, %541 : vector<8x32xf32>
    %543 = arith.mulf %542, %542 : vector<8x32xf32>
    %cst_249 = arith.constant dense<0.000000e+00> : vector<8xf32>
    %544 = vector.multi_reduction <add>, %543, %cst_249 [1] : vector<8x32xf32> to vector<8xf32>
    %545 = vector.shape_cast %544 : vector<8xf32> to vector<8x1xf32>
    %cst_250 = arith.constant 3.200000e+01 : f32
    %546 = vector.broadcast %cst_250 : f32 to vector<8x1xf32>
    %547 = arith.divf %545, %546 : vector<8x1xf32>
    %548 = vector.broadcast %540 : vector<8x1xf32> to vector<8x32xf32>
    %549 = arith.subf %506, %548 : vector<8x32xf32>
    %cst_251 = arith.constant 9.99999974E-6 : f32
    %550 = vector.broadcast %cst_251 : f32 to vector<8x1xf32>
    %551 = arith.addf %547, %550 : vector<8x1xf32>
    %552 = math.rsqrt %551 : vector<8x1xf32>
    %553 = vector.broadcast %552 : vector<8x1xf32> to vector<8x32xf32>
    %554 = arith.mulf %549, %553 : vector<8x32xf32>
    %cst_252 = arith.constant dense<0.000000e+00> : vector<8x64xf32>
    %555 = tpu.matmul %554, %511, %cst_252 {dimension_numbers = #tpu.dot_dimension_numbers<[1], [0], [0], [1], [0, 0, 1, 1], [], []>} : vector<8x32xf32>, vector<32x64xf32>, vector<8x64xf32> -> vector<8x64xf32>
    %556 = vector.broadcast %512 : vector<1x64xf32> to vector<8x64xf32>
    %557 = arith.addf %555, %556 : vector<8x64xf32>
    %558 = vector.extract_strided_slice %557 {offsets = [0, 0], sizes = [8, 32], strides = [1, 1]} : vector<8x64xf32> to vector<8x32xf32>
    %559 = vector.extract_strided_slice %557 {offsets = [0, 32], sizes = [8, 32], strides = [1, 1]} : vector<8x64xf32> to vector<8x32xf32>
    %cst_253 = arith.constant dense<0.000000e+00> : vector<10x8xf32>
    %560 = tpu.matmul %536, %558, %cst_253 {dimension_numbers = #tpu.dot_dimension_numbers<[1], [1], [0], [0], [0, 0, 1, 0], [], []>} : vector<10x32xf32>, vector<8x32xf32>, vector<10x8xf32> -> vector<10x8xf32>
    %561 = arith.addf %560, %27 : vector<10x8xf32>
    %cst_254 = arith.constant dense<0xFF800000> : vector<10xf32>
    %562 = vector.multi_reduction <maximumf>, %561, %cst_254 [1] : vector<10x8xf32> to vector<10xf32>
    %563 = vector.shape_cast %562 : vector<10xf32> to vector<10x1xf32>
    %564 = vector.broadcast %563 : vector<10x1xf32> to vector<10x8xf32>
    %565 = arith.subf %561, %564 : vector<10x8xf32>
    %566 = math.exp %565 : vector<10x8xf32>
    %cst_255 = arith.constant dense<0.000000e+00> : vector<10xf32>
    %567 = vector.multi_reduction <add>, %566, %cst_255 [1] : vector<10x8xf32> to vector<10xf32>
    %568 = vector.shape_cast %567 : vector<10xf32> to vector<10x1xf32>
    %569 = tpu.reciprocal %568 {approx = true} : vector<10x1xf32> -> vector<10x1xf32>
    %570 = vector.broadcast %569 : vector<10x1xf32> to vector<10x8xf32>
    %571 = arith.mulf %566, %570 : vector<10x8xf32>
    %cst_256 = arith.constant dense<0.000000e+00> : vector<10x32xf32>
    %572 = tpu.matmul %571, %559, %cst_256 {dimension_numbers = #tpu.dot_dimension_numbers<[1], [0], [0], [1], [0, 0, 1, 1], [], []>} : vector<10x8xf32>, vector<8x32xf32>, vector<10x32xf32> -> vector<10x32xf32>
    %cst_257 = arith.constant dense<0.000000e+00> : vector<10x32xf32>
    %573 = tpu.matmul %572, %514, %cst_257 {dimension_numbers = #tpu.dot_dimension_numbers<[1], [0], [0], [1], [0, 0, 1, 1], [], []>} : vector<10x32xf32>, vector<32x32xf32>, vector<10x32xf32> -> vector<10x32xf32>
    %574 = vector.broadcast %515 : vector<1x32xf32> to vector<10x32xf32>
    %575 = arith.addf %573, %574 : vector<10x32xf32>
    %c12_258 = arith.constant 12 : index
    %c0_259 = arith.constant 0 : index
    %c0_260 = arith.constant 0 : index
    %576 = vector.load %arg1[%c12_258, %c0_259, %c0_260] : memref<16x32x32xf32, #tpu.memory_space<vmem>>, vector<1x32x32xf32>
    %577 = vector.shape_cast %576 : vector<1x32x32xf32> to vector<32x32xf32>
    %cst_261 = arith.constant dense<0.000000e+00> : vector<10x32xf32>
    %578 = tpu.matmul %22, %577, %cst_261 {dimension_numbers = #tpu.dot_dimension_numbers<[1], [0], [0], [1], [0, 0, 1, 1], [], []>} : vector<10x32xf32>, vector<32x32xf32>, vector<10x32xf32> -> vector<10x32xf32>
    %c13_262 = arith.constant 13 : index
    %c0_263 = arith.constant 0 : index
    %c0_264 = arith.constant 0 : index
    %579 = vector.load %arg1[%c13_262, %c0_263, %c0_264] : memref<16x32x32xf32, #tpu.memory_space<vmem>>, vector<1x32x32xf32>
    %580 = vector.shape_cast %579 : vector<1x32x32xf32> to vector<32x32xf32>
    %cst_265 = arith.constant dense<0.000000e+00> : vector<10x32xf32>
    %581 = tpu.matmul %575, %580, %cst_265 {dimension_numbers = #tpu.dot_dimension_numbers<[1], [0], [0], [1], [0, 0, 1, 1], [], []>} : vector<10x32xf32>, vector<32x32xf32>, vector<10x32xf32> -> vector<10x32xf32>
    %582 = arith.addf %578, %581 : vector<10x32xf32>
    %c19 = arith.constant 19 : index
    %c0_266 = arith.constant 0 : index
    %583 = vector.load %arg5[%c19, %c0_266] : memref<80x128xf32, #tpu.memory_space<vmem>>, vector<1x32xf32>
    %584 = vector.broadcast %583 : vector<1x32xf32> to vector<10x32xf32>
    %585 = arith.addf %582, %584 : vector<10x32xf32>
    %586 = math.tanh %585 : vector<10x32xf32>
    %c14_267 = arith.constant 14 : index
    %c0_268 = arith.constant 0 : index
    %c0_269 = arith.constant 0 : index
    %587 = vector.load %arg1[%c14_267, %c0_268, %c0_269] : memref<16x32x32xf32, #tpu.memory_space<vmem>>, vector<1x32x32xf32>
    %588 = vector.shape_cast %587 : vector<1x32x32xf32> to vector<32x32xf32>
    %cst_270 = arith.constant dense<0.000000e+00> : vector<10x32xf32>
    %589 = tpu.matmul %586, %588, %cst_270 {dimension_numbers = #tpu.dot_dimension_numbers<[1], [0], [0], [1], [0, 0, 1, 1], [], []>} : vector<10x32xf32>, vector<32x32xf32>, vector<10x32xf32> -> vector<10x32xf32>
    %c20 = arith.constant 20 : index
    %c0_271 = arith.constant 0 : index
    %590 = vector.load %arg5[%c20, %c0_271] : memref<80x128xf32, #tpu.memory_space<vmem>>, vector<1x32xf32>
    %591 = vector.broadcast %590 : vector<1x32xf32> to vector<10x32xf32>
    %592 = arith.addf %589, %591 : vector<10x32xf32>
    %593 = math.tanh %592 : vector<10x32xf32>
    %c15_272 = arith.constant 15 : index
    %c0_273 = arith.constant 0 : index
    %c0_274 = arith.constant 0 : index
    %594 = vector.load %arg1[%c15_272, %c0_273, %c0_274] : memref<16x32x32xf32, #tpu.memory_space<vmem>>, vector<1x32x32xf32>
    %595 = vector.shape_cast %594 : vector<1x32x32xf32> to vector<32x32xf32>
    %cst_275 = arith.constant dense<0.000000e+00> : vector<10x32xf32>
    %596 = tpu.matmul %593, %595, %cst_275 {dimension_numbers = #tpu.dot_dimension_numbers<[1], [0], [0], [1], [0, 0, 1, 1], [], []>} : vector<10x32xf32>, vector<32x32xf32>, vector<10x32xf32> -> vector<10x32xf32>
    %c21 = arith.constant 21 : index
    %c0_276 = arith.constant 0 : index
    %597 = vector.load %arg5[%c21, %c0_276] : memref<80x128xf32, #tpu.memory_space<vmem>>, vector<1x32xf32>
    %598 = vector.broadcast %597 : vector<1x32xf32> to vector<10x32xf32>
    %599 = arith.addf %596, %598 : vector<10x32xf32>
    %c0_277 = arith.constant 0 : index
    %c0_278 = arith.constant 0 : index
    %600 = vector.load %arg6[%c0_277, %c0_278] : memref<10x32xf32, #tpu.memory_space<vmem>>, vector<10x32xf32>
    tpu.vector_store %arg6[%c0_277, %c0_278], %599 {strides = array<i32>} : memref<10x32xf32, #tpu.memory_space<vmem>>, vector<10x32xf32>,
    return
  }
}

</mosaic_0001>

<llo_original>
// kernel: communication_forward.1
$region0: #{communication_forward.1}
  #allocation0 [shape = 'u32[]', space=smem, size = 0x4, offset = 0x4, fixed_abs, tag = 'smem constant byte address 0x4 - core index']
  #allocation1 [shape = 'u32[72,128]{1,0:T(1,128)}', space=vmem, size = 0x9000, scoped, tag = 'internal scratch']
  %s0 = inlined_call_operand.vmem [shape: f32[10,32], index: 0, kind: input, shape index: {}]
  %s1 = inlined_call_operand.hbm [shape: f32[16,32,32], index: 1, kind: input, shape index: {}]
  %s2 = inlined_call_operand.hbm [shape: f32[3,32,64], index: 2, kind: input, shape index: {}]
  %s3 = inlined_call_operand.hbm [shape: f32[2,32,96], index: 3, kind: input, shape index: {}]
  %s4 = inlined_call_operand.hbm [shape: f32[2,64,64], index: 4, kind: input, shape index: {}]
  %s5 = inlined_call_operand.hbm [shape: f32[80,128], index: 5, kind: input, shape index: {}]
  %s6 = inlined_call_operand.vmem [shape: f32[10,32], index: 6, kind: output, shape index: {}]
  %s7 = sld [smem:[#allocation0]]
  $region54: #{communication_forward.1} parent=0
    _
  %s9 = ssub.s32 1, %s7
  %s10 = scalar_select 0, %s9, %s7
  $region1: #{communication_forward.1} parent=0
    #allocation2 [shape = 'u8[262144]{0}', space=vmem, size = 0x40000, scoped, tag = 'input window, operand 1, single buffered']
    #allocation3 [shape = 's32[1]{0}', space=sflag, size = 0x4, scoped, tag = 'scoped memory for communication_forward.1']
    #allocation4 [shape = 'u8[49152]{0}', space=vmem, size = 0xc000, scoped, tag = 'input window, operand 2, single buffered']
    #allocation5 [shape = 's32[1]{0}', space=sflag, size = 0x4, scoped, tag = 'scoped memory for communication_forward.1']
    #allocation6 [shape = 'u8[32768]{0}', space=vmem, size = 0x8000, scoped, tag = 'input window, operand 3, single buffered']
    #allocation7 [shape = 'u8[65536]{0}', space=vmem, size = 0x10000, scoped, tag = 'input window, operand 4, single buffered']
    #allocation8 [shape = 's32[1]{0}', space=sflag, size = 0x4, scoped, tag = 'scoped memory for communication_forward.1']
    #allocation9 [shape = 'u8[40960]{0}', space=vmem, size = 0xa000, scoped, tag = 'input window, operand 5, single buffered']
    %11 = vsyncpa [#allocation3], 0
    %12 = vsyncpa [#allocation5], 0
    %13 = vsyncpa [#allocation8], 0
    // Predicated region
    $region2: #{communication_forward.1} parent=1 // pred_check
      _
    $region3: #{communication_forward.1} parent=1 // pred_check_branch
      %15 = sbr.rel (0) target = $region5
    $region4: #{communication_forward.1} parent=1 // pred_region
      _
    $region5: #{communication_forward.1} parent=1 // pred_fallthru
      _
    // Predicated region
    $region6: #{communication_forward.1} parent=1 // pred_check
      _
    $region7: #{communication_forward.1} parent=1 // pred_check_branch
      %17 = sbr.rel (0) target = $region9
    $region8: #{communication_forward.1} parent=1 // pred_region
      %19 = vsyncadd [#allocation3], 0
      %s20 = sshll.u32 %s1, 4
      %s21 = int_to_ptr.hbm [resolvable:$true] %s20
      %s22 = sshll.u32 [#allocation2], 4
      %s23 = int_to_ptr.vmem [resolvable:$true] %s22
      %28 = dma.hbm_to_vmem [thread:$0]  %s21, 8192, %s23, [#allocation3], 128, 128, 8
    $region9: #{communication_forward.1} parent=1 // pred_fallthru
      _
    // Predicated region
    $region10: #{communication_forward.1} parent=1 // pred_check
      _
    $region11: #{communication_forward.1} parent=1 // pred_check_branch
      %30 = sbr.rel (0) target = $region13
    $region12: #{communication_forward.1} parent=1 // pred_region
      %32 = vsyncadd [#allocation5], 0
      %s33 = sshll.u32 %s2, 4
      %s34 = int_to_ptr.hbm [resolvable:$true] %s33
      %s35 = sshll.u32 [#allocation4], 4
      %s36 = int_to_ptr.vmem [resolvable:$true] %s35
      %41 = dma.hbm_to_vmem [thread:$0]  %s34, 1536, %s36, [#allocation5], 128, 128, 8
    $region13: #{communication_forward.1} parent=1 // pred_fallthru
      _
    // Predicated region
    $region14: #{communication_forward.1} parent=1 // pred_check
      _
    $region15: #{communication_forward.1} parent=1 // pred_check_branch
      %43 = sbr.rel (0) target = $region17
    $region16: #{communication_forward.1} parent=1 // pred_region
      %45 = vsyncadd [#allocation5], 0
      %s46 = sshll.u32 %s3, 4
      %s47 = int_to_ptr.hbm [resolvable:$true] %s46
      %s48 = sshll.u32 [#allocation6], 4
      %s49 = int_to_ptr.vmem [resolvable:$true] %s48
      %54 = dma.hbm_to_vmem [thread:$0]  %s47, 1024, %s49, [#allocation5], 128, 128, 8
    $region17: #{communication_forward.1} parent=1 // pred_fallthru
      _
    // Predicated region
    $region18: #{communication_forward.1} parent=1 // pred_check
      _
    $region19: #{communication_forward.1} parent=1 // pred_check_branch
      %56 = sbr.rel (0) target = $region21
    $region20: #{communication_forward.1} parent=1 // pred_region
      %58 = vsyncadd [#allocation8], 0
      %s59 = sshll.u32 %s4, 4
      %s60 = int_to_ptr.hbm [resolvable:$true] %s59
      %s61 = sshll.u32 [#allocation7], 4
      %s62 = int_to_ptr.vmem [resolvable:$true] %s61
      %67 = dma.hbm_to_vmem [thread:$0]  %s60, 2048, %s62, [#allocation8], 128, 128, 8
    $region21: #{communication_forward.1} parent=1 // pred_fallthru
      _
    // Predicated region
    $region22: #{communication_forward.1} parent=1 // pred_check
      _
    $region23: #{communication_forward.1} parent=1 // pred_check_branch
      %69 = sbr.rel (0) target = $region25
    $region24: #{communication_forward.1} parent=1 // pred_region
      %71 = vsyncadd [#allocation8], 0
      %s72 = sshll.u32 %s5, 4
      %s73 = int_to_ptr.hbm [resolvable:$true] %s72
      %s74 = sshll.u32 [#allocation9], 4
      %s75 = int_to_ptr.vmem [resolvable:$true] %s74
      %80 = dma.hbm_to_vmem [thread:$0]  %s73, 1280, %s75, [#allocation8], 128, 128, 8
    $region25: #{communication_forward.1} parent=1 // pred_fallthru
      _
    // Predicated region
    $region26: #{communication_forward.1} parent=1 // pred_check
      _
    $region27: #{communication_forward.1} parent=1 // pred_check_branch
      %82 = sbr.rel (0) target = $region29
    $region28: #{communication_forward.1} parent=1 // pred_region
      %84 = dma.done [#allocation3], 8192
    $region29: #{communication_forward.1} parent=1 // pred_fallthru
      _
    // Predicated region
    $region30: #{communication_forward.1} parent=1 // pred_check
      _
    $region31: #{communication_forward.1} parent=1 // pred_check_branch
      %86 = sbr.rel (0) target = $region33
    $region32: #{communication_forward.1} parent=1 // pred_region
      %88 = dma.done [#allocation5], 1536
    $region33: #{communication_forward.1} parent=1 // pred_fallthru
      _
    // Predicated region
    $region34: #{communication_forward.1} parent=1 // pred_check
      _
    $region35: #{communication_forward.1} parent=1 // pred_check_branch
      %90 = sbr.rel (0) target = $region37
    $region36: #{communication_forward.1} parent=1 // pred_region
      %92 = dma.done [#allocation5], 1024
    $region37: #{communication_forward.1} parent=1 // pred_fallthru
      _
    // Predicated region
    $region38: #{communication_forward.1} parent=1 // pred_check
      _
    $region39: #{communication_forward.1} parent=1 // pred_check_branch
      %94 = sbr.rel (0) target = $region41
    $region40: #{communication_forward.1} parent=1 // pred_region
      %96 = dma.done [#allocation8], 2048
    $region41: #{communication_forward.1} parent=1 // pred_fallthru
      _
    // Predicated region
    $region42: #{communication_forward.1} parent=1 // pred_check
      _
    $region43: #{communication_forward.1} parent=1 // pred_check_branch
      %98 = sbr.rel (0) target = $region45
    $region44: #{communication_forward.1} parent=1 // pred_region
      %100 = dma.done [#allocation8], 1280
    $region45: #{communication_forward.1} parent=1 // pred_fallthru
      _
    %v101 = vld [vmem:[%s0] sm:$0xff]
    %v102 = vld [vmem:[%s0 + $0x8] sm:$0x3]
    %v103 = vld [vmem:[#allocation4] sm:$0xff]
    %v104 = vld [vmem:[#allocation4 + $0x8] sm:$0xff]
    %v105 = vld [vmem:[#allocation4 + $0x10] sm:$0xff]
    %v106 = vld [vmem:[#allocation4 + $0x18] sm:$0xff]
    %v107 = vld [vmem:[#allocation9] sm:$0x1]
    %v108 = vperm.slane %v107, 0
    %vm109 = vcmask 261120
    %v111 = vsel %vm109, %v101, 0
    %v114 = vsel %vm109, %v102, 0
    %116 = vmatpush.msra.mxu0 0.0
    %117 = vmatpush.msra.mxu0 0.0
    %118 = vmatpush.msra.mxu0 0.0
    %119 = vmatpush.msra.mxu0 0.0
    %120 = vmatpush.msra.mxu0 0.0
    %121 = vmatpush.msra.mxu0 0.0
    %122 = vmatpush.msra.mxu0 0.0
    %123 = vmatpush.msra.mxu0 0.0
    %124 = vmatpush.msra.mxu0 0.0
    %125 = vmatpush.msra.mxu0 0.0
    %126 = vmatpush.msra.mxu0 0.0
    %127 = vmatpush.msra.mxu0 0.0
    %128 = vmatpush.msra.mxu0 %v106
    %129 = vmatpush.msra.mxu0 %v105
    %130 = vmatpush.msra.mxu0 %v104
    %131 = vmatpush.msra.mxu0 %v103
    %132 = vmatmul.f32.gmra.mxu0 %v111
    %v133 = vpop.f32.mrf.mxu0
    %v134 = vadd.f32 %v108, %v133
    %135 = vmatmul.f32.gmra.mxu0 %v114
    %v136 = vpop.f32.mrf.mxu0
    %v137 = vadd.f32 %v108, %v136
    %138 = vdwg.mxu0
    %v139 = vtanh.pop %v134
    %v140 = vtanh.pop %v137
    %v141 = vld [vmem:[#allocation7] sm:$0xff]
    %v142 = vld [vmem:[#allocation7 + $0x8] sm:$0xff]
    %v143 = vld [vmem:[#allocation7 + $0x10] sm:$0xff]
    %v144 = vld [vmem:[#allocation7 + $0x18] sm:$0xff]
    %v145 = vld [vmem:[#allocation7 + $0x20] sm:$0xff]
    %v146 = vld [vmem:[#allocation7 + $0x28] sm:$0xff]
    %v147 = vld [vmem:[#allocation7 + $0x30] sm:$0xff]
    %v148 = vld [vmem:[#allocation7 + $0x38] sm:$0xff]
    %v149 = vld [vmem:[#allocation9 + $0x1] sm:$0x1]
    %v150 = vperm.slane %v149, 0
    %vm151 = vcmask 523264
    %v153 = vsel %vm151, %v139, 0
    %v156 = vsel %vm151, %v140, 0
    %158 = vmatpush.msra.mxu0 0.0
    %159 = vmatpush.msra.mxu0 0.0
    %160 = vmatpush.msra.mxu0 0.0
    %161 = vmatpush.msra.mxu0 0.0
    %162 = vmatpush.msra.mxu0 0.0
    %163 = vmatpush.msra.mxu0 0.0
    %164 = vmatpush.msra.mxu0 0.0
    %165 = vmatpush.msra.mxu0 0.0
    %166 = vmatpush.msra.mxu0 %v148
    %167 = vmatpush.msra.mxu0 %v147
    %168 = vmatpush.msra.mxu0 %v146
    %169 = vmatpush.msra.mxu0 %v145
    %170 = vmatpush.msra.mxu0 %v144
    %171 = vmatpush.msra.mxu0 %v143
    %172 = vmatpush.msra.mxu0 %v142
    %173 = vmatpush.msra.mxu0 %v141
    %174 = vmatmul.f32.gmra.mxu0 %v153
    %v175 = vpop.f32.mrf.mxu0
    %v176 = vadd.f32 %v150, %v175
    %177 = vmatmul.f32.gmra.mxu0 %v156
    %v178 = vpop.f32.mrf.mxu0
    %v179 = vadd.f32 %v150, %v178
    %180 = vdwg.mxu0
    %v181 = vtanh.pop %v176
    %v182 = vtanh.pop %v179
    %s183 = scalar_lea.vmem [#allocation7], 64
    %v184 = vld [vmem:[%s183] sm:$0xff]
    %v185 = vld [vmem:[%s183 + $0x8] sm:$0xff]
    %v186 = vld [vmem:[%s183 + $0x10] sm:$0xff]
    %v187 = vld [vmem:[%s183 + $0x18] sm:$0xff]
    %v188 = vld [vmem:[%s183 + $0x20] sm:$0xff]
    %v189 = vld [vmem:[%s183 + $0x28] sm:$0xff]
    %v190 = vld [vmem:[%s183 + $0x30] sm:$0xff]
    %v191 = vld [vmem:[%s183 + $0x38] sm:$0xff]
    %v192 = vld [vmem:[#allocation9 + $0x2] sm:$0x1]
    %v193 = vperm.slane %v192, 0
    %v195 = vsel %vm151, %v181, 0
    %v198 = vsel %vm151, %v182, 0
    %200 = vmatpush.msra.mxu0 0.0
    %201 = vmatpush.msra.mxu0 0.0
    %202 = vmatpush.msra.mxu0 0.0
    %203 = vmatpush.msra.mxu0 0.0
    %204 = vmatpush.msra.mxu0 0.0
    %205 = vmatpush.msra.mxu0 0.0
    %206 = vmatpush.msra.mxu0 0.0
    %207 = vmatpush.msra.mxu0 0.0
    %208 = vmatpush.msra.mxu0 %v191
    %209 = vmatpush.msra.mxu0 %v190
    %210 = vmatpush.msra.mxu0 %v189
    %211 = vmatpush.msra.mxu0 %v188
    %212 = vmatpush.msra.mxu0 %v187
    %213 = vmatpush.msra.mxu0 %v186
    %214 = vmatpush.msra.mxu0 %v185
    %215 = vmatpush.msra.mxu0 %v184
    %216 = vmatmul.f32.gmra.mxu0 %v195
    %v217 = vpop.f32.mrf.mxu0
    %v218 = vadd.f32 %v193, %v217
    %219 = vmatmul.f32.gmra.mxu0 %v198
    %v220 = vpop.f32.mrf.mxu0
    %v221 = vadd.f32 %v193, %v220
    %222 = vdwg.mxu0
    %v223 = vld [vmem:[#allocation9 + $0x18] sm:$0xff]
    %v224 = vld [vmem:[#allocation9 + $0x20] sm:$0x3]
    %v225 = vadd.f32 %v218, %v223
    %v226 = vadd.f32 %v221, %v224
    %v227 = vld [vmem:[#allocation9 + $0x30] sm:$0xff]
    %v228 = vld [vmem:[#allocation9 + $0x38] sm:$0xff]
    %v229 = vld [vmem:[#allocation9 + $0x40] sm:$0xff]
    %v230 = vld [vmem:[#allocation9 + $0x48] sm:$0x3]
    %v231 = vld [vmem:[#allocation9 + $0x28] sm:$0xff]
    %v232 = vld [vmem:[#allocation2] sm:$0xff]
    %v233 = vld [vmem:[#allocation2 + $0x8] sm:$0xff]
    %v234 = vld [vmem:[#allocation2 + $0x10] sm:$0xff]
    %v235 = vld [vmem:[#allocation2 + $0x18] sm:$0xff]
    %v236 = vld [vmem:[#allocation9 + $0x3] sm:$0x1]
    %s237 = scalar_lea.vmem [#allocation4], 32
    %v238 = vld [vmem:[%s237] sm:$0xff]
    %v239 = vld [vmem:[%s237 + $0x8] sm:$0xff]
    %v240 = vld [vmem:[%s237 + $0x10] sm:$0xff]
    %v241 = vld [vmem:[%s237 + $0x18] sm:$0xff]
    %v242 = vld [vmem:[#allocation9 + $0x4] sm:$0x1]
    %s243 = scalar_lea.vmem [#allocation2], 32
    %v244 = vld [vmem:[%s243] sm:$0xff]
    %v245 = vld [vmem:[%s243 + $0x8] sm:$0xff]
    %v246 = vld [vmem:[%s243 + $0x10] sm:$0xff]
    %v247 = vld [vmem:[%s243 + $0x18] sm:$0xff]
    %v248 = vld [vmem:[#allocation9 + $0x5] sm:$0x1]
    %v249 = vsel %vm109, %v231, 0.0
    %250 = vadd.xlane.f32.xlu0 %v249
    %v251 = vpop.xlane.xlu0 %250
    %v252 = vrcp.pop 32.0
    %v253 = vmul.f32 32.0, %v252
    %v254 = vsub.f32 1.0, %v253
    %v255 = vmul.f32 %v252, %v254
    %v256 = vadd.f32 %v252, %v255
    %vm257 = vweird.f32 %v252
    %v258 = vsel %vm257, %v252, %v256
    %v259 = vmul.f32 %v251, %v258
    %v260 = vsub.f32 %v231, %v259
    %v261 = vmul.f32 %v260, %v260
    %v262 = vsel %vm109, %v261, 0.0
    %263 = vadd.xlane.f32.xlu0 %v262
    %v264 = vpop.xlane.xlu0 %263
    %v265 = vmul.f32 %v264, %v258
    %v266 = vadd.f32 %v265, 1e-05
    %v267 = vrsqrt.pop %v266
    %v268 = vmul.f32 %v267, %v266
    %v269 = vmul.f32 %v268, %v267
    %v270 = vmul.f32 0.5, %v269
    %v271 = vsub.f32 1.5, %v270
    %v272 = vmul.f32 %v267, %v271
    %vm273 = vweird.f32 %v266
    %vm274 = vweird.f32 %v267
    %vm275 = vmor %vm273, %vm274
    %v276 = vsel %vm275, %v267, %v272
    %v277 = vmul.f32 %v260, %v276
    %v278 = vperm.slane %v236, 0
    %v280 = vsel %vm109, %v277, 0
    %282 = vmatpush.msra.mxu0 0.0
    %283 = vmatpush.msra.mxu0 0.0
    %284 = vmatpush.msra.mxu0 0.0
    %285 = vmatpush.msra.mxu0 0.0
    %286 = vmatpush.msra.mxu0 0.0
    %287 = vmatpush.msra.mxu0 0.0
    %288 = vmatpush.msra.mxu0 0.0
    %289 = vmatpush.msra.mxu0 0.0
    %290 = vmatpush.msra.mxu0 0.0
    %291 = vmatpush.msra.mxu0 0.0
    %292 = vmatpush.msra.mxu0 0.0
    %293 = vmatpush.msra.mxu0 0.0
    %294 = vmatpush.msra.mxu0 %v235
    %295 = vmatpush.msra.mxu0 %v234
    %296 = vmatpush.msra.mxu0 %v233
    %297 = vmatpush.msra.mxu0 %v232
    %298 = vmatmul.f32.gmra.mxu0 %v280
    %v299 = vpop.f32.mrf.mxu0
    %v300 = vadd.f32 %v278, %v299
    %301 = vdwg.mxu0
    %v302 = vsel %vm109, %v225, 0.0
    %303 = vadd.xlane.f32.xlu0 %v302
    %v304 = vpop.xlane.xlu0 %303
    %vm305 = vcmask 254976
    %v306 = vsel %vm305, %v226, 0.0
    %307 = vadd.xlane.f32.xlu0 %v306
    %v308 = vpop.xlane.xlu0 %307
    %v309 = vmul.f32 %v304, %v258
    %v310 = vmul.f32 %v308, %v258
    %v311 = vsub.f32 %v225, %v309
    %v312 = vsub.f32 %v226, %v310
    %v313 = vmul.f32 %v311, %v311
    %v314 = vmul.f32 %v312, %v312
    %v315 = vsel %vm109, %v313, 0.0
    %316 = vadd.xlane.f32.xlu0 %v315
    %v317 = vpop.xlane.xlu0 %316
    %v318 = vsel %vm305, %v314, 0.0
    %319 = vadd.xlane.f32.xlu0 %v318
    %v320 = vpop.xlane.xlu0 %319
    %v321 = vmul.f32 %v317, %v258
    %v322 = vmul.f32 %v320, %v258
    %v323 = vadd.f32 %v321, 1e-05
    %v324 = vadd.f32 %v322, 1e-05
    %v325 = vrsqrt.pop %v323
    %v326 = vmul.f32 %v325, %v323
    %v327 = vmul.f32 %v326, %v325
    %v328 = vmul.f32 0.5, %v327
    %v329 = vsub.f32 1.5, %v328
    %v330 = vmul.f32 %v325, %v329
    %vm331 = vweird.f32 %v323
    %vm332 = vweird.f32 %v325
    %vm333 = vmor %vm331, %vm332
    %v334 = vsel %vm333, %v325, %v330
    %v335 = vrsqrt.pop %v324
    %v336 = vmul.f32 %v335, %v324
    %v337 = vmul.f32 %v336, %v335
    %v338 = vmul.f32 0.5, %v337
    %v339 = vsub.f32 1.5, %v338
    %v340 = vmul.f32 %v335, %v339
    %vm341 = vweird.f32 %v324
    %vm342 = vweird.f32 %v335
    %vm343 = vmor %vm341, %vm342
    %v344 = vsel %vm343, %v335, %v340
    %v345 = vmul.f32 %v311, %v334
    %v346 = vmul.f32 %v312, %v344
    %v347 = vperm.slane %v242, 0
    %v349 = vsel %vm109, %v345, 0
    %v352 = vsel %vm109, %v346, 0
    %354 = vmatpush.msra.mxu0 0.0
    %355 = vmatpush.msra.mxu0 0.0
    %356 = vmatpush.msra.mxu0 0.0
    %357 = vmatpush.msra.mxu0 0.0
    %358 = vmatpush.msra.mxu0 0.0
    %359 = vmatpush.msra.mxu0 0.0
    %360 = vmatpush.msra.mxu0 0.0
    %361 = vmatpush.msra.mxu0 0.0
    %362 = vmatpush.msra.mxu0 0.0
    %363 = vmatpush.msra.mxu0 0.0
    %364 = vmatpush.msra.mxu0 0.0
    %365 = vmatpush.msra.mxu0 0.0
    %366 = vmatpush.msra.mxu0 %v241
    %367 = vmatpush.msra.mxu0 %v240
    %368 = vmatpush.msra.mxu0 %v239
    %369 = vmatpush.msra.mxu0 %v238
    %370 = vmatmul.f32.gmra.mxu0 %v349
    %v371 = vpop.f32.mrf.mxu0
    %v372 = vadd.f32 %v347, %v371
    %373 = vmatmul.f32.gmra.mxu0 %v352
    %v374 = vpop.f32.mrf.mxu0
    %v375 = vadd.f32 %v347, %v374
    %376 = vdwg.mxu0
    %v378 = vsel %vm109, %v300, 0
    %v381 = vsel %vm109, %v372, 0
    %v384 = vsel %vm109, %v375, 0
    %386 = vmatpush.xpose.msra.mxu0 0.0
    %387 = vmatpush.xpose.msra.mxu0 0.0
    %388 = vmatpush.xpose.msra.mxu0 0.0
    %389 = vmatpush.xpose.msra.mxu0 0.0
    %390 = vmatpush.xpose.msra.mxu0 0.0
    %391 = vmatpush.xpose.msra.mxu0 0.0
    %392 = vmatpush.xpose.msra.mxu0 0.0
    %393 = vmatpush.xpose.msra.mxu0 0.0
    %394 = vmatpush.xpose.msra.mxu0 0.0
    %395 = vmatpush.xpose.msra.mxu0 0.0
    %396 = vmatpush.xpose.msra.mxu0 0.0
    %397 = vmatpush.xpose.msra.mxu0 0.0
    %398 = vmatpush.xpose.msra.mxu0 0.0
    %399 = vmatpush.xpose.msra.mxu0 0.0
    %400 = vmatpush.xpose.msra.mxu0 %v384
    %401 = vmatpush.xpose.msra.mxu0 %v381
    %402 = vmatmul.f32.gmra.mxu0 %v378
    %v403 = vpop.f32.mrf.mxu0
    %v404 = vadd.f32 %v227, %v403
    %405 = vdwg.mxu0
    %vm406 = vcmask 80896
    %v407 = vsel %vm406, %v404, -inf
    %408 = vmax.xlane.f32.xlu0 %v407
    %v409 = vpop.xlane.xlu0 %408
    %v410 = vsub.f32 %v404, %v409
    %v411 = vmul.f32 %v410, 1.442695
    %v412 = vpow.pop %v411
    %v413 = vsel %vm406, %v412, 0.0
    %414 = vadd.xlane.f32.xlu0 %v413
    %v415 = vpop.xlane.xlu0 %414
    %v416 = vrcp.pop %v415
    %v417 = vmul.f32 %v412, %v416
    %418 = vrot.lane.b32.xlu0 %v372, 96
    %v419 = vpop.permute.xlu0 %418
    %420 = vrot.lane.b32.xlu0 %v375, 96
    %v421 = vpop.permute.xlu0 %420
    %v424 = vsel %vm406, %v417, 0
    %vm426 = vcmask 1041408
    %v427 = vsel %vm426, %v421, 0
    %429 = vmatpush.msra.mxu0 0.0
    %430 = vmatpush.msra.mxu0 0.0
    %431 = vmatpush.msra.mxu0 0.0
    %432 = vmatpush.msra.mxu0 0.0
    %433 = vmatpush.msra.mxu0 0.0
    %434 = vmatpush.msra.mxu0 0.0
    %435 = vmatpush.msra.mxu0 0.0
    %436 = vmatpush.msra.mxu0 0.0
    %437 = vmatpush.msra.mxu0 0.0
    %438 = vmatpush.msra.mxu0 0.0
    %439 = vmatpush.msra.mxu0 0.0
    %440 = vmatpush.msra.mxu0 0.0
    %441 = vmatpush.msra.mxu0 0.0
    %442 = vmatpush.msra.mxu0 0.0
    %443 = vmatpush.msra.mxu0 %v427
    %444 = vmatpush.msra.mxu0 %v419
    %445 = vmatmul.f32.gmra.mxu0 %v424
    %v446 = vpop.f32.mrf.mxu0
    %v447 = vadd.f32 0.0, %v446
    %448 = vdwg.mxu0
    %v449 = vperm.slane %v248, 0
    %v451 = vsel %vm109, %v447, 0
    %453 = vmatpush.msra.mxu0 0.0
    %454 = vmatpush.msra.mxu0 0.0
    %455 = vmatpush.msra.mxu0 0.0
    %456 = vmatpush.msra.mxu0 0.0
    %457 = vmatpush.msra.mxu0 0.0
    %458 = vmatpush.msra.mxu0 0.0
    %459 = vmatpush.msra.mxu0 0.0
    %460 = vmatpush.msra.mxu0 0.0
    %461 = vmatpush.msra.mxu0 0.0
    %462 = vmatpush.msra.mxu0 0.0
    %463 = vmatpush.msra.mxu0 0.0
    %464 = vmatpush.msra.mxu0 0.0
    %465 = vmatpush.msra.mxu0 %v247
    %466 = vmatpush.msra.mxu0 %v246
    %467 = vmatpush.msra.mxu0 %v245
    %468 = vmatpush.msra.mxu0 %v244
    %469 = vmatmul.f32.gmra.mxu0 %v451
    %v470 = vpop.f32.mrf.mxu0
    %v471 = vadd.f32 %v449, %v470
    %472 = vdwg.mxu0
    %v473 = vadd.f32 %v231, %v471
    %s474 = scalar_lea.vmem [#allocation2], 64
    %v475 = vld [vmem:[%s474] sm:$0xff]
    %v476 = vld [vmem:[%s474 + $0x8] sm:$0xff]
    %v477 = vld [vmem:[%s474 + $0x10] sm:$0xff]
    %v478 = vld [vmem:[%s474 + $0x18] sm:$0xff]
    %v479 = vld [vmem:[#allocation9 + $0x6] sm:$0x1]
    %s480 = scalar_lea.vmem [#allocation2], 96
    %v481 = vld [vmem:[%s480] sm:$0xff]
    %v482 = vld [vmem:[%s480 + $0x8] sm:$0xff]
    %v483 = vld [vmem:[%s480 + $0x10] sm:$0xff]
    %v484 = vld [vmem:[%s480 + $0x18] sm:$0xff]
    %v485 = vld [vmem:[#allocation9 + $0x7] sm:$0x1]
    %v486 = vsel %vm109, %v473, 0.0
    %487 = vadd.xlane.f32.xlu0 %v486
    %v488 = vpop.xlane.xlu0 %487
    %v489 = vmul.f32 %v488, %v258
    %v490 = vsub.f32 %v473, %v489
    %v491 = vmul.f32 %v490, %v490
    %v492 = vsel %vm109, %v491, 0.0
    %493 = vadd.xlane.f32.xlu0 %v492
    %v494 = vpop.xlane.xlu0 %493
    %v495 = vmul.f32 %v494, %v258
    %v496 = vadd.f32 %v495, 1e-05
    %v497 = vrsqrt.pop %v496
    %v498 = vmul.f32 %v497, %v496
    %v499 = vmul.f32 %v498, %v497
    %v500 = vmul.f32 0.5, %v499
    %v501 = vsub.f32 1.5, %v500
    %v502 = vmul.f32 %v497, %v501
    %vm503 = vweird.f32 %v496
    %vm504 = vweird.f32 %v497
    %vm505 = vmor %vm503, %vm504
    %v506 = vsel %vm505, %v497, %v502
    %v507 = vmul.f32 %v490, %v506
    %v508 = vperm.slane %v479, 0
    %v510 = vsel %vm109, %v507, 0
    %512 = vmatpush.msra.mxu0 0.0
    %513 = vmatpush.msra.mxu0 0.0
    %514 = vmatpush.msra.mxu0 0.0
    %515 = vmatpush.msra.mxu0 0.0
    %516 = vmatpush.msra.mxu0 0.0
    %517 = vmatpush.msra.mxu0 0.0
    %518 = vmatpush.msra.mxu0 0.0
    %519 = vmatpush.msra.mxu0 0.0
    %520 = vmatpush.msra.mxu0 0.0
    %521 = vmatpush.msra.mxu0 0.0
    %522 = vmatpush.msra.mxu0 0.0
    %523 = vmatpush.msra.mxu0 0.0
    %524 = vmatpush.msra.mxu0 %v478
    %525 = vmatpush.msra.mxu0 %v477
    %526 = vmatpush.msra.mxu0 %v476
    %527 = vmatpush.msra.mxu0 %v475
    %528 = vmatmul.f32.gmra.mxu0 %v510
    %v529 = vpop.f32.mrf.mxu0
    %v530 = vadd.f32 %v508, %v529
    %531 = vdwg.mxu0
    %v532 = vmul.f32 %v530, %v530
    %v533 = vmul.f32 %v530, %v532
    %v534 = vmul.f32 %v533, 0.044715
    %v535 = vadd.f32 %v530, %v534
    %v536 = vmul.f32 %v535, 0.7978846
    %v537 = vtanh.pop %v536
    %v538 = vadd.f32 %v537, 1.0
    %v539 = vmul.f32 %v538, 0.5
    %v540 = vmul.f32 %v530, %v539
    %v541 = vperm.slane %v485, 0
    %v543 = vsel %vm109, %v540, 0
    %545 = vmatpush.msra.mxu0 0.0
    %546 = vmatpush.msra.mxu0 0.0
    %547 = vmatpush.msra.mxu0 0.0
    %548 = vmatpush.msra.mxu0 0.0
    %549 = vmatpush.msra.mxu0 0.0
    %550 = vmatpush.msra.mxu0 0.0
    %551 = vmatpush.msra.mxu0 0.0
    %552 = vmatpush.msra.mxu0 0.0
    %553 = vmatpush.msra.mxu0 0.0
    %554 = vmatpush.msra.mxu0 0.0
    %555 = vmatpush.msra.mxu0 0.0
    %556 = vmatpush.msra.mxu0 0.0
    %557 = vmatpush.msra.mxu0 %v484
    %558 = vmatpush.msra.mxu0 %v483
    %559 = vmatpush.msra.mxu0 %v482
    %560 = vmatpush.msra.mxu0 %v481
    %561 = vmatmul.f32.gmra.mxu0 %v543
    %v562 = vpop.f32.mrf.mxu0
    %v563 = vadd.f32 %v541, %v562
    %564 = vdwg.mxu0
    %v565 = vadd.f32 %v473, %v563
    %v566 = vld [vmem:[#allocation6] sm:$0xff]
    %v567 = vld [vmem:[#allocation6 + $0x8] sm:$0xff]
    %v568 = vld [vmem:[#allocation6 + $0x10] sm:$0xff]
    %v569 = vld [vmem:[#allocation6 + $0x18] sm:$0xff]
    %v570 = vld [vmem:[#allocation9 + $0x8] sm:$0x1]
    %s571 = scalar_lea.vmem [#allocation2], 128
    %v572 = vld [vmem:[%s571] sm:$0xff]
    %v573 = vld [vmem:[%s571 + $0x8] sm:$0xff]
    %v574 = vld [vmem:[%s571 + $0x10] sm:$0xff]
    %v575 = vld [vmem:[%s571 + $0x18] sm:$0xff]
    %v576 = vld [vmem:[#allocation9 + $0x9] sm:$0x1]
    %v577 = vsel %vm109, %v565, 0.0
    %578 = vadd.xlane.f32.xlu0 %v577
    %v579 = vpop.xlane.xlu0 %578
    %v580 = vmul.f32 %v579, %v258
    %v581 = vsub.f32 %v565, %v580
    %v582 = vmul.f32 %v581, %v581
    %v583 = vsel %vm109, %v582, 0.0
    %584 = vadd.xlane.f32.xlu0 %v583
    %v585 = vpop.xlane.xlu0 %584
    %v586 = vmul.f32 %v585, %v258
    %v587 = vadd.f32 %v586, 1e-05
    %v588 = vrsqrt.pop %v587
    %v589 = vmul.f32 %v588, %v587
    %v590 = vmul.f32 %v589, %v588
    %v591 = vmul.f32 0.5, %v590
    %v592 = vsub.f32 1.5, %v591
    %v593 = vmul.f32 %v588, %v592
    %vm594 = vweird.f32 %v587
    %vm595 = vweird.f32 %v588
    %vm596 = vmor %vm594, %vm595
    %v597 = vsel %vm596, %v588, %v593
    %v598 = vmul.f32 %v581, %v597
    %v599 = vperm.slane %v570, 0
    %v601 = vsel %vm109, %v598, 0
    %603 = vmatpush.msra.mxu0 0.0
    %604 = vmatpush.msra.mxu0 0.0
    %605 = vmatpush.msra.mxu0 0.0
    %606 = vmatpush.msra.mxu0 0.0
    %607 = vmatpush.msra.mxu0 0.0
    %608 = vmatpush.msra.mxu0 0.0
    %609 = vmatpush.msra.mxu0 0.0
    %610 = vmatpush.msra.mxu0 0.0
    %611 = vmatpush.msra.mxu0 0.0
    %612 = vmatpush.msra.mxu0 0.0
    %613 = vmatpush.msra.mxu0 0.0
    %614 = vmatpush.msra.mxu0 0.0
    %615 = vmatpush.msra.mxu0 %v569
    %616 = vmatpush.msra.mxu0 %v568
    %617 = vmatpush.msra.mxu0 %v567
    %618 = vmatpush.msra.mxu0 %v566
    %619 = vmatmul.f32.gmra.mxu0 %v601
    %v620 = vpop.f32.mrf.mxu0
    %v621 = vadd.f32 %v599, %v620
    %622 = vdwg.mxu0
    %624 = vrot.lane.b32.xlu0 %v621, 96
    %v625 = vpop.permute.xlu0 %624
    %v626 = vsel %vm109, %v621, 0
    %v628 = vsel %vm109, %v625, 0
    %630 = vmatpush.xpose.msra.mxu0 0.0
    %631 = vmatpush.xpose.msra.mxu0 0.0
    %632 = vmatpush.xpose.msra.mxu0 0.0
    %633 = vmatpush.xpose.msra.mxu0 0.0
    %634 = vmatpush.xpose.msra.mxu0 0.0
    %635 = vmatpush.xpose.msra.mxu0 0.0
    %636 = vmatpush.xpose.msra.mxu0 0.0
    %637 = vmatpush.xpose.msra.mxu0 0.0
    %638 = vmatpush.xpose.msra.mxu0 0.0
    %639 = vmatpush.xpose.msra.mxu0 0.0
    %640 = vmatpush.xpose.msra.mxu0 0.0
    %641 = vmatpush.xpose.msra.mxu0 0.0
    %642 = vmatpush.xpose.msra.mxu0 0.0
    %643 = vmatpush.xpose.msra.mxu0 0.0
    %644 = vmatpush.xpose.msra.mxu0 0.0
    %645 = vmatpush.xpose.msra.mxu0 %v628
    %646 = vmatmul.f32.gmra.mxu0 %v626
    %v647 = vpop.f32.mrf.mxu0
    %v648 = vadd.f32 %v228, %v647
    %649 = vdwg.mxu0
    %vm650 = vcmask 64512
    %v651 = vsel %vm650, %v648, -inf
    %652 = vmax.xlane.f32.xlu0 %v651
    %v653 = vpop.xlane.xlu0 %652
    %v654 = vsub.f32 %v648, %v653
    %v655 = vmul.f32 %v654, 1.442695
    %v656 = vpow.pop %v655
    %v657 = vsel %vm650, %v656, 0.0
    %658 = vadd.xlane.f32.xlu0 %v657
    %v659 = vpop.xlane.xlu0 %658
    %v660 = vrcp.pop %v659
    %v661 = vmul.f32 %v656, %v660
    %662 = vrot.lane.b32.xlu0 %v621, 64
    %v663 = vpop.permute.xlu0 %662
    %v666 = vsel %vm650, %v661, 0
    %668 = vmatpush.msra.mxu0 0.0
    %669 = vmatpush.msra.mxu0 0.0
    %670 = vmatpush.msra.mxu0 0.0
    %671 = vmatpush.msra.mxu0 0.0
    %672 = vmatpush.msra.mxu0 0.0
    %673 = vmatpush.msra.mxu0 0.0
    %674 = vmatpush.msra.mxu0 0.0
    %675 = vmatpush.msra.mxu0 0.0
    %676 = vmatpush.msra.mxu0 0.0
    %677 = vmatpush.msra.mxu0 0.0
    %678 = vmatpush.msra.mxu0 0.0
    %679 = vmatpush.msra.mxu0 0.0
    %680 = vmatpush.msra.mxu0 0.0
    %681 = vmatpush.msra.mxu0 0.0
    %682 = vmatpush.msra.mxu0 0.0
    %683 = vmatpush.msra.mxu0 %v663
    %684 = vmatmul.f32.gmra.mxu0 %v666
    %v685 = vpop.f32.mrf.mxu0
    %v686 = vadd.f32 0.0, %v685
    %687 = vdwg.mxu0
    %v688 = vperm.slane %v576, 0
    %v690 = vsel %vm109, %v686, 0
    %692 = vmatpush.msra.mxu0 0.0
    %693 = vmatpush.msra.mxu0 0.0
    %694 = vmatpush.msra.mxu0 0.0
    %695 = vmatpush.msra.mxu0 0.0
    %696 = vmatpush.msra.mxu0 0.0
    %697 = vmatpush.msra.mxu0 0.0
    %698 = vmatpush.msra.mxu0 0.0
    %699 = vmatpush.msra.mxu0 0.0
    %700 = vmatpush.msra.mxu0 0.0
    %701 = vmatpush.msra.mxu0 0.0
    %702 = vmatpush.msra.mxu0 0.0
    %703 = vmatpush.msra.mxu0 0.0
    %704 = vmatpush.msra.mxu0 %v575
    %705 = vmatpush.msra.mxu0 %v574
    %706 = vmatpush.msra.mxu0 %v573
    %707 = vmatpush.msra.mxu0 %v572
    %708 = vmatmul.f32.gmra.mxu0 %v690
    %v709 = vpop.f32.mrf.mxu0
    %v710 = vadd.f32 %v688, %v709
    %711 = vdwg.mxu0
    %v712 = vadd.f32 %v565, %v710
    %s713 = scalar_lea.vmem [#allocation2], 160
    %v714 = vld [vmem:[%s713] sm:$0xff]
    %v715 = vld [vmem:[%s713 + $0x8] sm:$0xff]
    %v716 = vld [vmem:[%s713 + $0x10] sm:$0xff]
    %v717 = vld [vmem:[%s713 + $0x18] sm:$0xff]
    %v718 = vld [vmem:[#allocation9 + $0xa] sm:$0x1]
    %s719 = scalar_lea.vmem [#allocation2], 192
    %v720 = vld [vmem:[%s719] sm:$0xff]
    %v721 = vld [vmem:[%s719 + $0x8] sm:$0xff]
    %v722 = vld [vmem:[%s719 + $0x10] sm:$0xff]
    %v723 = vld [vmem:[%s719 + $0x18] sm:$0xff]
    %v724 = vld [vmem:[#allocation9 + $0xb] sm:$0x1]
    %v725 = vsel %vm109, %v712, 0.0
    %726 = vadd.xlane.f32.xlu0 %v725
    %v727 = vpop.xlane.xlu0 %726
    %v728 = vmul.f32 %v727, %v258
    %v729 = vsub.f32 %v712, %v728
    %v730 = vmul.f32 %v729, %v729
    %v731 = vsel %vm109, %v730, 0.0
    %732 = vadd.xlane.f32.xlu0 %v731
    %v733 = vpop.xlane.xlu0 %732
    %v734 = vmul.f32 %v733, %v258
    %v735 = vadd.f32 %v734, 1e-05
    %v736 = vrsqrt.pop %v735
    %v737 = vmul.f32 %v736, %v735
    %v738 = vmul.f32 %v737, %v736
    %v739 = vmul.f32 0.5, %v738
    %v740 = vsub.f32 1.5, %v739
    %v741 = vmul.f32 %v736, %v740
    %vm742 = vweird.f32 %v735
    %vm743 = vweird.f32 %v736
    %vm744 = vmor %vm742, %vm743
    %v745 = vsel %vm744, %v736, %v741
    %v746 = vmul.f32 %v729, %v745
    %v747 = vperm.slane %v718, 0
    %v749 = vsel %vm109, %v746, 0
    %751 = vmatpush.msra.mxu0 0.0
    %752 = vmatpush.msra.mxu0 0.0
    %753 = vmatpush.msra.mxu0 0.0
    %754 = vmatpush.msra.mxu0 0.0
    %755 = vmatpush.msra.mxu0 0.0
    %756 = vmatpush.msra.mxu0 0.0
    %757 = vmatpush.msra.mxu0 0.0
    %758 = vmatpush.msra.mxu0 0.0
    %759 = vmatpush.msra.mxu0 0.0
    %760 = vmatpush.msra.mxu0 0.0
    %761 = vmatpush.msra.mxu0 0.0
    %762 = vmatpush.msra.mxu0 0.0
    %763 = vmatpush.msra.mxu0 %v717
    %764 = vmatpush.msra.mxu0 %v716
    %765 = vmatpush.msra.mxu0 %v715
    %766 = vmatpush.msra.mxu0 %v714
    %767 = vmatmul.f32.gmra.mxu0 %v749
    %v768 = vpop.f32.mrf.mxu0
    %v769 = vadd.f32 %v747, %v768
    %770 = vdwg.mxu0
    %v771 = vmul.f32 %v769, %v769
    %v772 = vmul.f32 %v769, %v771
    %v773 = vmul.f32 %v772, 0.044715
    %v774 = vadd.f32 %v769, %v773
    %v775 = vmul.f32 %v774, 0.7978846
    %v776 = vtanh.pop %v775
    %v777 = vadd.f32 %v776, 1.0
    %v778 = vmul.f32 %v777, 0.5
    %v779 = vmul.f32 %v769, %v778
    %v780 = vperm.slane %v724, 0
    %v782 = vsel %vm109, %v779, 0
    %784 = vmatpush.msra.mxu0 0.0
    %785 = vmatpush.msra.mxu0 0.0
    %786 = vmatpush.msra.mxu0 0.0
    %787 = vmatpush.msra.mxu0 0.0
    %788 = vmatpush.msra.mxu0 0.0
    %789 = vmatpush.msra.mxu0 0.0
    %790 = vmatpush.msra.mxu0 0.0
    %791 = vmatpush.msra.mxu0 0.0
    %792 = vmatpush.msra.mxu0 0.0
    %793 = vmatpush.msra.mxu0 0.0
    %794 = vmatpush.msra.mxu0 0.0
    %795 = vmatpush.msra.mxu0 0.0
    %796 = vmatpush.msra.mxu0 %v723
    %797 = vmatpush.msra.mxu0 %v722
    %798 = vmatpush.msra.mxu0 %v721
    %799 = vmatpush.msra.mxu0 %v720
    %800 = vmatmul.f32.gmra.mxu0 %v782
    %v801 = vpop.f32.mrf.mxu0
    %v802 = vadd.f32 %v780, %v801
    %803 = vdwg.mxu0
    %v804 = vadd.f32 %v712, %v802
    %s805 = scalar_lea.vmem [#allocation6], 32
    %v806 = vld [vmem:[%s805] sm:$0xff]
    %v807 = vld [vmem:[%s805 + $0x8] sm:$0xff]
    %v808 = vld [vmem:[%s805 + $0x10] sm:$0xff]
    %v809 = vld [vmem:[%s805 + $0x18] sm:$0xff]
    %v810 = vld [vmem:[#allocation9 + $0xc] sm:$0x1]
    %s811 = scalar_lea.vmem [#allocation2], 224
    %v812 = vld [vmem:[%s811] sm:$0xff]
    %v813 = vld [vmem:[%s811 + $0x8] sm:$0xff]
    %v814 = vld [vmem:[%s811 + $0x10] sm:$0xff]
    %v815 = vld [vmem:[%s811 + $0x18] sm:$0xff]
    %v816 = vld [vmem:[#allocation9 + $0xd] sm:$0x1]
    %v817 = vsel %vm109, %v804, 0.0
    %818 = vadd.xlane.f32.xlu0 %v817
    %v819 = vpop.xlane.xlu0 %818
    %v820 = vmul.f32 %v819, %v258
    %v821 = vsub.f32 %v804, %v820
    %v822 = vmul.f32 %v821, %v821
    %v823 = vsel %vm109, %v822, 0.0
    %824 = vadd.xlane.f32.xlu0 %v823
    %v825 = vpop.xlane.xlu0 %824
    %v826 = vmul.f32 %v825, %v258
    %v827 = vadd.f32 %v826, 1e-05
    %v828 = vrsqrt.pop %v827
    %v829 = vmul.f32 %v828, %v827
    %v830 = vmul.f32 %v829, %v828
    %v831 = vmul.f32 0.5, %v830
    %v832 = vsub.f32 1.5, %v831
    %v833 = vmul.f32 %v828, %v832
    %vm834 = vweird.f32 %v827
    %vm835 = vweird.f32 %v828
    %vm836 = vmor %vm834, %vm835
    %v837 = vsel %vm836, %v828, %v833
    %v838 = vmul.f32 %v821, %v837
    %v839 = vperm.slane %v810, 0
    %v841 = vsel %vm109, %v838, 0
    %843 = vmatpush.msra.mxu0 0.0
    %844 = vmatpush.msra.mxu0 0.0
    %845 = vmatpush.msra.mxu0 0.0
    %846 = vmatpush.msra.mxu0 0.0
    %847 = vmatpush.msra.mxu0 0.0
    %848 = vmatpush.msra.mxu0 0.0
    %849 = vmatpush.msra.mxu0 0.0
    %850 = vmatpush.msra.mxu0 0.0
    %851 = vmatpush.msra.mxu0 0.0
    %852 = vmatpush.msra.mxu0 0.0
    %853 = vmatpush.msra.mxu0 0.0
    %854 = vmatpush.msra.mxu0 0.0
    %855 = vmatpush.msra.mxu0 %v809
    %856 = vmatpush.msra.mxu0 %v808
    %857 = vmatpush.msra.mxu0 %v807
    %858 = vmatpush.msra.mxu0 %v806
    %859 = vmatmul.f32.gmra.mxu0 %v841
    %v860 = vpop.f32.mrf.mxu0
    %v861 = vadd.f32 %v839, %v860
    %862 = vdwg.mxu0
    %864 = vrot.lane.b32.xlu0 %v861, 96
    %v865 = vpop.permute.xlu0 %864
    %v866 = vsel %vm109, %v861, 0
    %v868 = vsel %vm109, %v865, 0
    %870 = vmatpush.xpose.msra.mxu0 0.0
    %871 = vmatpush.xpose.msra.mxu0 0.0
    %872 = vmatpush.xpose.msra.mxu0 0.0
    %873 = vmatpush.xpose.msra.mxu0 0.0
    %874 = vmatpush.xpose.msra.mxu0 0.0
    %875 = vmatpush.xpose.msra.mxu0 0.0
    %876 = vmatpush.xpose.msra.mxu0 0.0
    %877 = vmatpush.xpose.msra.mxu0 0.0
    %878 = vmatpush.xpose.msra.mxu0 0.0
    %879 = vmatpush.xpose.msra.mxu0 0.0
    %880 = vmatpush.xpose.msra.mxu0 0.0
    %881 = vmatpush.xpose.msra.mxu0 0.0
    %882 = vmatpush.xpose.msra.mxu0 0.0
    %883 = vmatpush.xpose.msra.mxu0 0.0
    %884 = vmatpush.xpose.msra.mxu0 0.0
    %885 = vmatpush.xpose.msra.mxu0 %v868
    %886 = vmatmul.f32.gmra.mxu0 %v866
    %v887 = vpop.f32.mrf.mxu0
    %v888 = vadd.f32 %v228, %v887
    %889 = vdwg.mxu0
    %v890 = vsel %vm650, %v888, -inf
    %891 = vmax.xlane.f32.xlu0 %v890
    %v892 = vpop.xlane.xlu0 %891
    %v893 = vsub.f32 %v888, %v892
    %v894 = vmul.f32 %v893, 1.442695
    %v895 = vpow.pop %v894
    %v896 = vsel %vm650, %v895, 0.0
    %897 = vadd.xlane.f32.xlu0 %v896
    %v898 = vpop.xlane.xlu0 %897
    %v899 = vrcp.pop %v898
    %v900 = vmul.f32 %v895, %v899
    %901 = vrot.lane.b32.xlu0 %v861, 64
    %v902 = vpop.permute.xlu0 %901
    %v905 = vsel %vm650, %v900, 0
    %907 = vmatpush.msra.mxu0 0.0
    %908 = vmatpush.msra.mxu0 0.0
    %909 = vmatpush.msra.mxu0 0.0
    %910 = vmatpush.msra.mxu0 0.0
    %911 = vmatpush.msra.mxu0 0.0
    %912 = vmatpush.msra.mxu0 0.0
    %913 = vmatpush.msra.mxu0 0.0
    %914 = vmatpush.msra.mxu0 0.0
    %915 = vmatpush.msra.mxu0 0.0
    %916 = vmatpush.msra.mxu0 0.0
    %917 = vmatpush.msra.mxu0 0.0
    %918 = vmatpush.msra.mxu0 0.0
    %919 = vmatpush.msra.mxu0 0.0
    %920 = vmatpush.msra.mxu0 0.0
    %921 = vmatpush.msra.mxu0 0.0
    %922 = vmatpush.msra.mxu0 %v902
    %923 = vmatmul.f32.gmra.mxu0 %v905
    %v924 = vpop.f32.mrf.mxu0
    %v925 = vadd.f32 0.0, %v924
    %926 = vdwg.mxu0
    %v927 = vperm.slane %v816, 0
    %v929 = vsel %vm109, %v925, 0
    %931 = vmatpush.msra.mxu0 0.0
    %932 = vmatpush.msra.mxu0 0.0
    %933 = vmatpush.msra.mxu0 0.0
    %934 = vmatpush.msra.mxu0 0.0
    %935 = vmatpush.msra.mxu0 0.0
    %936 = vmatpush.msra.mxu0 0.0
    %937 = vmatpush.msra.mxu0 0.0
    %938 = vmatpush.msra.mxu0 0.0
    %939 = vmatpush.msra.mxu0 0.0
    %940 = vmatpush.msra.mxu0 0.0
    %941 = vmatpush.msra.mxu0 0.0
    %942 = vmatpush.msra.mxu0 0.0
    %943 = vmatpush.msra.mxu0 %v815
    %944 = vmatpush.msra.mxu0 %v814
    %945 = vmatpush.msra.mxu0 %v813
    %946 = vmatpush.msra.mxu0 %v812
    %947 = vmatmul.f32.gmra.mxu0 %v929
    %v948 = vpop.f32.mrf.mxu0
    %v949 = vadd.f32 %v927, %v948
    %950 = vdwg.mxu0
    %v951 = vadd.f32 %v804, %v949
    %s952 = scalar_lea.vmem [#allocation2], 256
    %v953 = vld [vmem:[%s952] sm:$0xff]
    %v954 = vld [vmem:[%s952 + $0x8] sm:$0xff]
    %v955 = vld [vmem:[%s952 + $0x10] sm:$0xff]
    %v956 = vld [vmem:[%s952 + $0x18] sm:$0xff]
    %v957 = vld [vmem:[#allocation9 + $0xe] sm:$0x1]
    %s958 = scalar_lea.vmem [#allocation2], 288
    %v959 = vld [vmem:[%s958] sm:$0xff]
    %v960 = vld [vmem:[%s958 + $0x8] sm:$0xff]
    %v961 = vld [vmem:[%s958 + $0x10] sm:$0xff]
    %v962 = vld [vmem:[%s958 + $0x18] sm:$0xff]
    %v963 = vld [vmem:[#allocation9 + $0xf] sm:$0x1]
    %v964 = vsel %vm109, %v951, 0.0
    %965 = vadd.xlane.f32.xlu0 %v964
    %v966 = vpop.xlane.xlu0 %965
    %v967 = vmul.f32 %v966, %v258
    %v968 = vsub.f32 %v951, %v967
    %v969 = vmul.f32 %v968, %v968
    %v970 = vsel %vm109, %v969, 0.0
    %971 = vadd.xlane.f32.xlu0 %v970
    %v972 = vpop.xlane.xlu0 %971
    %v973 = vmul.f32 %v972, %v258
    %v974 = vadd.f32 %v973, 1e-05
    %v975 = vrsqrt.pop %v974
    %v976 = vmul.f32 %v975, %v974
    %v977 = vmul.f32 %v976, %v975
    %v978 = vmul.f32 0.5, %v977
    %v979 = vsub.f32 1.5, %v978
    %v980 = vmul.f32 %v975, %v979
    %vm981 = vweird.f32 %v974
    %vm982 = vweird.f32 %v975
    %vm983 = vmor %vm981, %vm982
    %v984 = vsel %vm983, %v975, %v980
    %v985 = vmul.f32 %v968, %v984
    %v986 = vperm.slane %v957, 0
    %v988 = vsel %vm109, %v985, 0
    %990 = vmatpush.msra.mxu0 0.0
    %991 = vmatpush.msra.mxu0 0.0
    %992 = vmatpush.msra.mxu0 0.0
    %993 = vmatpush.msra.mxu0 0.0
    %994 = vmatpush.msra.mxu0 0.0
    %995 = vmatpush.msra.mxu0 0.0
    %996 = vmatpush.msra.mxu0 0.0
    %997 = vmatpush.msra.mxu0 0.0
    %998 = vmatpush.msra.mxu0 0.0
    %999 = vmatpush.msra.mxu0 0.0
    %1000 = vmatpush.msra.mxu0 0.0
    %1001 = vmatpush.msra.mxu0 0.0
    %1002 = vmatpush.msra.mxu0 %v956
    %1003 = vmatpush.msra.mxu0 %v955
    %1004 = vmatpush.msra.mxu0 %v954
    %1005 = vmatpush.msra.mxu0 %v953
    %1006 = vmatmul.f32.gmra.mxu0 %v988
    %v1007 = vpop.f32.mrf.mxu0
    %v1008 = vadd.f32 %v986, %v1007
    %1009 = vdwg.mxu0
    %v1010 = vmul.f32 %v1008, %v1008
    %v1011 = vmul.f32 %v1008, %v1010
    %v1012 = vmul.f32 %v1011, 0.044715
    %v1013 = vadd.f32 %v1008, %v1012
    %v1014 = vmul.f32 %v1013, 0.7978846
    %v1015 = vtanh.pop %v1014
    %v1016 = vadd.f32 %v1015, 1.0
    %v1017 = vmul.f32 %v1016, 0.5
    %v1018 = vmul.f32 %v1008, %v1017
    %v1019 = vperm.slane %v963, 0
    %v1021 = vsel %vm109, %v1018, 0
    %1023 = vmatpush.msra.mxu0 0.0
    %1024 = vmatpush.msra.mxu0 0.0
    %1025 = vmatpush.msra.mxu0 0.0
    %1026 = vmatpush.msra.mxu0 0.0
    %1027 = vmatpush.msra.mxu0 0.0
    %1028 = vmatpush.msra.mxu0 0.0
    %1029 = vmatpush.msra.mxu0 0.0
    %1030 = vmatpush.msra.mxu0 0.0
    %1031 = vmatpush.msra.mxu0 0.0
    %1032 = vmatpush.msra.mxu0 0.0
    %1033 = vmatpush.msra.mxu0 0.0
    %1034 = vmatpush.msra.mxu0 0.0
    %1035 = vmatpush.msra.mxu0 %v962
    %1036 = vmatpush.msra.mxu0 %v961
    %1037 = vmatpush.msra.mxu0 %v960
    %1038 = vmatpush.msra.mxu0 %v959
    %1039 = vmatmul.f32.gmra.mxu0 %v1021
    %v1040 = vpop.f32.mrf.mxu0
    %v1041 = vadd.f32 %v1019, %v1040
    %1042 = vdwg.mxu0
    %v1043 = vadd.f32 %v951, %v1041
    %v1044 = vsel %vm109, %v1043, 0.0
    %1045 = vadd.xlane.f32.xlu0 %v1044
    %v1046 = vpop.xlane.xlu0 %1045
    %v1047 = vmul.f32 %v1046, %v258
    %v1048 = vsub.f32 %v1043, %v1047
    %v1049 = vmul.f32 %v1048, %v1048
    %v1050 = vsel %vm109, %v1049, 0.0
    %1051 = vadd.xlane.f32.xlu0 %v1050
    %v1052 = vpop.xlane.xlu0 %1051
    %v1053 = vmul.f32 %v1052, %v258
    %v1054 = vadd.f32 %v1053, 1e-05
    %v1055 = vrsqrt.pop %v1054
    %v1056 = vmul.f32 %v1055, %v1054
    %v1057 = vmul.f32 %v1056, %v1055
    %v1058 = vmul.f32 0.5, %v1057
    %v1059 = vsub.f32 1.5, %v1058
    %v1060 = vmul.f32 %v1055, %v1059
    %vm1061 = vweird.f32 %v1054
    %vm1062 = vweird.f32 %v1055
    %vm1063 = vmor %vm1061, %vm1062
    %v1064 = vsel %vm1063, %v1055, %v1060
    %v1065 = vmul.f32 %v1048, %v1064
    %v1067 = vsel %vm109, %v1065, 0
    %1069 = vmatpush.msra.mxu0 0.0
    %1070 = vmatpush.msra.mxu0 0.0
    %1071 = vmatpush.msra.mxu0 0.0
    %1072 = vmatpush.msra.mxu0 0.0
    %1073 = vmatpush.msra.mxu0 0.0
    %1074 = vmatpush.msra.mxu0 0.0
    %1075 = vmatpush.msra.mxu0 0.0
    %1076 = vmatpush.msra.mxu0 0.0
    %1077 = vmatpush.msra.mxu0 0.0
    %1078 = vmatpush.msra.mxu0 0.0
    %1079 = vmatpush.msra.mxu0 0.0
    %1080 = vmatpush.msra.mxu0 0.0
    %1081 = vmatpush.msra.mxu0 %v569
    %1082 = vmatpush.msra.mxu0 %v568
    %1083 = vmatpush.msra.mxu0 %v567
    %1084 = vmatpush.msra.mxu0 %v566
    %1085 = vmatmul.f32.gmra.mxu0 %v1067
    %v1086 = vpop.f32.mrf.mxu0
    %v1087 = vadd.f32 %v599, %v1086
    %1088 = vdwg.mxu0
    %1090 = vrot.lane.b32.xlu0 %v1087, 96
    %v1091 = vpop.permute.xlu0 %1090
    %v1092 = vsel %vm109, %v1087, 0
    %v1094 = vsel %vm109, %v1091, 0
    %1096 = vmatpush.xpose.msra.mxu0 0.0
    %1097 = vmatpush.xpose.msra.mxu0 0.0
    %1098 = vmatpush.xpose.msra.mxu0 0.0
    %1099 = vmatpush.xpose.msra.mxu0 0.0
    %1100 = vmatpush.xpose.msra.mxu0 0.0
    %1101 = vmatpush.xpose.msra.mxu0 0.0
    %1102 = vmatpush.xpose.msra.mxu0 0.0
    %1103 = vmatpush.xpose.msra.mxu0 0.0
    %1104 = vmatpush.xpose.msra.mxu0 0.0
    %1105 = vmatpush.xpose.msra.mxu0 0.0
    %1106 = vmatpush.xpose.msra.mxu0 0.0
    %1107 = vmatpush.xpose.msra.mxu0 0.0
    %1108 = vmatpush.xpose.msra.mxu0 0.0
    %1109 = vmatpush.xpose.msra.mxu0 0.0
    %1110 = vmatpush.xpose.msra.mxu0 0.0
    %1111 = vmatpush.xpose.msra.mxu0 %v1094
    %1112 = vmatmul.f32.gmra.mxu0 %v1092
    %v1113 = vpop.f32.mrf.mxu0
    %v1114 = vadd.f32 %v228, %v1113
    %1115 = vdwg.mxu0
    %v1116 = vsel %vm650, %v1114, -inf
    %1117 = vmax.xlane.f32.xlu0 %v1116
    %v1118 = vpop.xlane.xlu0 %1117
    %v1119 = vsub.f32 %v1114, %v1118
    %v1120 = vmul.f32 %v1119, 1.442695
    %v1121 = vpow.pop %v1120
    %v1122 = vsel %vm650, %v1121, 0.0
    %1123 = vadd.xlane.f32.xlu0 %v1122
    %v1124 = vpop.xlane.xlu0 %1123
    %v1125 = vrcp.pop %v1124
    %v1126 = vmul.f32 %v1121, %v1125
    %1127 = vrot.lane.b32.xlu0 %v1087, 64
    %v1128 = vpop.permute.xlu0 %1127
    %v1131 = vsel %vm650, %v1126, 0
    %1133 = vmatpush.msra.mxu0 0.0
    %1134 = vmatpush.msra.mxu0 0.0
    %1135 = vmatpush.msra.mxu0 0.0
    %1136 = vmatpush.msra.mxu0 0.0
    %1137 = vmatpush.msra.mxu0 0.0
    %1138 = vmatpush.msra.mxu0 0.0
    %1139 = vmatpush.msra.mxu0 0.0
    %1140 = vmatpush.msra.mxu0 0.0
    %1141 = vmatpush.msra.mxu0 0.0
    %1142 = vmatpush.msra.mxu0 0.0
    %1143 = vmatpush.msra.mxu0 0.0
    %1144 = vmatpush.msra.mxu0 0.0
    %1145 = vmatpush.msra.mxu0 0.0
    %1146 = vmatpush.msra.mxu0 0.0
    %1147 = vmatpush.msra.mxu0 0.0
    %1148 = vmatpush.msra.mxu0 %v1128
    %1149 = vmatmul.f32.gmra.mxu0 %v1131
    %v1150 = vpop.f32.mrf.mxu0
    %v1151 = vadd.f32 0.0, %v1150
    %1152 = vdwg.mxu0
    %v1154 = vsel %vm109, %v1151, 0
    %1156 = vmatpush.msra.mxu0 0.0
    %1157 = vmatpush.msra.mxu0 0.0
    %1158 = vmatpush.msra.mxu0 0.0
    %1159 = vmatpush.msra.mxu0 0.0
    %1160 = vmatpush.msra.mxu0 0.0
    %1161 = vmatpush.msra.mxu0 0.0
    %1162 = vmatpush.msra.mxu0 0.0
    %1163 = vmatpush.msra.mxu0 0.0
    %1164 = vmatpush.msra.mxu0 0.0
    %1165 = vmatpush.msra.mxu0 0.0
    %1166 = vmatpush.msra.mxu0 0.0
    %1167 = vmatpush.msra.mxu0 0.0
    %1168 = vmatpush.msra.mxu0 %v575
    %1169 = vmatpush.msra.mxu0 %v574
    %1170 = vmatpush.msra.mxu0 %v573
    %1171 = vmatpush.msra.mxu0 %v572
    %1172 = vmatmul.f32.gmra.mxu0 %v1154
    %v1173 = vpop.f32.mrf.mxu0
    %v1174 = vadd.f32 %v688, %v1173
    %1175 = vdwg.mxu0
    %v1176 = vadd.f32 %v1043, %v1174
    %v1177 = vsel %vm109, %v1176, 0.0
    %1178 = vadd.xlane.f32.xlu0 %v1177
    %v1179 = vpop.xlane.xlu0 %1178
    %v1180 = vmul.f32 %v1179, %v258
    %v1181 = vsub.f32 %v1176, %v1180
    %v1182 = vmul.f32 %v1181, %v1181
    %v1183 = vsel %vm109, %v1182, 0.0
    %1184 = vadd.xlane.f32.xlu0 %v1183
    %v1185 = vpop.xlane.xlu0 %1184
    %v1186 = vmul.f32 %v1185, %v258
    %v1187 = vadd.f32 %v1186, 1e-05
    %v1188 = vrsqrt.pop %v1187
    %v1189 = vmul.f32 %v1188, %v1187
    %v1190 = vmul.f32 %v1189, %v1188
    %v1191 = vmul.f32 0.5, %v1190
    %v1192 = vsub.f32 1.5, %v1191
    %v1193 = vmul.f32 %v1188, %v1192
    %vm1194 = vweird.f32 %v1187
    %vm1195 = vweird.f32 %v1188
    %vm1196 = vmor %vm1194, %vm1195
    %v1197 = vsel %vm1196, %v1188, %v1193
    %v1198 = vmul.f32 %v1181, %v1197
    %v1200 = vsel %vm109, %v1198, 0
    %1202 = vmatpush.msra.mxu0 0.0
    %1203 = vmatpush.msra.mxu0 0.0
    %1204 = vmatpush.msra.mxu0 0.0
    %1205 = vmatpush.msra.mxu0 0.0
    %1206 = vmatpush.msra.mxu0 0.0
    %1207 = vmatpush.msra.mxu0 0.0
    %1208 = vmatpush.msra.mxu0 0.0
    %1209 = vmatpush.msra.mxu0 0.0
    %1210 = vmatpush.msra.mxu0 0.0
    %1211 = vmatpush.msra.mxu0 0.0
    %1212 = vmatpush.msra.mxu0 0.0
    %1213 = vmatpush.msra.mxu0 0.0
    %1214 = vmatpush.msra.mxu0 %v717
    %1215 = vmatpush.msra.mxu0 %v716
    %1216 = vmatpush.msra.mxu0 %v715
    %1217 = vmatpush.msra.mxu0 %v714
    %1218 = vmatmul.f32.gmra.mxu0 %v1200
    %v1219 = vpop.f32.mrf.mxu0
    %v1220 = vadd.f32 %v747, %v1219
    %1221 = vdwg.mxu0
    %v1222 = vmul.f32 %v1220, %v1220
    %v1223 = vmul.f32 %v1220, %v1222
    %v1224 = vmul.f32 %v1223, 0.044715
    %v1225 = vadd.f32 %v1220, %v1224
    %v1226 = vmul.f32 %v1225, 0.7978846
    %v1227 = vtanh.pop %v1226
    %v1228 = vadd.f32 %v1227, 1.0
    %v1229 = vmul.f32 %v1228, 0.5
    %v1230 = vmul.f32 %v1220, %v1229
    %v1232 = vsel %vm109, %v1230, 0
    %1234 = vmatpush.msra.mxu0 0.0
    %1235 = vmatpush.msra.mxu0 0.0
    %1236 = vmatpush.msra.mxu0 0.0
    %1237 = vmatpush.msra.mxu0 0.0
    %1238 = vmatpush.msra.mxu0 0.0
    %1239 = vmatpush.msra.mxu0 0.0
    %1240 = vmatpush.msra.mxu0 0.0
    %1241 = vmatpush.msra.mxu0 0.0
    %1242 = vmatpush.msra.mxu0 0.0
    %1243 = vmatpush.msra.mxu0 0.0
    %1244 = vmatpush.msra.mxu0 0.0
    %1245 = vmatpush.msra.mxu0 0.0
    %1246 = vmatpush.msra.mxu0 %v723
    %1247 = vmatpush.msra.mxu0 %v722
    %1248 = vmatpush.msra.mxu0 %v721
    %1249 = vmatpush.msra.mxu0 %v720
    %1250 = vmatmul.f32.gmra.mxu0 %v1232
    %v1251 = vpop.f32.mrf.mxu0
    %v1252 = vadd.f32 %v780, %v1251
    %1253 = vdwg.mxu0
    %v1254 = vadd.f32 %v1176, %v1252
    %v1255 = vsel %vm109, %v1254, 0.0
    %1256 = vadd.xlane.f32.xlu0 %v1255
    %v1257 = vpop.xlane.xlu0 %1256
    %v1258 = vmul.f32 %v1257, %v258
    %v1259 = vsub.f32 %v1254, %v1258
    %v1260 = vmul.f32 %v1259, %v1259
    %v1261 = vsel %vm109, %v1260, 0.0
    %1262 = vadd.xlane.f32.xlu0 %v1261
    %v1263 = vpop.xlane.xlu0 %1262
    %v1264 = vmul.f32 %v1263, %v258
    %v1265 = vadd.f32 %v1264, 1e-05
    %v1266 = vrsqrt.pop %v1265
    %v1267 = vmul.f32 %v1266, %v1265
    %v1268 = vmul.f32 %v1267, %v1266
    %v1269 = vmul.f32 0.5, %v1268
    %v1270 = vsub.f32 1.5, %v1269
    %v1271 = vmul.f32 %v1266, %v1270
    %vm1272 = vweird.f32 %v1265
    %vm1273 = vweird.f32 %v1266
    %vm1274 = vmor %vm1272, %vm1273
    %v1275 = vsel %vm1274, %v1266, %v1271
    %v1276 = vmul.f32 %v1259, %v1275
    %v1278 = vsel %vm109, %v1276, 0
    %1280 = vmatpush.msra.mxu0 0.0
    %1281 = vmatpush.msra.mxu0 0.0
    %1282 = vmatpush.msra.mxu0 0.0
    %1283 = vmatpush.msra.mxu0 0.0
    %1284 = vmatpush.msra.mxu0 0.0
    %1285 = vmatpush.msra.mxu0 0.0
    %1286 = vmatpush.msra.mxu0 0.0
    %1287 = vmatpush.msra.mxu0 0.0
    %1288 = vmatpush.msra.mxu0 0.0
    %1289 = vmatpush.msra.mxu0 0.0
    %1290 = vmatpush.msra.mxu0 0.0
    %1291 = vmatpush.msra.mxu0 0.0
    %1292 = vmatpush.msra.mxu0 %v809
    %1293 = vmatpush.msra.mxu0 %v808
    %1294 = vmatpush.msra.mxu0 %v807
    %1295 = vmatpush.msra.mxu0 %v806
    %1296 = vmatmul.f32.gmra.mxu0 %v1278
    %v1297 = vpop.f32.mrf.mxu0
    %v1298 = vadd.f32 %v839, %v1297
    %1299 = vdwg.mxu0
    %1301 = vrot.lane.b32.xlu0 %v1298, 96
    %v1302 = vpop.permute.xlu0 %1301
    %v1303 = vsel %vm109, %v1298, 0
    %v1305 = vsel %vm109, %v1302, 0
    %1307 = vmatpush.xpose.msra.mxu0 0.0
    %1308 = vmatpush.xpose.msra.mxu0 0.0
    %1309 = vmatpush.xpose.msra.mxu0 0.0
    %1310 = vmatpush.xpose.msra.mxu0 0.0
    %1311 = vmatpush.xpose.msra.mxu0 0.0
    %1312 = vmatpush.xpose.msra.mxu0 0.0
    %1313 = vmatpush.xpose.msra.mxu0 0.0
    %1314 = vmatpush.xpose.msra.mxu0 0.0
    %1315 = vmatpush.xpose.msra.mxu0 0.0
    %1316 = vmatpush.xpose.msra.mxu0 0.0
    %1317 = vmatpush.xpose.msra.mxu0 0.0
    %1318 = vmatpush.xpose.msra.mxu0 0.0
    %1319 = vmatpush.xpose.msra.mxu0 0.0
    %1320 = vmatpush.xpose.msra.mxu0 0.0
    %1321 = vmatpush.xpose.msra.mxu0 0.0
    %1322 = vmatpush.xpose.msra.mxu0 %v1305
    %1323 = vmatmul.f32.gmra.mxu0 %v1303
    %v1324 = vpop.f32.mrf.mxu0
    %v1325 = vadd.f32 %v228, %v1324
    %1326 = vdwg.mxu0
    %v1327 = vsel %vm650, %v1325, -inf
    %1328 = vmax.xlane.f32.xlu0 %v1327
    %v1329 = vpop.xlane.xlu0 %1328
    %v1330 = vsub.f32 %v1325, %v1329
    %v1331 = vmul.f32 %v1330, 1.442695
    %v1332 = vpow.pop %v1331
    %v1333 = vsel %vm650, %v1332, 0.0
    %1334 = vadd.xlane.f32.xlu0 %v1333
    %v1335 = vpop.xlane.xlu0 %1334
    %v1336 = vrcp.pop %v1335
    %v1337 = vmul.f32 %v1332, %v1336
    %1338 = vrot.lane.b32.xlu0 %v1298, 64
    %v1339 = vpop.permute.xlu0 %1338
    %v1342 = vsel %vm650, %v1337, 0
    %1344 = vmatpush.msra.mxu0 0.0
    %1345 = vmatpush.msra.mxu0 0.0
    %1346 = vmatpush.msra.mxu0 0.0
    %1347 = vmatpush.msra.mxu0 0.0
    %1348 = vmatpush.msra.mxu0 0.0
    %1349 = vmatpush.msra.mxu0 0.0
    %1350 = vmatpush.msra.mxu0 0.0
    %1351 = vmatpush.msra.mxu0 0.0
    %1352 = vmatpush.msra.mxu0 0.0
    %1353 = vmatpush.msra.mxu0 0.0
    %1354 = vmatpush.msra.mxu0 0.0
    %1355 = vmatpush.msra.mxu0 0.0
    %1356 = vmatpush.msra.mxu0 0.0
    %1357 = vmatpush.msra.mxu0 0.0
    %1358 = vmatpush.msra.mxu0 0.0
    %1359 = vmatpush.msra.mxu0 %v1339
    %1360 = vmatmul.f32.gmra.mxu0 %v1342
    %v1361 = vpop.f32.mrf.mxu0
    %v1362 = vadd.f32 0.0, %v1361
    %1363 = vdwg.mxu0
    %v1365 = vsel %vm109, %v1362, 0
    %1367 = vmatpush.msra.mxu0 0.0
    %1368 = vmatpush.msra.mxu0 0.0
    %1369 = vmatpush.msra.mxu0 0.0
    %1370 = vmatpush.msra.mxu0 0.0
    %1371 = vmatpush.msra.mxu0 0.0
    %1372 = vmatpush.msra.mxu0 0.0
    %1373 = vmatpush.msra.mxu0 0.0
    %1374 = vmatpush.msra.mxu0 0.0
    %1375 = vmatpush.msra.mxu0 0.0
    %1376 = vmatpush.msra.mxu0 0.0
    %1377 = vmatpush.msra.mxu0 0.0
    %1378 = vmatpush.msra.mxu0 0.0
    %1379 = vmatpush.msra.mxu0 %v815
    %1380 = vmatpush.msra.mxu0 %v814
    %1381 = vmatpush.msra.mxu0 %v813
    %1382 = vmatpush.msra.mxu0 %v812
    %1383 = vmatmul.f32.gmra.mxu0 %v1365
    %v1384 = vpop.f32.mrf.mxu0
    %v1385 = vadd.f32 %v927, %v1384
    %1386 = vdwg.mxu0
    %v1387 = vadd.f32 %v1254, %v1385
    %v1388 = vsel %vm109, %v1387, 0.0
    %1389 = vadd.xlane.f32.xlu0 %v1388
    %v1390 = vpop.xlane.xlu0 %1389
    %v1391 = vmul.f32 %v1390, %v258
    %v1392 = vsub.f32 %v1387, %v1391
    %v1393 = vmul.f32 %v1392, %v1392
    %v1394 = vsel %vm109, %v1393, 0.0
    %1395 = vadd.xlane.f32.xlu0 %v1394
    %v1396 = vpop.xlane.xlu0 %1395
    %v1397 = vmul.f32 %v1396, %v258
    %v1398 = vadd.f32 %v1397, 1e-05
    %v1399 = vrsqrt.pop %v1398
    %v1400 = vmul.f32 %v1399, %v1398
    %v1401 = vmul.f32 %v1400, %v1399
    %v1402 = vmul.f32 0.5, %v1401
    %v1403 = vsub.f32 1.5, %v1402
    %v1404 = vmul.f32 %v1399, %v1403
    %vm1405 = vweird.f32 %v1398
    %vm1406 = vweird.f32 %v1399
    %vm1407 = vmor %vm1405, %vm1406
    %v1408 = vsel %vm1407, %v1399, %v1404
    %v1409 = vmul.f32 %v1392, %v1408
    %v1411 = vsel %vm109, %v1409, 0
    %1413 = vmatpush.msra.mxu0 0.0
    %1414 = vmatpush.msra.mxu0 0.0
    %1415 = vmatpush.msra.mxu0 0.0
    %1416 = vmatpush.msra.mxu0 0.0
    %1417 = vmatpush.msra.mxu0 0.0
    %1418 = vmatpush.msra.mxu0 0.0
    %1419 = vmatpush.msra.mxu0 0.0
    %1420 = vmatpush.msra.mxu0 0.0
    %1421 = vmatpush.msra.mxu0 0.0
    %1422 = vmatpush.msra.mxu0 0.0
    %1423 = vmatpush.msra.mxu0 0.0
    %1424 = vmatpush.msra.mxu0 0.0
    %1425 = vmatpush.msra.mxu0 %v956
    %1426 = vmatpush.msra.mxu0 %v955
    %1427 = vmatpush.msra.mxu0 %v954
    %1428 = vmatpush.msra.mxu0 %v953
    %1429 = vmatmul.f32.gmra.mxu0 %v1411
    %v1430 = vpop.f32.mrf.mxu0
    %v1431 = vadd.f32 %v986, %v1430
    %1432 = vdwg.mxu0
    %v1433 = vmul.f32 %v1431, %v1431
    %v1434 = vmul.f32 %v1431, %v1433
    %v1435 = vmul.f32 %v1434, 0.044715
    %v1436 = vadd.f32 %v1431, %v1435
    %v1437 = vmul.f32 %v1436, 0.7978846
    %v1438 = vtanh.pop %v1437
    %v1439 = vadd.f32 %v1438, 1.0
    %v1440 = vmul.f32 %v1439, 0.5
    %v1441 = vmul.f32 %v1431, %v1440
    %v1443 = vsel %vm109, %v1441, 0
    %1445 = vmatpush.msra.mxu0 0.0
    %1446 = vmatpush.msra.mxu0 0.0
    %1447 = vmatpush.msra.mxu0 0.0
    %1448 = vmatpush.msra.mxu0 0.0
    %1449 = vmatpush.msra.mxu0 0.0
    %1450 = vmatpush.msra.mxu0 0.0
    %1451 = vmatpush.msra.mxu0 0.0
    %1452 = vmatpush.msra.mxu0 0.0
    %1453 = vmatpush.msra.mxu0 0.0
    %1454 = vmatpush.msra.mxu0 0.0
    %1455 = vmatpush.msra.mxu0 0.0
    %1456 = vmatpush.msra.mxu0 0.0
    %1457 = vmatpush.msra.mxu0 %v962
    %1458 = vmatpush.msra.mxu0 %v961
    %1459 = vmatpush.msra.mxu0 %v960
    %1460 = vmatpush.msra.mxu0 %v959
    %1461 = vmatmul.f32.gmra.mxu0 %v1443
    %v1462 = vpop.f32.mrf.mxu0
    %v1463 = vadd.f32 %v1019, %v1462
    %1464 = vdwg.mxu0
    %v1465 = vadd.f32 %v1387, %v1463
    %s1466 = scalar_lea.vmem [#allocation2], 320
    %v1467 = vld [vmem:[%s1466] sm:$0xff]
    %v1468 = vld [vmem:[%s1466 + $0x8] sm:$0xff]
    %v1469 = vld [vmem:[%s1466 + $0x10] sm:$0xff]
    %v1470 = vld [vmem:[%s1466 + $0x18] sm:$0xff]
    %v1471 = vld [vmem:[#allocation9 + $0x10] sm:$0x1]
    %s1472 = scalar_lea.vmem [#allocation4], 64
    %v1473 = vld [vmem:[%s1472] sm:$0xff]
    %v1474 = vld [vmem:[%s1472 + $0x8] sm:$0xff]
    %v1475 = vld [vmem:[%s1472 + $0x10] sm:$0xff]
    %v1476 = vld [vmem:[%s1472 + $0x18] sm:$0xff]
    %v1477 = vld [vmem:[#allocation9 + $0x11] sm:$0x1]
    %s1478 = scalar_lea.vmem [#allocation2], 352
    %v1479 = vld [vmem:[%s1478] sm:$0xff]
    %v1480 = vld [vmem:[%s1478 + $0x8] sm:$0xff]
    %v1481 = vld [vmem:[%s1478 + $0x10] sm:$0xff]
    %v1482 = vld [vmem:[%s1478 + $0x18] sm:$0xff]
    %v1483 = vld [vmem:[#allocation9 + $0x12] sm:$0x1]
    %v1484 = vsel %vm109, %v218, 0.0
    %1485 = vadd.xlane.f32.xlu0 %v1484
    %v1486 = vpop.xlane.xlu0 %1485
    %v1487 = vsel %vm305, %v221, 0.0
    %1488 = vadd.xlane.f32.xlu0 %v1487
    %v1489 = vpop.xlane.xlu0 %1488
    %v1490 = vmul.f32 %v1486, %v258
    %v1491 = vmul.f32 %v1489, %v258
    %v1492 = vsub.f32 %v218, %v1490
    %v1493 = vsub.f32 %v221, %v1491
    %v1494 = vmul.f32 %v1492, %v1492
    %v1495 = vmul.f32 %v1493, %v1493
    %v1496 = vsel %vm109, %v1494, 0.0
    %1497 = vadd.xlane.f32.xlu0 %v1496
    %v1498 = vpop.xlane.xlu0 %1497
    %v1499 = vsel %vm305, %v1495, 0.0
    %1500 = vadd.xlane.f32.xlu0 %v1499
    %v1501 = vpop.xlane.xlu0 %1500
    %v1502 = vmul.f32 %v1498, %v258
    %v1503 = vmul.f32 %v1501, %v258
    %v1504 = vadd.f32 %v1502, 1e-05
    %v1505 = vadd.f32 %v1503, 1e-05
    %v1506 = vrsqrt.pop %v1504
    %v1507 = vmul.f32 %v1506, %v1504
    %v1508 = vmul.f32 %v1507, %v1506
    %v1509 = vmul.f32 0.5, %v1508
    %v1510 = vsub.f32 1.5, %v1509
    %v1511 = vmul.f32 %v1506, %v1510
    %vm1512 = vweird.f32 %v1504
    %vm1513 = vweird.f32 %v1506
    %vm1514 = vmor %vm1512, %vm1513
    %v1515 = vsel %vm1514, %v1506, %v1511
    %v1516 = vrsqrt.pop %v1505
    %v1517 = vmul.f32 %v1516, %v1505
    %v1518 = vmul.f32 %v1517, %v1516
    %v1519 = vmul.f32 0.5, %v1518
    %v1520 = vsub.f32 1.5, %v1519
    %v1521 = vmul.f32 %v1516, %v1520
    %vm1522 = vweird.f32 %v1505
    %vm1523 = vweird.f32 %v1516
    %vm1524 = vmor %vm1522, %vm1523
    %v1525 = vsel %vm1524, %v1516, %v1521
    %v1526 = vmul.f32 %v1492, %v1515
    %v1527 = vmul.f32 %v1493, %v1525
    %v1528 = vperm.slane %v1471, 0
    %v1530 = vsel %vm109, %v1526, 0
    %v1533 = vsel %vm109, %v1527, 0
    %1535 = vmatpush.msra.mxu0 0.0
    %1536 = vmatpush.msra.mxu0 0.0
    %1537 = vmatpush.msra.mxu0 0.0
    %1538 = vmatpush.msra.mxu0 0.0
    %1539 = vmatpush.msra.mxu0 0.0
    %1540 = vmatpush.msra.mxu0 0.0
    %1541 = vmatpush.msra.mxu0 0.0
    %1542 = vmatpush.msra.mxu0 0.0
    %1543 = vmatpush.msra.mxu0 0.0
    %1544 = vmatpush.msra.mxu0 0.0
    %1545 = vmatpush.msra.mxu0 0.0
    %1546 = vmatpush.msra.mxu0 0.0
    %1547 = vmatpush.msra.mxu0 %v1470
    %1548 = vmatpush.msra.mxu0 %v1469
    %1549 = vmatpush.msra.mxu0 %v1468
    %1550 = vmatpush.msra.mxu0 %v1467
    %1551 = vmatmul.f32.gmra.mxu0 %v1530
    %v1552 = vpop.f32.mrf.mxu0
    %v1553 = vadd.f32 %v1528, %v1552
    %1554 = vmatmul.f32.gmra.mxu0 %v1533
    %v1555 = vpop.f32.mrf.mxu0
    %v1556 = vadd.f32 %v1528, %v1555
    %1557 = vdwg.mxu0
    %v1558 = vsel %vm109, %v1465, 0.0
    %1559 = vadd.xlane.f32.xlu0 %v1558
    %v1560 = vpop.xlane.xlu0 %1559
    %v1561 = vmul.f32 %v1560, %v258
    %v1562 = vsub.f32 %v1465, %v1561
    %v1563 = vmul.f32 %v1562, %v1562
    %v1564 = vsel %vm109, %v1563, 0.0
    %1565 = vadd.xlane.f32.xlu0 %v1564
    %v1566 = vpop.xlane.xlu0 %1565
    %v1567 = vmul.f32 %v1566, %v258
    %v1568 = vadd.f32 %v1567, 1e-05
    %v1569 = vrsqrt.pop %v1568
    %v1570 = vmul.f32 %v1569, %v1568
    %v1571 = vmul.f32 %v1570, %v1569
    %v1572 = vmul.f32 0.5, %v1571
    %v1573 = vsub.f32 1.5, %v1572
    %v1574 = vmul.f32 %v1569, %v1573
    %vm1575 = vweird.f32 %v1568
    %vm1576 = vweird.f32 %v1569
    %vm1577 = vmor %vm1575, %vm1576
    %v1578 = vsel %vm1577, %v1569, %v1574
    %v1579 = vmul.f32 %v1562, %v1578
    %v1580 = vperm.slane %v1477, 0
    %v1582 = vsel %vm109, %v1579, 0
    %1584 = vmatpush.msra.mxu0 0.0
    %1585 = vmatpush.msra.mxu0 0.0
    %1586 = vmatpush.msra.mxu0 0.0
    %1587 = vmatpush.msra.mxu0 0.0
    %1588 = vmatpush.msra.mxu0 0.0
    %1589 = vmatpush.msra.mxu0 0.0
    %1590 = vmatpush.msra.mxu0 0.0
    %1591 = vmatpush.msra.mxu0 0.0
    %1592 = vmatpush.msra.mxu0 0.0
    %1593 = vmatpush.msra.mxu0 0.0
    %1594 = vmatpush.msra.mxu0 0.0
    %1595 = vmatpush.msra.mxu0 0.0
    %1596 = vmatpush.msra.mxu0 %v1476
    %1597 = vmatpush.msra.mxu0 %v1475
    %1598 = vmatpush.msra.mxu0 %v1474
    %1599 = vmatpush.msra.mxu0 %v1473
    %1600 = vmatmul.f32.gmra.mxu0 %v1582
    %v1601 = vpop.f32.mrf.mxu0
    %v1602 = vadd.f32 %v1580, %v1601
    %1603 = vdwg.mxu0
    %v1605 = vsel %vm109, %v1553, 0
    %v1608 = vsel %vm109, %v1556, 0
    %v1611 = vsel %vm109, %v1602, 0
    %1613 = vmatpush.xpose.msra.mxu0 0.0
    %1614 = vmatpush.xpose.msra.mxu0 0.0
    %1615 = vmatpush.xpose.msra.mxu0 0.0
    %1616 = vmatpush.xpose.msra.mxu0 0.0
    %1617 = vmatpush.xpose.msra.mxu0 0.0
    %1618 = vmatpush.xpose.msra.mxu0 0.0
    %1619 = vmatpush.xpose.msra.mxu0 0.0
    %1620 = vmatpush.xpose.msra.mxu0 0.0
    %1621 = vmatpush.xpose.msra.mxu0 0.0
    %1622 = vmatpush.xpose.msra.mxu0 0.0
    %1623 = vmatpush.xpose.msra.mxu0 0.0
    %1624 = vmatpush.xpose.msra.mxu0 0.0
    %1625 = vmatpush.xpose.msra.mxu0 0.0
    %1626 = vmatpush.xpose.msra.mxu0 0.0
    %1627 = vmatpush.xpose.msra.mxu0 0.0
    %1628 = vmatpush.xpose.msra.mxu0 %v1611
    %1629 = vmatmul.f32.gmra.mxu0 %v1605
    %v1630 = vpop.f32.mrf.mxu0
    %v1631 = vadd.f32 %v229, %v1630
    %1632 = vmatmul.f32.gmra.mxu0 %v1608
    %v1633 = vpop.f32.mrf.mxu0
    %v1634 = vadd.f32 %v230, %v1633
    %1635 = vdwg.mxu0
    %v1636 = vsel %vm650, %v1631, -inf
    %1637 = vmax.xlane.f32.xlu0 %v1636
    %v1638 = vpop.xlane.xlu0 %1637
    %vm1639 = vcmask 58368
    %v1640 = vsel %vm1639, %v1634, -inf
    %1641 = vmax.xlane.f32.xlu0 %v1640
    %v1642 = vpop.xlane.xlu0 %1641
    %v1643 = vsub.f32 %v1631, %v1638
    %v1644 = vsub.f32 %v1634, %v1642
    %v1645 = vmul.f32 %v1643, 1.442695
    %v1646 = vpow.pop %v1645
    %v1647 = vmul.f32 %v1644, 1.442695
    %v1648 = vpow.pop %v1647
    %v1649 = vsel %vm650, %v1646, 0.0
    %1650 = vadd.xlane.f32.xlu0 %v1649
    %v1651 = vpop.xlane.xlu0 %1650
    %v1652 = vsel %vm1639, %v1648, 0.0
    %1653 = vadd.xlane.f32.xlu0 %v1652
    %v1654 = vpop.xlane.xlu0 %1653
    %v1655 = vrcp.pop %v1651
    %v1656 = vrcp.pop %v1654
    %v1657 = vmul.f32 %v1646, %v1655
    %v1658 = vmul.f32 %v1648, %v1656
    %1659 = vrot.lane.b32.xlu0 %v1602, 96
    %v1660 = vpop.permute.xlu0 %1659
    %v1663 = vsel %vm650, %v1657, 0
    %v1666 = vsel %vm650, %v1658, 0
    %1668 = vmatpush.msra.mxu0 0.0
    %1669 = vmatpush.msra.mxu0 0.0
    %1670 = vmatpush.msra.mxu0 0.0
    %1671 = vmatpush.msra.mxu0 0.0
    %1672 = vmatpush.msra.mxu0 0.0
    %1673 = vmatpush.msra.mxu0 0.0
    %1674 = vmatpush.msra.mxu0 0.0
    %1675 = vmatpush.msra.mxu0 0.0
    %1676 = vmatpush.msra.mxu0 0.0
    %1677 = vmatpush.msra.mxu0 0.0
    %1678 = vmatpush.msra.mxu0 0.0
    %1679 = vmatpush.msra.mxu0 0.0
    %1680 = vmatpush.msra.mxu0 0.0
    %1681 = vmatpush.msra.mxu0 0.0
    %1682 = vmatpush.msra.mxu0 0.0
    %1683 = vmatpush.msra.mxu0 %v1660
    %1684 = vmatmul.f32.gmra.mxu0 %v1663
    %v1685 = vpop.f32.mrf.mxu0
    %v1686 = vadd.f32 0.0, %v1685
    %1687 = vmatmul.f32.gmra.mxu0 %v1666
    %v1688 = vpop.f32.mrf.mxu0
    %v1689 = vadd.f32 0.0, %v1688
    %1690 = vdwg.mxu0
    %v1691 = vperm.slane %v1483, 0
    %v1693 = vsel %vm109, %v1686, 0
    %v1696 = vsel %vm109, %v1689, 0
    %1698 = vmatpush.msra.mxu0 0.0
    %1699 = vmatpush.msra.mxu0 0.0
    %1700 = vmatpush.msra.mxu0 0.0
    %1701 = vmatpush.msra.mxu0 0.0
    %1702 = vmatpush.msra.mxu0 0.0
    %1703 = vmatpush.msra.mxu0 0.0
    %1704 = vmatpush.msra.mxu0 0.0
    %1705 = vmatpush.msra.mxu0 0.0
    %1706 = vmatpush.msra.mxu0 0.0
    %1707 = vmatpush.msra.mxu0 0.0
    %1708 = vmatpush.msra.mxu0 0.0
    %1709 = vmatpush.msra.mxu0 0.0
    %1710 = vmatpush.msra.mxu0 %v1482
    %1711 = vmatpush.msra.mxu0 %v1481
    %1712 = vmatpush.msra.mxu0 %v1480
    %1713 = vmatpush.msra.mxu0 %v1479
    %1714 = vmatmul.f32.gmra.mxu0 %v1693
    %v1715 = vpop.f32.mrf.mxu0
    %v1716 = vadd.f32 %v1691, %v1715
    %1717 = vmatmul.f32.gmra.mxu0 %v1696
    %v1718 = vpop.f32.mrf.mxu0
    %v1719 = vadd.f32 %v1691, %v1718
    %1720 = vdwg.mxu0
    %s1721 = scalar_lea.vmem [#allocation2], 384
    %v1722 = vld [vmem:[%s1721] sm:$0xff]
    %v1723 = vld [vmem:[%s1721 + $0x8] sm:$0xff]
    %v1724 = vld [vmem:[%s1721 + $0x10] sm:$0xff]
    %v1725 = vld [vmem:[%s1721 + $0x18] sm:$0xff]
    %s1726 = scalar_lea.vmem [#allocation2], 416
    %v1727 = vld [vmem:[%s1726] sm:$0xff]
    %v1728 = vld [vmem:[%s1726 + $0x8] sm:$0xff]
    %v1729 = vld [vmem:[%s1726 + $0x10] sm:$0xff]
    %v1730 = vld [vmem:[%s1726 + $0x18] sm:$0xff]
    %v1732 = vsel %vm109, %v1716, 0
    %v1735 = vsel %vm109, %v1719, 0
    %1737 = vmatpush.msra.mxu0 0.0
    %1738 = vmatpush.msra.mxu0 0.0
    %1739 = vmatpush.msra.mxu0 0.0
    %1740 = vmatpush.msra.mxu0 0.0
    %1741 = vmatpush.msra.mxu0 0.0
    %1742 = vmatpush.msra.mxu0 0.0
    %1743 = vmatpush.msra.mxu0 0.0
    %1744 = vmatpush.msra.mxu0 0.0
    %1745 = vmatpush.msra.mxu0 0.0
    %1746 = vmatpush.msra.mxu0 0.0
    %1747 = vmatpush.msra.mxu0 0.0
    %1748 = vmatpush.msra.mxu0 0.0
    %1749 = vmatpush.msra.mxu0 %v1730
    %1750 = vmatpush.msra.mxu0 %v1729
    %1751 = vmatpush.msra.mxu0 %v1728
    %1752 = vmatpush.msra.mxu0 %v1727
    %1753 = vmatmul.f32.gmra.mxu0 %v1732
    %v1754 = vpop.f32.mrf.mxu0
    %v1755 = vadd.f32 0.0, %v1754
    %1756 = vmatmul.f32.gmra.mxu0 %v1735
    %v1757 = vpop.f32.mrf.mxu0
    %v1758 = vadd.f32 0.0, %v1757
    %1759 = vdwg.mxu0
    %1762 = vrot.lane.b32.xlu0 %v218, 96
    %v1763 = vpop.permute.xlu0 %1762
    %1764 = vrot.lane.b32.xlu0 %v221, 96
    %v1765 = vpop.permute.xlu0 %1764
    %v1766 = vsel %vm109, %v1763, 0
    %v1768 = vsel %vm109, %v1765, 0
    %1770 = vmatpush.msra.mxu0 0.0
    %1771 = vmatpush.msra.mxu0 0.0
    %1772 = vmatpush.msra.mxu0 0.0
    %1773 = vmatpush.msra.mxu0 0.0
    %1774 = vmatpush.msra.mxu0 0.0
    %1775 = vmatpush.msra.mxu0 0.0
    %1776 = vmatpush.msra.mxu0 0.0
    %1777 = vmatpush.msra.mxu0 0.0
    %1778 = vmatpush.msra.mxu0 0.0
    %1779 = vmatpush.msra.mxu0 0.0
    %1780 = vmatpush.msra.mxu0 0.0
    %1781 = vmatpush.msra.mxu0 0.0
    %1782 = vmatpush.msra.mxu0 %v1725
    %1783 = vmatpush.msra.mxu0 %v1724
    %1784 = vmatpush.msra.mxu0 %v1723
    %1785 = vmatpush.msra.mxu0 %v1722
    %1786 = vmatmul.f32.gmra.mxu0 %v1766
    %v1787 = vpop.f32.mrf.mxu0
    %v1788 = vadd.f32 %v1755, %v1787
    %1789 = vmatmul.f32.gmra.mxu0 %v1768
    %v1790 = vpop.f32.mrf.mxu0
    %v1791 = vadd.f32 %v1758, %v1790
    %1792 = vdwg.mxu0
    %v1793 = vld [vmem:[#allocation9 + $0x13] sm:$0x1]
    %v1794 = vperm.slane %v1793, 0
    %v1795 = vadd.f32 %v1788, %v1794
    %v1796 = vadd.f32 %v1791, %v1794
    %v1797 = vtanh.pop %v1795
    %v1798 = vtanh.pop %v1796
    %s1799 = scalar_lea.vmem [#allocation2], 448
    %v1800 = vld [vmem:[%s1799] sm:$0xff]
    %v1801 = vld [vmem:[%s1799 + $0x8] sm:$0xff]
    %v1802 = vld [vmem:[%s1799 + $0x10] sm:$0xff]
    %v1803 = vld [vmem:[%s1799 + $0x18] sm:$0xff]
    %v1804 = vld [vmem:[#allocation9 + $0x14] sm:$0x1]
    %v1805 = vperm.slane %v1804, 0
    %v1807 = vsel %vm109, %v1797, 0
    %v1810 = vsel %vm109, %v1798, 0
    %1812 = vmatpush.msra.mxu0 0.0
    %1813 = vmatpush.msra.mxu0 0.0
    %1814 = vmatpush.msra.mxu0 0.0
    %1815 = vmatpush.msra.mxu0 0.0
    %1816 = vmatpush.msra.mxu0 0.0
    %1817 = vmatpush.msra.mxu0 0.0
    %1818 = vmatpush.msra.mxu0 0.0
    %1819 = vmatpush.msra.mxu0 0.0
    %1820 = vmatpush.msra.mxu0 0.0
    %1821 = vmatpush.msra.mxu0 0.0
    %1822 = vmatpush.msra.mxu0 0.0
    %1823 = vmatpush.msra.mxu0 0.0
    %1824 = vmatpush.msra.mxu0 %v1803
    %1825 = vmatpush.msra.mxu0 %v1802
    %1826 = vmatpush.msra.mxu0 %v1801
    %1827 = vmatpush.msra.mxu0 %v1800
    %1828 = vmatmul.f32.gmra.mxu0 %v1807
    %v1829 = vpop.f32.mrf.mxu0
    %v1830 = vadd.f32 %v1805, %v1829
    %1831 = vmatmul.f32.gmra.mxu0 %v1810
    %v1832 = vpop.f32.mrf.mxu0
    %v1833 = vadd.f32 %v1805, %v1832
    %1834 = vdwg.mxu0
    %v1835 = vtanh.pop %v1830
    %v1836 = vtanh.pop %v1833
    %s1837 = scalar_lea.vmem [#allocation2], 480
    %v1838 = vld [vmem:[%s1837] sm:$0xff]
    %v1839 = vld [vmem:[%s1837 + $0x8] sm:$0xff]
    %v1840 = vld [vmem:[%s1837 + $0x10] sm:$0xff]
    %v1841 = vld [vmem:[%s1837 + $0x18] sm:$0xff]
    %v1842 = vld [vmem:[#allocation9 + $0x15] sm:$0x1]
    %v1843 = vperm.slane %v1842, 0
    %v1845 = vsel %vm109, %v1835, 0
    %v1848 = vsel %vm109, %v1836, 0
    %1850 = vmatpush.msra.mxu0 0.0
    %1851 = vmatpush.msra.mxu0 0.0
    %1852 = vmatpush.msra.mxu0 0.0
    %1853 = vmatpush.msra.mxu0 0.0
    %1854 = vmatpush.msra.mxu0 0.0
    %1855 = vmatpush.msra.mxu0 0.0
    %1856 = vmatpush.msra.mxu0 0.0
    %1857 = vmatpush.msra.mxu0 0.0
    %1858 = vmatpush.msra.mxu0 0.0
    %1859 = vmatpush.msra.mxu0 0.0
    %1860 = vmatpush.msra.mxu0 0.0
    %1861 = vmatpush.msra.mxu0 0.0
    %1862 = vmatpush.msra.mxu0 %v1841
    %1863 = vmatpush.msra.mxu0 %v1840
    %1864 = vmatpush.msra.mxu0 %v1839
    %1865 = vmatpush.msra.mxu0 %v1838
    %1866 = vmatmul.f32.gmra.mxu0 %v1845
    %v1867 = vpop.f32.mrf.mxu0
    %v1868 = vadd.f32 %v1843, %v1867
    %1869 = vmatmul.f32.gmra.mxu0 %v1848
    %v1870 = vpop.f32.mrf.mxu0
    %v1871 = vadd.f32 %v1843, %v1870
    %1872 = vdwg.mxu0
    %1873 = vst.msk [vmem:[%s6] sm:$0xff] %vm109, %v1868
    %1874 = vst.msk [vmem:[%s6 + $0x8] sm:$0x3] %vm305, %v1871
    // Predicated region
    $region46: #{communication_forward.1} parent=1 // pred_check
      _
    $region47: #{communication_forward.1} parent=1 // pred_check_branch
      %1876 = sbr.rel (0) target = $region49
    $region48: #{communication_forward.1} parent=1 // pred_region
      _
    $region49: #{communication_forward.1} parent=1 // pred_fallthru
      _
    // Predicated region
    $region50: #{communication_forward.1} parent=1 // pred_check
      _
    $region51: #{communication_forward.1} parent=1 // pred_check_branch
      %1878 = sbr.rel (0) target = $region53
    $region52: #{communication_forward.1} parent=1 // pred_region
      _
    $region53: #{communication_forward.1} parent=1 // pred_fallthru
      _
    %1879 = vsyncpa [#allocation3], 1
    %1880 = vsyncpa [#allocation5], 1
    %1881 = vsyncpa [#allocation8], 1

</llo_original>
